<compile_context>
chip_gen: v6e
topology: v6e:2x2x1
jax: 0.10.0
libtpu: 0.0.40
codegen_flags: <defaults>
</compile_context>

<pallas_src>
import math

import jax
import jax.numpy as jnp
from jax.experimental import pallas as pl
from jax.experimental.pallas import tpu as pltpu

# ----------------------------- config (small, synthetic) -----------------------------
B = 2                 # batch
CH = 3                # image channels
IMG = 16              # image H=W
PATCH = 8             # patch size -> 2x2 = 4 patches, seq = 5 with CLS
HIDDEN = 32           # vision hidden size
HEADS = 4
HEAD_DIM = HIDDEN // HEADS
INTER = 64            # vision MLP intermediate size
LAYERS = 2            # vision transformer layers
PROJ_DIM = 32         # CLIP projection_dim  (== clip_embeddings_dim of ImageProjModel)
CROSS_DIM = 32        # cross_attention_dim
EXTRA_TOKENS = 4      # clip_extra_context_tokens
TXT_SEQ = 8           # encoder_hidden_states seq length
LN_EPS = 1e-5

NUM_PATCHES = (IMG // PATCH) ** 2
SEQ = NUM_PATCHES + 1
PATCH_K = CH * PATCH * PATCH
OUT_SEQ = TXT_SEQ + EXTRA_TOKENS
ATTN_SCALE = 1.0 / math.sqrt(HEAD_DIM)

# fused per-layer bf16 weight slab column layout: [ qkv (3H) | o_proj (H) | fc1 (INTER) ]
QKV_OFF = 0
O_OFF = 3 * HIDDEN            # 96
FC1_OFF = 4 * HIDDEN          # 128
WLAYER_COLS = 4 * HIDDEN + INTER   # 192

# head bf16 slab column layout: [ ip_proj (EXTRA*CROSS = 128) | vis_proj (PROJ = 32) ]
IPW_COLS = EXTRA_TOKENS * CROSS_DIM   # 128
HEADW_COLS = IPW_COLS + PROJ_DIM      # 160

# per-layer f32 vector slab rows (each padded to 128 lanes)
R_LN1G, R_LN1B, R_QKVB, R_LN2G, R_LN2B, R_OB, R_FC1B, R_FC2B = range(8)
LNB_ROWS = 8
# misc f32 slab rows: 0..SEQ-1 = pos_emb (+class_emb in row 0), then the head-side vectors
M_PREG, M_PREB = SEQ, SEQ + 1
M_POSTG, M_POSTB = SEQ + 2, SEQ + 3
M_IPB, M_IPNG, M_IPNB = SEQ + 4, SEQ + 5, SEQ + 6
MISC_ROWS = SEQ + 7


# ----------------------------- in-kernel helpers -----------------------------
def _bf16(x):
    return x.astype(jnp.bfloat16)


def _ln(x, g, b, eps=LN_EPS):
    """LayerNorm over the true (unpadded) last dim, in f32."""
    mean = jnp.mean(x, axis=-1, keepdims=True)
    xc = x - mean
    var = jnp.mean(xc * xc, axis=-1, keepdims=True)
    return xc * jax.lax.rsqrt(var + eps) * g + b


# ----------------------------- the fused kernel -----------------------------
def _encoder_kernel(
    patches_ref,   # (1, SEQ, PATCH_K) f32  -- row 0 is zeros (CLS slot)
    ehs_ref,       # (1, TXT_SEQ, CROSS_DIM) f32
    nodrop_ref,    # (1, 1, 1) f32
    patchw_ref,    # (PATCH_K, HIDDEN) bf16
    wlayer_ref,    # (LAYERS, HIDDEN, WLAYER_COLS) bf16  [qkv | o | fc1]
    wfc2_ref,      # (LAYERS, INTER, HIDDEN) bf16
    headw_ref,     # (HIDDEN, HEADW_COLS) bf16           [ip_proj | vis_proj]
    lnb_ref,       # (LAYERS, LNB_ROWS, 128) f32
    misc_ref,      # (MISC_ROWS, 128) f32
    out_ref,       # (1, OUT_SEQ, CROSS_DIM) f32
):
    f32 = jnp.float32
    H, HD = HIDDEN, HEAD_DIM

    # ---- patch embedding + CLS/pos (no concat: class_emb folded into pos row 0) + pre-LN ----
    pos_cls = misc_ref[0:SEQ, 0:H]
    h = jnp.dot(_bf16(patches_ref[0]), patchw_ref[...], preferred_element_type=f32) + pos_cls
    h = _ln(h, misc_ref[M_PREG:M_PREG + 1, 0:H], misc_ref[M_PREB:M_PREB + 1, 0:H])

    # ---- transformer layers (statically unrolled; toy-size weights stay VMEM-resident) ----
    for l in range(LAYERS):
        ln1_g = lnb_ref[l, R_LN1G:R_LN1G + 1, 0:H]
        ln1_b = lnb_ref[l, R_LN1B:R_LN1B + 1, 0:H]
        qkv_b = lnb_ref[l, R_QKVB:R_QKVB + 1, 0:3 * H]
        ln2_g = lnb_ref[l, R_LN2G:R_LN2G + 1, 0:H]
        ln2_b = lnb_ref[l, R_LN2B:R_LN2B + 1, 0:H]
        o_b = lnb_ref[l, R_OB:R_OB + 1, 0:H]
        fc1_b = lnb_ref[l, R_FC1B:R_FC1B + 1, 0:INTER]
        fc2_b = lnb_ref[l, R_FC2B:R_FC2B + 1, 0:H]

        # --- self-attention: one fused QKV matmul, per-head softmax, one output-proj matmul ---
        x = _bf16(_ln(h, ln1_g, ln1_b))
        qkv = jnp.dot(x, wlayer_ref[l, :, QKV_OFF:QKV_OFF + 3 * H],
                      preferred_element_type=f32) + qkv_b              # (SEQ, 96)
        heads_out = []
        for hh in range(HEADS):
            q = qkv[:, hh * HD:(hh + 1) * HD]                          # scale folded into weights
            k = qkv[:, H + hh * HD:H + (hh + 1) * HD]
            v = qkv[:, 2 * H + hh * HD:2 * H + (hh + 1) * HD]
            s = jnp.einsum("qd,kd->qk", q, k, preferred_element_type=f32)
            p = jnp.exp(s - jnp.max(s, axis=-1, keepdims=True))
            p = p * pl.reciprocal(jnp.sum(p, axis=-1, keepdims=True), approx=True)
            heads_out.append(jnp.dot(_bf16(p), _bf16(v), preferred_element_type=f32))
        o_all = jnp.concatenate(heads_out, axis=-1)                    # (SEQ, H) lane concat
        h = h + jnp.dot(_bf16(o_all), wlayer_ref[l, :, O_OFF:O_OFF + H],
                        preferred_element_type=f32) + o_b

        # --- MLP with CLIP quick_gelu ---
        x = _bf16(_ln(h, ln2_g, ln2_b))
        hd = jnp.dot(x, wlayer_ref[l, :, FC1_OFF:FC1_OFF + INTER],
                     preferred_element_type=f32) + fc1_b
        hd = hd * jax.nn.sigmoid(1.702 * hd)
        h = h + jnp.dot(_bf16(hd), wfc2_ref[l], preferred_element_type=f32) + fc2_b

    # ---- post-LN on CLS token + visual projection (bias-free) ----
    pooled = _ln(h[0:1, :], misc_ref[M_POSTG:M_POSTG + 1, 0:H],
                 misc_ref[M_POSTB:M_POSTB + 1, 0:H])                   # (1, H)
    image_embeds = jnp.dot(_bf16(pooled), headw_ref[:, IPW_COLS:IPW_COLS + PROJ_DIM],
                           preferred_element_type=f32)                 # (1, PROJ)

    # image_embeds * no_drop_arr[:, None]
    image_embeds = image_embeds * nodrop_ref[0]                        # (1, PROJ) * (1, 1)

    # ---- ImageProjModel: ONE Linear dot -> lane-slice into 4 tokens -> LayerNorm ----
    ip_b = misc_ref[M_IPB:M_IPB + 1, 0:EXTRA_TOKENS * CROSS_DIM]
    row = jnp.dot(_bf16(image_embeds), headw_ref[:, 0:IPW_COLS],
                  preferred_element_type=f32) + ip_b                   # (1, 128)
    toks = jnp.concatenate(
        [row[:, t * CROSS_DIM:(t + 1) * CROSS_DIM] for t in range(EXTRA_TOKENS)], axis=0)
    ip_tokens = _ln(toks, misc_ref[M_IPNG:M_IPNG + 1, 0:CROSS_DIM],
                    misc_ref[M_IPNB:M_IPNB + 1, 0:CROSS_DIM])          # (4, CROSS)

    # ---- fused output: passthrough text tokens + ip tokens via direct (sublane-aligned) stores ----
    out_ref[0, 0:TXT_SEQ, :] = ehs_ref[0]
    out_ref[0, TXT_SEQ:OUT_SEQ, :] = ip_tokens


# ----------------------------- wrapper / glue -----------------------------
def extract_patches(img):
    """img: (B, C, H, W) NCHW -> (B, num_patches, C*p*p), matching conv-unfold order."""
    b, c, h, w = img.shape
    p = PATCH
    x = img.reshape(b, c, h // p, p, w // p, p)
    x = x.transpose(0, 2, 4, 1, 3, 5)  # B, Hp, Wp, C, ph, pw
    return x.reshape(b, (h // p) * (w // p), c * p * p)


def _batch_spec(arr):
    nd = arr.ndim
    return pl.BlockSpec((1,) + arr.shape[1:], lambda i, nd=nd: (i,) + (0,) * (nd - 1))


def _bcast_spec(arr):
    nd = arr.ndim
    return pl.BlockSpec(arr.shape, lambda i, nd=nd: (0,) * nd)


def ip_adapter_encoder_forward(packed, clip_image, encoder_hidden_states, no_drop_arr=None):
    # TODO(synk): the image encoder is frozen (torch.no_grad) in the original module; this is a
    # forward-only implementation so no gradient partitioning is required.
    b = clip_image.shape[0]
    patches = extract_patches(clip_image.astype(jnp.float32))          # (B, NUM_PATCHES, PATCH_K)
    patches = jnp.pad(patches, ((0, 0), (1, 0), (0, 0)))               # zero CLS row -> (B, SEQ, K)
    ehs = encoder_hidden_states.astype(jnp.float32)                    # (B, TXT_SEQ, CROSS)
    nodrop = (jnp.ones((b, 1, 1), jnp.float32) if no_drop_arr is None
              else no_drop_arr.reshape(b, 1, 1).astype(jnp.float32))

    items = [
        (patches, True),
        (ehs, True),
        (nodrop, True),
        (packed["patch_w"], False),
        (packed["w_layer"], False),
        (packed["w_fc2"], False),
        (packed["head_w"], False),
        (packed["lnb"], False),
        (packed["misc"], False),
    ]
    operands = [a for a, _ in items]
    in_specs = [(_batch_spec(a) if batched else _bcast_spec(a)) for a, batched in items]

    # advisory cost estimate so XLA can schedule around this tiny custom call
    flops_per_b = (
        2 * SEQ * PATCH_K * HIDDEN
        + LAYERS * (
            2 * SEQ * HIDDEN * 3 * HIDDEN              # fused QKV
            + HEADS * (2 * 2 * SEQ * SEQ * HEAD_DIM)   # scores + p@v
            + 2 * SEQ * HIDDEN * HIDDEN                # output proj
            + 2 * SEQ * HIDDEN * INTER                 # fc1
            + 2 * SEQ * INTER * HIDDEN                 # fc2
        )
        + 2 * HIDDEN * PROJ_DIM                        # visual projection
        + 2 * PROJ_DIM * EXTRA_TOKENS * CROSS_DIM      # ImageProjModel
    )
    trans_per_b = LAYERS * (HEADS * SEQ * SEQ + SEQ * INTER)
    bytes_accessed = int(sum(int(a.size) * a.dtype.itemsize for a in operands)
                         + b * OUT_SEQ * CROSS_DIM * 4)
    cost = pl.CostEstimate(flops=int(b * flops_per_b),
                           transcendentals=int(b * trans_per_b),
                           bytes_accessed=bytes_accessed)

    return pl.pallas_call(
        _encoder_kernel,
        grid=(b,),
        in_specs=in_specs,
        out_specs=pl.BlockSpec((1, OUT_SEQ, CROSS_DIM), lambda i: (i, 0, 0)),
        out_shape=jax.ShapeDtypeStruct((b, OUT_SEQ, CROSS_DIM), jnp.float32),
        compiler_params=pltpu.CompilerParams(
            dimension_semantics=("parallel",),   # v7x: one batch element per TensorCore
        ),
        cost_estimate=cost,
    )(*operands)


# ----------------------------- deterministic param init + packing -----------------------------
def init_params(key):
    def nrm(k, shape, scale=0.02):
        return (jax.random.normal(k, shape, jnp.float32) * scale).astype(jnp.float32)

    keys = iter(jax.random.split(key, 64))
    params = {
        "patch_w": nrm(next(keys), (PATCH_K, HIDDEN)),
        "class_emb": nrm(next(keys), (HIDDEN,)),
        "pos_emb": nrm(next(keys), (SEQ, HIDDEN)),
        "pre_ln_g": jnp.ones((HIDDEN,), jnp.float32),
        "pre_ln_b": jnp.zeros((HIDDEN,), jnp.float32),
        "post_ln_g": jnp.ones((HIDDEN,), jnp.float32),
        "post_ln_b": jnp.zeros((HIDDEN,), jnp.float32),
        "vis_proj_w": nrm(next(keys), (HIDDEN, PROJ_DIM)),
        "ip_proj_w": nrm(next(keys), (PROJ_DIM, EXTRA_TOKENS * CROSS_DIM)),
        "ip_proj_b": jnp.zeros((EXTRA_TOKENS * CROSS_DIM,), jnp.float32),
        "ip_norm_g": jnp.ones((CROSS_DIM,), jnp.float32),
        "ip_norm_b": jnp.zeros((CROSS_DIM,), jnp.float32),
        "layers": [],
    }
    for _ in range(LAYERS):
        lp = {
            "ln1_g": jnp.ones((HIDDEN,), jnp.float32),
            "ln1_b": jnp.zeros((HIDDEN,), jnp.float32),
            "ln2_g": jnp.ones((HIDDEN,), jnp.float32),
            "ln2_b": jnp.zeros((HIDDEN,), jnp.float32),
            "q_w": nrm(next(keys), (HIDDEN, HIDDEN)),
            "q_b": jnp.zeros((HIDDEN,), jnp.float32),
            "k_w": nrm(next(keys), (HIDDEN, HIDDEN)),
            "k_b": jnp.zeros((HIDDEN,), jnp.float32),
            "v_w": nrm(next(keys), (HIDDEN, HIDDEN)),
            "v_b": jnp.zeros((HIDDEN,), jnp.float32),
            "o_w": nrm(next(keys), (HIDDEN, HIDDEN)),
            "o_b": jnp.zeros((HIDDEN,), jnp.float32),
            "fc1_w": nrm(next(keys), (HIDDEN, INTER)),
            "fc1_b": jnp.zeros((INTER,), jnp.float32),
            "fc2_w": nrm(next(keys), (INTER, HIDDEN)),
            "fc2_b": jnp.zeros((HIDDEN,), jnp.float32),
        }
        params["layers"].append(lp)
    return params


def _pad128_row(v):
    v = jnp.asarray(v, jnp.float32).reshape(1, -1)
    return jnp.pad(v, ((0, 0), (0, 128 - v.shape[1])))


def pack_params(raw):
    """Collapse the ~32 raw tensors into a handful of kernel-friendly slabs:
       * one bf16 per-layer matmul slab [qkv | o | fc1] with ATTN_SCALE folded into Q,
       * one bf16 fc2 stack, one bf16 patch-embed weight, one bf16 head slab [ip_proj | vis_proj],
       * one f32 per-layer LN/bias slab (rows padded to 128 lanes),
       * one f32 misc slab (pos+CLS folded, pre/post LN, ImageProj bias & norm)."""
    bf16 = lambda x: jnp.asarray(x, jnp.bfloat16)

    w_layer_rows, lnb_rows = [], []
    for lp in raw["layers"]:
        qkv_w = jnp.concatenate([lp["q_w"] * ATTN_SCALE, lp["k_w"], lp["v_w"]], axis=1)   # (H, 3H)
        w_layer_rows.append(jnp.concatenate([qkv_w, lp["o_w"], lp["fc1_w"]], axis=1))     # (H, 192)
        qkv_b = jnp.concatenate([lp["q_b"] * ATTN_SCALE, lp["k_b"], lp["v_b"]])           # (96,)
        rows = [lp["ln1_g"], lp["ln1_b"], qkv_b, lp["ln2_g"], lp["ln2_b"],
                lp["o_b"], lp["fc1_b"], lp["fc2_b"]]
        lnb_rows.append(jnp.concatenate([_pad128_row(r) for r in rows], axis=0))          # (8, 128)

    pos_cls = raw["pos_emb"].at[0].add(raw["class_emb"])                                  # (SEQ, H)
    misc = jnp.concatenate(
        [jnp.pad(pos_cls.astype(jnp.float32), ((0, 0), (0, 128 - HIDDEN))),
         _pad128_row(raw["pre_ln_g"]), _pad128_row(raw["pre_ln_b"]),
         _pad128_row(raw["post_ln_g"]), _pad128_row(raw["post_ln_b"]),
         _pad128_row(raw["ip_proj_b"]),
         _pad128_row(raw["ip_norm_g"]), _pad128_row(raw["ip_norm_b"])], axis=0)           # (12, 128)

    return {
        "patch_w": bf16(raw["patch_w"]),                                                  # (192, 32)
        "w_layer": bf16(jnp.stack(w_layer_rows, 0)),                                      # (L, 32, 192)
        "w_fc2": bf16(jnp.stack([lp["fc2_w"] for lp in raw["layers"]], 0)),               # (L, 64, 32)
        "head_w": bf16(jnp.concatenate([raw["ip_proj_w"], raw["vis_proj_w"]], axis=1)),   # (32, 160)
        "lnb": jnp.stack(lnb_rows, 0).astype(jnp.float32),                                # (L, 8, 128)
        "misc": misc.astype(jnp.float32),                                                 # (12, 128)
    }


# ----------------------------- main -----------------------------
if __name__ == "__main__":
    root = jax.random.PRNGKey(0)
    k_params, k_img, k_txt = jax.random.split(root, 3)

    packed = pack_params(init_params(k_params))
    clip_image = jax.random.normal(k_img, (B, CH, IMG, IMG), jnp.float32)            # NCHW
    encoder_hidden_states = jax.random.normal(k_txt, (B, TXT_SEQ, CROSS_DIM), jnp.float32)
    no_drop_arr = jnp.array([1.0, 0.0], jnp.float32)   # second sample's image cond dropped

    fwd = jax.jit(ip_adapter_encoder_forward)
    out = fwd(packed, clip_image, encoder_hidden_states, no_drop_arr)
    out = jax.block_until_ready(out)

    assert out.shape == (B, TXT_SEQ + EXTRA_TOKENS, CROSS_DIM), out.shape
    assert jnp.all(jnp.isfinite(out)), "non-finite output"
    # text tokens are a pure passthrough -- cheap sanity check of the fused output stores
    assert jnp.allclose(out[:, :TXT_SEQ, :], encoder_hidden_states, atol=1e-6), "ehs passthrough mismatch"
    print("KERNEL_OK")
</pallas_src>

<mosaic_0001>
module attributes {stable_mosaic.version = 11 : i64} {
  func.func @_encoder_kernel(%arg0: i32, %arg1: memref<1x5x192xf32, #tpu.memory_space<vmem>>, %arg2: memref<1x8x32xf32, #tpu.memory_space<vmem>>, %arg3: memref<1x1x1xf32, #tpu.memory_space<vmem>>, %arg4: memref<192x32xbf16, #tpu.memory_space<vmem>>, %arg5: memref<2x32x192xbf16, #tpu.memory_space<vmem>>, %arg6: memref<2x64x32xbf16, #tpu.memory_space<vmem>>, %arg7: memref<32x160xbf16, #tpu.memory_space<vmem>>, %arg8: memref<2x8x128xf32, #tpu.memory_space<vmem>>, %arg9: memref<12x128xf32, #tpu.memory_space<vmem>>, %arg10: memref<1x12x32xf32, #tpu.memory_space<vmem>>) attributes {dimension_semantics = [#tpu.dimension_semantics<parallel>], iteration_bounds = array<i64: 2>, scalar_prefetch = 0 : i64, scratch_operands = 0 : i64, tpu.core_type = #tpu.core_type<tc>, window_params = [{transform_indices = @transform_0, window_bounds = array<i64: 1, 5, 192>}, {transform_indices = @transform_1, window_bounds = array<i64: 1, 8, 32>}, {transform_indices = @transform_2, window_bounds = array<i64: 1, 1, 1>}, {pipeline_mode = #tpu.pipeline_mode<synchronous>, transform_indices = @transform_3, window_bounds = array<i64: 192, 32>}, {pipeline_mode = #tpu.pipeline_mode<synchronous>, transform_indices = @transform_4, window_bounds = array<i64: 2, 32, 192>}, {pipeline_mode = #tpu.pipeline_mode<synchronous>, transform_indices = @transform_5, window_bounds = array<i64: 2, 64, 32>}, {pipeline_mode = #tpu.pipeline_mode<synchronous>, transform_indices = @transform_6, window_bounds = array<i64: 32, 160>}, {pipeline_mode = #tpu.pipeline_mode<synchronous>, transform_indices = @transform_7, window_bounds = array<i64: 2, 8, 128>}, {pipeline_mode = #tpu.pipeline_mode<synchronous>, transform_indices = @transform_8, window_bounds = array<i64: 12, 128>}, {transform_indices = @transform_9, window_bounds = array<i64: 1, 12, 32>}]} {
    %c0 = arith.constant 0 : index
    %c0_0 = arith.constant 0 : index
    %0 = vector.load %arg9[%c0, %c0_0] : memref<12x128xf32, #tpu.memory_space<vmem>>, vector<5x32xf32>
    %c0_1 = arith.constant 0 : index
    %c0_2 = arith.constant 0 : index
    %c0_3 = arith.constant 0 : index
    %1 = vector.load %arg1[%c0_1, %c0_2, %c0_3] : memref<1x5x192xf32, #tpu.memory_space<vmem>>, vector<1x5x192xf32>
    %2 = vector.shape_cast %1 : vector<1x5x192xf32> to vector<5x192xf32>
    %3 = arith.truncf %2 : vector<5x192xf32> to vector<5x192xbf16>
    %c0_4 = arith.constant 0 : index
    %c0_5 = arith.constant 0 : index
    %4 = vector.load %arg4[%c0_4, %c0_5] : memref<192x32xbf16, #tpu.memory_space<vmem>>, vector<192x32xbf16>
    %cst = arith.constant dense<0.000000e+00> : vector<5x32xf32>
    %5 = tpu.matmul %3, %4, %cst {dimension_numbers = #tpu.dot_dimension_numbers<[1], [0], [0], [1], [0, 0, 1, 1], [], []>} : vector<5x192xbf16>, vector<192x32xbf16>, vector<5x32xf32> -> vector<5x32xf32>
    %6 = arith.addf %5, %0 : vector<5x32xf32>
    %c5 = arith.constant 5 : index
    %c0_6 = arith.constant 0 : index
    %7 = vector.load %arg9[%c5, %c0_6] : memref<12x128xf32, #tpu.memory_space<vmem>>, vector<1x32xf32>
    %c6 = arith.constant 6 : index
    %c0_7 = arith.constant 0 : index
    %8 = vector.load %arg9[%c6, %c0_7] : memref<12x128xf32, #tpu.memory_space<vmem>>, vector<1x32xf32>
    %cst_8 = arith.constant dense<0.000000e+00> : vector<5xf32>
    %9 = vector.multi_reduction <add>, %6, %cst_8 [1] : vector<5x32xf32> to vector<5xf32>
    %10 = vector.shape_cast %9 : vector<5xf32> to vector<5x1xf32>
    %cst_9 = arith.constant 3.200000e+01 : f32
    %11 = vector.broadcast %cst_9 : f32 to vector<5x1xf32>
    %12 = arith.divf %10, %11 : vector<5x1xf32>
    %13 = vector.broadcast %12 : vector<5x1xf32> to vector<5x32xf32>
    %14 = arith.subf %6, %13 : vector<5x32xf32>
    %15 = arith.mulf %14, %14 : vector<5x32xf32>
    %cst_10 = arith.constant dense<0.000000e+00> : vector<5xf32>
    %16 = vector.multi_reduction <add>, %15, %cst_10 [1] : vector<5x32xf32> to vector<5xf32>
    %17 = vector.shape_cast %16 : vector<5xf32> to vector<5x1xf32>
    %cst_11 = arith.constant 3.200000e+01 : f32
    %18 = vector.broadcast %cst_11 : f32 to vector<5x1xf32>
    %19 = arith.divf %17, %18 : vector<5x1xf32>
    %cst_12 = arith.constant 9.99999974E-6 : f32
    %20 = vector.broadcast %cst_12 : f32 to vector<5x1xf32>
    %21 = arith.addf %19, %20 : vector<5x1xf32>
    %22 = math.rsqrt %21 : vector<5x1xf32>
    %23 = vector.broadcast %22 : vector<5x1xf32> to vector<5x32xf32>
    %24 = arith.mulf %14, %23 : vector<5x32xf32>
    %25 = vector.broadcast %7 : vector<1x32xf32> to vector<5x32xf32>
    %26 = arith.mulf %24, %25 : vector<5x32xf32>
    %27 = vector.broadcast %8 : vector<1x32xf32> to vector<5x32xf32>
    %28 = arith.addf %26, %27 : vector<5x32xf32>
    %c0_13 = arith.constant 0 : index
    %c0_14 = arith.constant 0 : index
    %c0_15 = arith.constant 0 : index
    %29 = vector.load %arg8[%c0_13, %c0_14, %c0_15] : memref<2x8x128xf32, #tpu.memory_space<vmem>>, vector<1x1x32xf32>
    %30 = vector.shape_cast %29 : vector<1x1x32xf32> to vector<1x32xf32>
    %c0_16 = arith.constant 0 : index
    %c1 = arith.constant 1 : index
    %c0_17 = arith.constant 0 : index
    %31 = vector.load %arg8[%c0_16, %c1, %c0_17] : memref<2x8x128xf32, #tpu.memory_space<vmem>>, vector<1x1x32xf32>
    %32 = vector.shape_cast %31 : vector<1x1x32xf32> to vector<1x32xf32>
    %c0_18 = arith.constant 0 : index
    %c2 = arith.constant 2 : index
    %c0_19 = arith.constant 0 : index
    %33 = vector.load %arg8[%c0_18, %c2, %c0_19] : memref<2x8x128xf32, #tpu.memory_space<vmem>>, vector<1x1x96xf32>
    %34 = vector.shape_cast %33 : vector<1x1x96xf32> to vector<1x96xf32>
    %c0_20 = arith.constant 0 : index
    %c3 = arith.constant 3 : index
    %c0_21 = arith.constant 0 : index
    %35 = vector.load %arg8[%c0_20, %c3, %c0_21] : memref<2x8x128xf32, #tpu.memory_space<vmem>>, vector<1x1x32xf32>
    %36 = vector.shape_cast %35 : vector<1x1x32xf32> to vector<1x32xf32>
    %c0_22 = arith.constant 0 : index
    %c4 = arith.constant 4 : index
    %c0_23 = arith.constant 0 : index
    %37 = vector.load %arg8[%c0_22, %c4, %c0_23] : memref<2x8x128xf32, #tpu.memory_space<vmem>>, vector<1x1x32xf32>
    %38 = vector.shape_cast %37 : vector<1x1x32xf32> to vector<1x32xf32>
    %c0_24 = arith.constant 0 : index
    %c5_25 = arith.constant 5 : index
    %c0_26 = arith.constant 0 : index
    %39 = vector.load %arg8[%c0_24, %c5_25, %c0_26] : memref<2x8x128xf32, #tpu.memory_space<vmem>>, vector<1x1x32xf32>
    %40 = vector.shape_cast %39 : vector<1x1x32xf32> to vector<1x32xf32>
    %c0_27 = arith.constant 0 : index
    %c6_28 = arith.constant 6 : index
    %c0_29 = arith.constant 0 : index
    %41 = vector.load %arg8[%c0_27, %c6_28, %c0_29] : memref<2x8x128xf32, #tpu.memory_space<vmem>>, vector<1x1x64xf32>
    %42 = vector.shape_cast %41 : vector<1x1x64xf32> to vector<1x64xf32>
    %c0_30 = arith.constant 0 : index
    %c7 = arith.constant 7 : index
    %c0_31 = arith.constant 0 : index
    %43 = vector.load %arg8[%c0_30, %c7, %c0_31] : memref<2x8x128xf32, #tpu.memory_space<vmem>>, vector<1x1x32xf32>
    %44 = vector.shape_cast %43 : vector<1x1x32xf32> to vector<1x32xf32>
    %cst_32 = arith.constant dense<0.000000e+00> : vector<5xf32>
    %45 = vector.multi_reduction <add>, %28, %cst_32 [1] : vector<5x32xf32> to vector<5xf32>
    %46 = vector.shape_cast %45 : vector<5xf32> to vector<5x1xf32>
    %cst_33 = arith.constant 3.200000e+01 : f32
    %47 = vector.broadcast %cst_33 : f32 to vector<5x1xf32>
    %48 = arith.divf %46, %47 : vector<5x1xf32>
    %49 = vector.broadcast %48 : vector<5x1xf32> to vector<5x32xf32>
    %50 = arith.subf %28, %49 : vector<5x32xf32>
    %51 = arith.mulf %50, %50 : vector<5x32xf32>
    %cst_34 = arith.constant dense<0.000000e+00> : vector<5xf32>
    %52 = vector.multi_reduction <add>, %51, %cst_34 [1] : vector<5x32xf32> to vector<5xf32>
    %53 = vector.shape_cast %52 : vector<5xf32> to vector<5x1xf32>
    %cst_35 = arith.constant 3.200000e+01 : f32
    %54 = vector.broadcast %cst_35 : f32 to vector<5x1xf32>
    %55 = arith.divf %53, %54 : vector<5x1xf32>
    %cst_36 = arith.constant 9.99999974E-6 : f32
    %56 = vector.broadcast %cst_36 : f32 to vector<5x1xf32>
    %57 = arith.addf %55, %56 : vector<5x1xf32>
    %58 = math.rsqrt %57 : vector<5x1xf32>
    %59 = vector.broadcast %58 : vector<5x1xf32> to vector<5x32xf32>
    %60 = arith.mulf %50, %59 : vector<5x32xf32>
    %61 = vector.broadcast %30 : vector<1x32xf32> to vector<5x32xf32>
    %62 = arith.mulf %60, %61 : vector<5x32xf32>
    %63 = vector.broadcast %32 : vector<1x32xf32> to vector<5x32xf32>
    %64 = arith.addf %62, %63 : vector<5x32xf32>
    %65 = arith.truncf %64 : vector<5x32xf32> to vector<5x32xbf16>
    %c0_37 = arith.constant 0 : index
    %c0_38 = arith.constant 0 : index
    %c0_39 = arith.constant 0 : index
    %66 = vector.load %arg5[%c0_37, %c0_38, %c0_39] : memref<2x32x192xbf16, #tpu.memory_space<vmem>>, vector<1x32x96xbf16>
    %67 = vector.shape_cast %66 : vector<1x32x96xbf16> to vector<32x96xbf16>
    %cst_40 = arith.constant dense<0.000000e+00> : vector<5x96xf32>
    %68 = tpu.matmul %65, %67, %cst_40 {dimension_numbers = #tpu.dot_dimension_numbers<[1], [0], [0], [1], [0, 0, 1, 1], [], []>} : vector<5x32xbf16>, vector<32x96xbf16>, vector<5x96xf32> -> vector<5x96xf32>
    %69 = vector.broadcast %34 : vector<1x96xf32> to vector<5x96xf32>
    %70 = arith.addf %68, %69 : vector<5x96xf32>
    %71 = vector.extract_strided_slice %70 {offsets = [0, 0], sizes = [5, 8], strides = [1, 1]} : vector<5x96xf32> to vector<5x8xf32>
    %72 = vector.extract_strided_slice %70 {offsets = [0, 32], sizes = [5, 8], strides = [1, 1]} : vector<5x96xf32> to vector<5x8xf32>
    %73 = vector.extract_strided_slice %70 {offsets = [0, 64], sizes = [5, 8], strides = [1, 1]} : vector<5x96xf32> to vector<5x8xf32>
    "tpu.trace_start"() <{level = 10 : i32, message = "qd,kd->qk"}> : () -> ()
    %cst_41 = arith.constant dense<0.000000e+00> : vector<5x5xf32>
    %74 = tpu.matmul %71, %72, %cst_41 {dimension_numbers = #tpu.dot_dimension_numbers<[1], [1], [0], [0], [0, 0, 1, 0], [], []>} : vector<5x8xf32>, vector<5x8xf32>, vector<5x5xf32> -> vector<5x5xf32>
    "tpu.trace_stop"() : () -> ()
    %cst_42 = arith.constant dense<0xFF800000> : vector<5xf32>
    %75 = vector.multi_reduction <maximumf>, %74, %cst_42 [1] : vector<5x5xf32> to vector<5xf32>
    %76 = vector.shape_cast %75 : vector<5xf32> to vector<5x1xf32>
    %77 = vector.broadcast %76 : vector<5x1xf32> to vector<5x5xf32>
    %78 = arith.subf %74, %77 : vector<5x5xf32>
    %79 = math.exp %78 : vector<5x5xf32>
    %cst_43 = arith.constant dense<0.000000e+00> : vector<5xf32>
    %80 = vector.multi_reduction <add>, %79, %cst_43 [1] : vector<5x5xf32> to vector<5xf32>
    %81 = vector.shape_cast %80 : vector<5xf32> to vector<5x1xf32>
    %82 = tpu.reciprocal %81 {approx = true} : vector<5x1xf32> -> vector<5x1xf32>
    %83 = vector.broadcast %82 : vector<5x1xf32> to vector<5x5xf32>
    %84 = arith.mulf %79, %83 : vector<5x5xf32>
    %85 = arith.truncf %84 : vector<5x5xf32> to vector<5x5xbf16>
    %86 = arith.truncf %73 : vector<5x8xf32> to vector<5x8xbf16>
    %cst_44 = arith.constant dense<0.000000e+00> : vector<5x8xf32>
    %87 = tpu.matmul %85, %86, %cst_44 {dimension_numbers = #tpu.dot_dimension_numbers<[1], [0], [0], [1], [0, 0, 1, 1], [], []>} : vector<5x5xbf16>, vector<5x8xbf16>, vector<5x8xf32> -> vector<5x8xf32>
    %88 = vector.extract_strided_slice %70 {offsets = [0, 8], sizes = [5, 8], strides = [1, 1]} : vector<5x96xf32> to vector<5x8xf32>
    %89 = vector.extract_strided_slice %70 {offsets = [0, 40], sizes = [5, 8], strides = [1, 1]} : vector<5x96xf32> to vector<5x8xf32>
    %90 = vector.extract_strided_slice %70 {offsets = [0, 72], sizes = [5, 8], strides = [1, 1]} : vector<5x96xf32> to vector<5x8xf32>
    "tpu.trace_start"() <{level = 10 : i32, message = "qd,kd->qk"}> : () -> ()
    %cst_45 = arith.constant dense<0.000000e+00> : vector<5x5xf32>
    %91 = tpu.matmul %88, %89, %cst_45 {dimension_numbers = #tpu.dot_dimension_numbers<[1], [1], [0], [0], [0, 0, 1, 0], [], []>} : vector<5x8xf32>, vector<5x8xf32>, vector<5x5xf32> -> vector<5x5xf32>
    "tpu.trace_stop"() : () -> ()
    %cst_46 = arith.constant dense<0xFF800000> : vector<5xf32>
    %92 = vector.multi_reduction <maximumf>, %91, %cst_46 [1] : vector<5x5xf32> to vector<5xf32>
    %93 = vector.shape_cast %92 : vector<5xf32> to vector<5x1xf32>
    %94 = vector.broadcast %93 : vector<5x1xf32> to vector<5x5xf32>
    %95 = arith.subf %91, %94 : vector<5x5xf32>
    %96 = math.exp %95 : vector<5x5xf32>
    %cst_47 = arith.constant dense<0.000000e+00> : vector<5xf32>
    %97 = vector.multi_reduction <add>, %96, %cst_47 [1] : vector<5x5xf32> to vector<5xf32>
    %98 = vector.shape_cast %97 : vector<5xf32> to vector<5x1xf32>
    %99 = tpu.reciprocal %98 {approx = true} : vector<5x1xf32> -> vector<5x1xf32>
    %100 = vector.broadcast %99 : vector<5x1xf32> to vector<5x5xf32>
    %101 = arith.mulf %96, %100 : vector<5x5xf32>
    %102 = arith.truncf %101 : vector<5x5xf32> to vector<5x5xbf16>
    %103 = arith.truncf %90 : vector<5x8xf32> to vector<5x8xbf16>
    %cst_48 = arith.constant dense<0.000000e+00> : vector<5x8xf32>
    %104 = tpu.matmul %102, %103, %cst_48 {dimension_numbers = #tpu.dot_dimension_numbers<[1], [0], [0], [1], [0, 0, 1, 1], [], []>} : vector<5x5xbf16>, vector<5x8xbf16>, vector<5x8xf32> -> vector<5x8xf32>
    %105 = vector.extract_strided_slice %70 {offsets = [0, 16], sizes = [5, 8], strides = [1, 1]} : vector<5x96xf32> to vector<5x8xf32>
    %106 = vector.extract_strided_slice %70 {offsets = [0, 48], sizes = [5, 8], strides = [1, 1]} : vector<5x96xf32> to vector<5x8xf32>
    %107 = vector.extract_strided_slice %70 {offsets = [0, 80], sizes = [5, 8], strides = [1, 1]} : vector<5x96xf32> to vector<5x8xf32>
    "tpu.trace_start"() <{level = 10 : i32, message = "qd,kd->qk"}> : () -> ()
    %cst_49 = arith.constant dense<0.000000e+00> : vector<5x5xf32>
    %108 = tpu.matmul %105, %106, %cst_49 {dimension_numbers = #tpu.dot_dimension_numbers<[1], [1], [0], [0], [0, 0, 1, 0], [], []>} : vector<5x8xf32>, vector<5x8xf32>, vector<5x5xf32> -> vector<5x5xf32>
    "tpu.trace_stop"() : () -> ()
    %cst_50 = arith.constant dense<0xFF800000> : vector<5xf32>
    %109 = vector.multi_reduction <maximumf>, %108, %cst_50 [1] : vector<5x5xf32> to vector<5xf32>
    %110 = vector.shape_cast %109 : vector<5xf32> to vector<5x1xf32>
    %111 = vector.broadcast %110 : vector<5x1xf32> to vector<5x5xf32>
    %112 = arith.subf %108, %111 : vector<5x5xf32>
    %113 = math.exp %112 : vector<5x5xf32>
    %cst_51 = arith.constant dense<0.000000e+00> : vector<5xf32>
    %114 = vector.multi_reduction <add>, %113, %cst_51 [1] : vector<5x5xf32> to vector<5xf32>
    %115 = vector.shape_cast %114 : vector<5xf32> to vector<5x1xf32>
    %116 = tpu.reciprocal %115 {approx = true} : vector<5x1xf32> -> vector<5x1xf32>
    %117 = vector.broadcast %116 : vector<5x1xf32> to vector<5x5xf32>
    %118 = arith.mulf %113, %117 : vector<5x5xf32>
    %119 = arith.truncf %118 : vector<5x5xf32> to vector<5x5xbf16>
    %120 = arith.truncf %107 : vector<5x8xf32> to vector<5x8xbf16>
    %cst_52 = arith.constant dense<0.000000e+00> : vector<5x8xf32>
    %121 = tpu.matmul %119, %120, %cst_52 {dimension_numbers = #tpu.dot_dimension_numbers<[1], [0], [0], [1], [0, 0, 1, 1], [], []>} : vector<5x5xbf16>, vector<5x8xbf16>, vector<5x8xf32> -> vector<5x8xf32>
    %122 = vector.extract_strided_slice %70 {offsets = [0, 24], sizes = [5, 8], strides = [1, 1]} : vector<5x96xf32> to vector<5x8xf32>
    %123 = vector.extract_strided_slice %70 {offsets = [0, 56], sizes = [5, 8], strides = [1, 1]} : vector<5x96xf32> to vector<5x8xf32>
    %124 = vector.extract_strided_slice %70 {offsets = [0, 88], sizes = [5, 8], strides = [1, 1]} : vector<5x96xf32> to vector<5x8xf32>
    "tpu.trace_start"() <{level = 10 : i32, message = "qd,kd->qk"}> : () -> ()
    %cst_53 = arith.constant dense<0.000000e+00> : vector<5x5xf32>
    %125 = tpu.matmul %122, %123, %cst_53 {dimension_numbers = #tpu.dot_dimension_numbers<[1], [1], [0], [0], [0, 0, 1, 0], [], []>} : vector<5x8xf32>, vector<5x8xf32>, vector<5x5xf32> -> vector<5x5xf32>
    "tpu.trace_stop"() : () -> ()
    %cst_54 = arith.constant dense<0xFF800000> : vector<5xf32>
    %126 = vector.multi_reduction <maximumf>, %125, %cst_54 [1] : vector<5x5xf32> to vector<5xf32>
    %127 = vector.shape_cast %126 : vector<5xf32> to vector<5x1xf32>
    %128 = vector.broadcast %127 : vector<5x1xf32> to vector<5x5xf32>
    %129 = arith.subf %125, %128 : vector<5x5xf32>
    %130 = math.exp %129 : vector<5x5xf32>
    %cst_55 = arith.constant dense<0.000000e+00> : vector<5xf32>
    %131 = vector.multi_reduction <add>, %130, %cst_55 [1] : vector<5x5xf32> to vector<5xf32>
    %132 = vector.shape_cast %131 : vector<5xf32> to vector<5x1xf32>
    %133 = tpu.reciprocal %132 {approx = true} : vector<5x1xf32> -> vector<5x1xf32>
    %134 = vector.broadcast %133 : vector<5x1xf32> to vector<5x5xf32>
    %135 = arith.mulf %130, %134 : vector<5x5xf32>
    %136 = arith.truncf %135 : vector<5x5xf32> to vector<5x5xbf16>
    %137 = arith.truncf %124 : vector<5x8xf32> to vector<5x8xbf16>
    %cst_56 = arith.constant dense<0.000000e+00> : vector<5x8xf32>
    %138 = tpu.matmul %136, %137, %cst_56 {dimension_numbers = #tpu.dot_dimension_numbers<[1], [0], [0], [1], [0, 0, 1, 1], [], []>} : vector<5x5xbf16>, vector<5x8xbf16>, vector<5x8xf32> -> vector<5x8xf32>
    %139 = tpu.concatenate %87, %104, %121, %138 in 1 : vector<5x8xf32>, vector<5x8xf32>, vector<5x8xf32>, vector<5x8xf32> -> vector<5x32xf32>
    %140 = arith.truncf %139 : vector<5x32xf32> to vector<5x32xbf16>
    %c0_57 = arith.constant 0 : index
    %c0_58 = arith.constant 0 : index
    %c96 = arith.constant 96 : index
    %141 = vector.load %arg5[%c0_57, %c0_58, %c96] : memref<2x32x192xbf16, #tpu.memory_space<vmem>>, vector<1x32x32xbf16>
    %142 = vector.shape_cast %141 : vector<1x32x32xbf16> to vector<32x32xbf16>
    %cst_59 = arith.constant dense<0.000000e+00> : vector<5x32xf32>
    %143 = tpu.matmul %140, %142, %cst_59 {dimension_numbers = #tpu.dot_dimension_numbers<[1], [0], [0], [1], [0, 0, 1, 1], [], []>} : vector<5x32xbf16>, vector<32x32xbf16>, vector<5x32xf32> -> vector<5x32xf32>
    %144 = arith.addf %28, %143 : vector<5x32xf32>
    %145 = vector.broadcast %40 : vector<1x32xf32> to vector<5x32xf32>
    %146 = arith.addf %144, %145 : vector<5x32xf32>
    %cst_60 = arith.constant dense<0.000000e+00> : vector<5xf32>
    %147 = vector.multi_reduction <add>, %146, %cst_60 [1] : vector<5x32xf32> to vector<5xf32>
    %148 = vector.shape_cast %147 : vector<5xf32> to vector<5x1xf32>
    %cst_61 = arith.constant 3.200000e+01 : f32
    %149 = vector.broadcast %cst_61 : f32 to vector<5x1xf32>
    %150 = arith.divf %148, %149 : vector<5x1xf32>
    %151 = vector.broadcast %150 : vector<5x1xf32> to vector<5x32xf32>
    %152 = arith.subf %146, %151 : vector<5x32xf32>
    %153 = arith.mulf %152, %152 : vector<5x32xf32>
    %cst_62 = arith.constant dense<0.000000e+00> : vector<5xf32>
    %154 = vector.multi_reduction <add>, %153, %cst_62 [1] : vector<5x32xf32> to vector<5xf32>
    %155 = vector.shape_cast %154 : vector<5xf32> to vector<5x1xf32>
    %cst_63 = arith.constant 3.200000e+01 : f32
    %156 = vector.broadcast %cst_63 : f32 to vector<5x1xf32>
    %157 = arith.divf %155, %156 : vector<5x1xf32>
    %cst_64 = arith.constant 9.99999974E-6 : f32
    %158 = vector.broadcast %cst_64 : f32 to vector<5x1xf32>
    %159 = arith.addf %157, %158 : vector<5x1xf32>
    %160 = math.rsqrt %159 : vector<5x1xf32>
    %161 = vector.broadcast %160 : vector<5x1xf32> to vector<5x32xf32>
    %162 = arith.mulf %152, %161 : vector<5x32xf32>
    %163 = vector.broadcast %36 : vector<1x32xf32> to vector<5x32xf32>
    %164 = arith.mulf %162, %163 : vector<5x32xf32>
    %165 = vector.broadcast %38 : vector<1x32xf32> to vector<5x32xf32>
    %166 = arith.addf %164, %165 : vector<5x32xf32>
    %167 = arith.truncf %166 : vector<5x32xf32> to vector<5x32xbf16>
    %c0_65 = arith.constant 0 : index
    %c0_66 = arith.constant 0 : index
    %c128 = arith.constant 128 : index
    %168 = vector.load %arg5[%c0_65, %c0_66, %c128] : memref<2x32x192xbf16, #tpu.memory_space<vmem>>, vector<1x32x64xbf16>
    %169 = vector.shape_cast %168 : vector<1x32x64xbf16> to vector<32x64xbf16>
    %cst_67 = arith.constant dense<0.000000e+00> : vector<5x64xf32>
    %170 = tpu.matmul %167, %169, %cst_67 {dimension_numbers = #tpu.dot_dimension_numbers<[1], [0], [0], [1], [0, 0, 1, 1], [], []>} : vector<5x32xbf16>, vector<32x64xbf16>, vector<5x64xf32> -> vector<5x64xf32>
    %171 = vector.broadcast %42 : vector<1x64xf32> to vector<5x64xf32>
    %172 = arith.addf %170, %171 : vector<5x64xf32>
    %cst_68 = arith.constant 1.702000e+00 : f32
    %173 = vector.broadcast %cst_68 : f32 to vector<5x64xf32>
    %174 = arith.mulf %173, %172 : vector<5x64xf32>
    %175 = arith.negf %174 : vector<5x64xf32>
    %176 = math.exp %175 : vector<5x64xf32>
    %cst_69 = arith.constant 1.000000e+00 : f32
    %177 = vector.broadcast %cst_69 : f32 to vector<5x64xf32>
    %178 = arith.addf %177, %176 : vector<5x64xf32>
    %179 = arith.divf %177, %178 : vector<5x64xf32>
    %180 = arith.mulf %172, %179 : vector<5x64xf32>
    %181 = arith.truncf %180 : vector<5x64xf32> to vector<5x64xbf16>
    %c0_70 = arith.constant 0 : index
    %c0_71 = arith.constant 0 : index
    %c0_72 = arith.constant 0 : index
    %182 = vector.load %arg6[%c0_70, %c0_71, %c0_72] : memref<2x64x32xbf16, #tpu.memory_space<vmem>>, vector<1x64x32xbf16>
    %183 = vector.shape_cast %182 : vector<1x64x32xbf16> to vector<64x32xbf16>
    %cst_73 = arith.constant dense<0.000000e+00> : vector<5x32xf32>
    %184 = tpu.matmul %181, %183, %cst_73 {dimension_numbers = #tpu.dot_dimension_numbers<[1], [0], [0], [1], [0, 0, 1, 1], [], []>} : vector<5x64xbf16>, vector<64x32xbf16>, vector<5x32xf32> -> vector<5x32xf32>
    %185 = arith.addf %146, %184 : vector<5x32xf32>
    %186 = vector.broadcast %44 : vector<1x32xf32> to vector<5x32xf32>
    %187 = arith.addf %185, %186 : vector<5x32xf32>
    %c1_74 = arith.constant 1 : index
    %c0_75 = arith.constant 0 : index
    %c0_76 = arith.constant 0 : index
    %188 = vector.load %arg8[%c1_74, %c0_75, %c0_76] : memref<2x8x128xf32, #tpu.memory_space<vmem>>, vector<1x1x32xf32>
    %189 = vector.shape_cast %188 : vector<1x1x32xf32> to vector<1x32xf32>
    %c1_77 = arith.constant 1 : index
    %c1_78 = arith.constant 1 : index
    %c0_79 = arith.constant 0 : index
    %190 = vector.load %arg8[%c1_77, %c1_78, %c0_79] : memref<2x8x128xf32, #tpu.memory_space<vmem>>, vector<1x1x32xf32>
    %191 = vector.shape_cast %190 : vector<1x1x32xf32> to vector<1x32xf32>
    %c1_80 = arith.constant 1 : index
    %c2_81 = arith.constant 2 : index
    %c0_82 = arith.constant 0 : index
    %192 = vector.load %arg8[%c1_80, %c2_81, %c0_82] : memref<2x8x128xf32, #tpu.memory_space<vmem>>, vector<1x1x96xf32>
    %193 = vector.shape_cast %192 : vector<1x1x96xf32> to vector<1x96xf32>
    %c1_83 = arith.constant 1 : index
    %c3_84 = arith.constant 3 : index
    %c0_85 = arith.constant 0 : index
    %194 = vector.load %arg8[%c1_83, %c3_84, %c0_85] : memref<2x8x128xf32, #tpu.memory_space<vmem>>, vector<1x1x32xf32>
    %195 = vector.shape_cast %194 : vector<1x1x32xf32> to vector<1x32xf32>
    %c1_86 = arith.constant 1 : index
    %c4_87 = arith.constant 4 : index
    %c0_88 = arith.constant 0 : index
    %196 = vector.load %arg8[%c1_86, %c4_87, %c0_88] : memref<2x8x128xf32, #tpu.memory_space<vmem>>, vector<1x1x32xf32>
    %197 = vector.shape_cast %196 : vector<1x1x32xf32> to vector<1x32xf32>
    %c1_89 = arith.constant 1 : index
    %c5_90 = arith.constant 5 : index
    %c0_91 = arith.constant 0 : index
    %198 = vector.load %arg8[%c1_89, %c5_90, %c0_91] : memref<2x8x128xf32, #tpu.memory_space<vmem>>, vector<1x1x32xf32>
    %199 = vector.shape_cast %198 : vector<1x1x32xf32> to vector<1x32xf32>
    %c1_92 = arith.constant 1 : index
    %c6_93 = arith.constant 6 : index
    %c0_94 = arith.constant 0 : index
    %200 = vector.load %arg8[%c1_92, %c6_93, %c0_94] : memref<2x8x128xf32, #tpu.memory_space<vmem>>, vector<1x1x64xf32>
    %201 = vector.shape_cast %200 : vector<1x1x64xf32> to vector<1x64xf32>
    %c1_95 = arith.constant 1 : index
    %c7_96 = arith.constant 7 : index
    %c0_97 = arith.constant 0 : index
    %202 = vector.load %arg8[%c1_95, %c7_96, %c0_97] : memref<2x8x128xf32, #tpu.memory_space<vmem>>, vector<1x1x32xf32>
    %203 = vector.shape_cast %202 : vector<1x1x32xf32> to vector<1x32xf32>
    %cst_98 = arith.constant dense<0.000000e+00> : vector<5xf32>
    %204 = vector.multi_reduction <add>, %187, %cst_98 [1] : vector<5x32xf32> to vector<5xf32>
    %205 = vector.shape_cast %204 : vector<5xf32> to vector<5x1xf32>
    %cst_99 = arith.constant 3.200000e+01 : f32
    %206 = vector.broadcast %cst_99 : f32 to vector<5x1xf32>
    %207 = arith.divf %205, %206 : vector<5x1xf32>
    %208 = vector.broadcast %207 : vector<5x1xf32> to vector<5x32xf32>
    %209 = arith.subf %187, %208 : vector<5x32xf32>
    %210 = arith.mulf %209, %209 : vector<5x32xf32>
    %cst_100 = arith.constant dense<0.000000e+00> : vector<5xf32>
    %211 = vector.multi_reduction <add>, %210, %cst_100 [1] : vector<5x32xf32> to vector<5xf32>
    %212 = vector.shape_cast %211 : vector<5xf32> to vector<5x1xf32>
    %cst_101 = arith.constant 3.200000e+01 : f32
    %213 = vector.broadcast %cst_101 : f32 to vector<5x1xf32>
    %214 = arith.divf %212, %213 : vector<5x1xf32>
    %cst_102 = arith.constant 9.99999974E-6 : f32
    %215 = vector.broadcast %cst_102 : f32 to vector<5x1xf32>
    %216 = arith.addf %214, %215 : vector<5x1xf32>
    %217 = math.rsqrt %216 : vector<5x1xf32>
    %218 = vector.broadcast %217 : vector<5x1xf32> to vector<5x32xf32>
    %219 = arith.mulf %209, %218 : vector<5x32xf32>
    %220 = vector.broadcast %189 : vector<1x32xf32> to vector<5x32xf32>
    %221 = arith.mulf %219, %220 : vector<5x32xf32>
    %222 = vector.broadcast %191 : vector<1x32xf32> to vector<5x32xf32>
    %223 = arith.addf %221, %222 : vector<5x32xf32>
    %224 = arith.truncf %223 : vector<5x32xf32> to vector<5x32xbf16>
    %c1_103 = arith.constant 1 : index
    %c0_104 = arith.constant 0 : index
    %c0_105 = arith.constant 0 : index
    %225 = vector.load %arg5[%c1_103, %c0_104, %c0_105] : memref<2x32x192xbf16, #tpu.memory_space<vmem>>, vector<1x32x96xbf16>
    %226 = vector.shape_cast %225 : vector<1x32x96xbf16> to vector<32x96xbf16>
    %cst_106 = arith.constant dense<0.000000e+00> : vector<5x96xf32>
    %227 = tpu.matmul %224, %226, %cst_106 {dimension_numbers = #tpu.dot_dimension_numbers<[1], [0], [0], [1], [0, 0, 1, 1], [], []>} : vector<5x32xbf16>, vector<32x96xbf16>, vector<5x96xf32> -> vector<5x96xf32>
    %228 = vector.broadcast %193 : vector<1x96xf32> to vector<5x96xf32>
    %229 = arith.addf %227, %228 : vector<5x96xf32>
    %230 = vector.extract_strided_slice %229 {offsets = [0, 0], sizes = [5, 8], strides = [1, 1]} : vector<5x96xf32> to vector<5x8xf32>
    %231 = vector.extract_strided_slice %229 {offsets = [0, 32], sizes = [5, 8], strides = [1, 1]} : vector<5x96xf32> to vector<5x8xf32>
    %232 = vector.extract_strided_slice %229 {offsets = [0, 64], sizes = [5, 8], strides = [1, 1]} : vector<5x96xf32> to vector<5x8xf32>
    "tpu.trace_start"() <{level = 10 : i32, message = "qd,kd->qk"}> : () -> ()
    %cst_107 = arith.constant dense<0.000000e+00> : vector<5x5xf32>
    %233 = tpu.matmul %230, %231, %cst_107 {dimension_numbers = #tpu.dot_dimension_numbers<[1], [1], [0], [0], [0, 0, 1, 0], [], []>} : vector<5x8xf32>, vector<5x8xf32>, vector<5x5xf32> -> vector<5x5xf32>
    "tpu.trace_stop"() : () -> ()
    %cst_108 = arith.constant dense<0xFF800000> : vector<5xf32>
    %234 = vector.multi_reduction <maximumf>, %233, %cst_108 [1] : vector<5x5xf32> to vector<5xf32>
    %235 = vector.shape_cast %234 : vector<5xf32> to vector<5x1xf32>
    %236 = vector.broadcast %235 : vector<5x1xf32> to vector<5x5xf32>
    %237 = arith.subf %233, %236 : vector<5x5xf32>
    %238 = math.exp %237 : vector<5x5xf32>
    %cst_109 = arith.constant dense<0.000000e+00> : vector<5xf32>
    %239 = vector.multi_reduction <add>, %238, %cst_109 [1] : vector<5x5xf32> to vector<5xf32>
    %240 = vector.shape_cast %239 : vector<5xf32> to vector<5x1xf32>
    %241 = tpu.reciprocal %240 {approx = true} : vector<5x1xf32> -> vector<5x1xf32>
    %242 = vector.broadcast %241 : vector<5x1xf32> to vector<5x5xf32>
    %243 = arith.mulf %238, %242 : vector<5x5xf32>
    %244 = arith.truncf %243 : vector<5x5xf32> to vector<5x5xbf16>
    %245 = arith.truncf %232 : vector<5x8xf32> to vector<5x8xbf16>
    %cst_110 = arith.constant dense<0.000000e+00> : vector<5x8xf32>
    %246 = tpu.matmul %244, %245, %cst_110 {dimension_numbers = #tpu.dot_dimension_numbers<[1], [0], [0], [1], [0, 0, 1, 1], [], []>} : vector<5x5xbf16>, vector<5x8xbf16>, vector<5x8xf32> -> vector<5x8xf32>
    %247 = vector.extract_strided_slice %229 {offsets = [0, 8], sizes = [5, 8], strides = [1, 1]} : vector<5x96xf32> to vector<5x8xf32>
    %248 = vector.extract_strided_slice %229 {offsets = [0, 40], sizes = [5, 8], strides = [1, 1]} : vector<5x96xf32> to vector<5x8xf32>
    %249 = vector.extract_strided_slice %229 {offsets = [0, 72], sizes = [5, 8], strides = [1, 1]} : vector<5x96xf32> to vector<5x8xf32>
    "tpu.trace_start"() <{level = 10 : i32, message = "qd,kd->qk"}> : () -> ()
    %cst_111 = arith.constant dense<0.000000e+00> : vector<5x5xf32>
    %250 = tpu.matmul %247, %248, %cst_111 {dimension_numbers = #tpu.dot_dimension_numbers<[1], [1], [0], [0], [0, 0, 1, 0], [], []>} : vector<5x8xf32>, vector<5x8xf32>, vector<5x5xf32> -> vector<5x5xf32>
    "tpu.trace_stop"() : () -> ()
    %cst_112 = arith.constant dense<0xFF800000> : vector<5xf32>
    %251 = vector.multi_reduction <maximumf>, %250, %cst_112 [1] : vector<5x5xf32> to vector<5xf32>
    %252 = vector.shape_cast %251 : vector<5xf32> to vector<5x1xf32>
    %253 = vector.broadcast %252 : vector<5x1xf32> to vector<5x5xf32>
    %254 = arith.subf %250, %253 : vector<5x5xf32>
    %255 = math.exp %254 : vector<5x5xf32>
    %cst_113 = arith.constant dense<0.000000e+00> : vector<5xf32>
    %256 = vector.multi_reduction <add>, %255, %cst_113 [1] : vector<5x5xf32> to vector<5xf32>
    %257 = vector.shape_cast %256 : vector<5xf32> to vector<5x1xf32>
    %258 = tpu.reciprocal %257 {approx = true} : vector<5x1xf32> -> vector<5x1xf32>
    %259 = vector.broadcast %258 : vector<5x1xf32> to vector<5x5xf32>
    %260 = arith.mulf %255, %259 : vector<5x5xf32>
    %261 = arith.truncf %260 : vector<5x5xf32> to vector<5x5xbf16>
    %262 = arith.truncf %249 : vector<5x8xf32> to vector<5x8xbf16>
    %cst_114 = arith.constant dense<0.000000e+00> : vector<5x8xf32>
    %263 = tpu.matmul %261, %262, %cst_114 {dimension_numbers = #tpu.dot_dimension_numbers<[1], [0], [0], [1], [0, 0, 1, 1], [], []>} : vector<5x5xbf16>, vector<5x8xbf16>, vector<5x8xf32> -> vector<5x8xf32>
    %264 = vector.extract_strided_slice %229 {offsets = [0, 16], sizes = [5, 8], strides = [1, 1]} : vector<5x96xf32> to vector<5x8xf32>
    %265 = vector.extract_strided_slice %229 {offsets = [0, 48], sizes = [5, 8], strides = [1, 1]} : vector<5x96xf32> to vector<5x8xf32>
    %266 = vector.extract_strided_slice %229 {offsets = [0, 80], sizes = [5, 8], strides = [1, 1]} : vector<5x96xf32> to vector<5x8xf32>
    "tpu.trace_start"() <{level = 10 : i32, message = "qd,kd->qk"}> : () -> ()
    %cst_115 = arith.constant dense<0.000000e+00> : vector<5x5xf32>
    %267 = tpu.matmul %264, %265, %cst_115 {dimension_numbers = #tpu.dot_dimension_numbers<[1], [1], [0], [0], [0, 0, 1, 0], [], []>} : vector<5x8xf32>, vector<5x8xf32>, vector<5x5xf32> -> vector<5x5xf32>
    "tpu.trace_stop"() : () -> ()
    %cst_116 = arith.constant dense<0xFF800000> : vector<5xf32>
    %268 = vector.multi_reduction <maximumf>, %267, %cst_116 [1] : vector<5x5xf32> to vector<5xf32>
    %269 = vector.shape_cast %268 : vector<5xf32> to vector<5x1xf32>
    %270 = vector.broadcast %269 : vector<5x1xf32> to vector<5x5xf32>
    %271 = arith.subf %267, %270 : vector<5x5xf32>
    %272 = math.exp %271 : vector<5x5xf32>
    %cst_117 = arith.constant dense<0.000000e+00> : vector<5xf32>
    %273 = vector.multi_reduction <add>, %272, %cst_117 [1] : vector<5x5xf32> to vector<5xf32>
    %274 = vector.shape_cast %273 : vector<5xf32> to vector<5x1xf32>
    %275 = tpu.reciprocal %274 {approx = true} : vector<5x1xf32> -> vector<5x1xf32>
    %276 = vector.broadcast %275 : vector<5x1xf32> to vector<5x5xf32>
    %277 = arith.mulf %272, %276 : vector<5x5xf32>
    %278 = arith.truncf %277 : vector<5x5xf32> to vector<5x5xbf16>
    %279 = arith.truncf %266 : vector<5x8xf32> to vector<5x8xbf16>
    %cst_118 = arith.constant dense<0.000000e+00> : vector<5x8xf32>
    %280 = tpu.matmul %278, %279, %cst_118 {dimension_numbers = #tpu.dot_dimension_numbers<[1], [0], [0], [1], [0, 0, 1, 1], [], []>} : vector<5x5xbf16>, vector<5x8xbf16>, vector<5x8xf32> -> vector<5x8xf32>
    %281 = vector.extract_strided_slice %229 {offsets = [0, 24], sizes = [5, 8], strides = [1, 1]} : vector<5x96xf32> to vector<5x8xf32>
    %282 = vector.extract_strided_slice %229 {offsets = [0, 56], sizes = [5, 8], strides = [1, 1]} : vector<5x96xf32> to vector<5x8xf32>
    %283 = vector.extract_strided_slice %229 {offsets = [0, 88], sizes = [5, 8], strides = [1, 1]} : vector<5x96xf32> to vector<5x8xf32>
    "tpu.trace_start"() <{level = 10 : i32, message = "qd,kd->qk"}> : () -> ()
    %cst_119 = arith.constant dense<0.000000e+00> : vector<5x5xf32>
    %284 = tpu.matmul %281, %282, %cst_119 {dimension_numbers = #tpu.dot_dimension_numbers<[1], [1], [0], [0], [0, 0, 1, 0], [], []>} : vector<5x8xf32>, vector<5x8xf32>, vector<5x5xf32> -> vector<5x5xf32>
    "tpu.trace_stop"() : () -> ()
    %cst_120 = arith.constant dense<0xFF800000> : vector<5xf32>
    %285 = vector.multi_reduction <maximumf>, %284, %cst_120 [1] : vector<5x5xf32> to vector<5xf32>
    %286 = vector.shape_cast %285 : vector<5xf32> to vector<5x1xf32>
    %287 = vector.broadcast %286 : vector<5x1xf32> to vector<5x5xf32>
    %288 = arith.subf %284, %287 : vector<5x5xf32>
    %289 = math.exp %288 : vector<5x5xf32>
    %cst_121 = arith.constant dense<0.000000e+00> : vector<5xf32>
    %290 = vector.multi_reduction <add>, %289, %cst_121 [1] : vector<5x5xf32> to vector<5xf32>
    %291 = vector.shape_cast %290 : vector<5xf32> to vector<5x1xf32>
    %292 = tpu.reciprocal %291 {approx = true} : vector<5x1xf32> -> vector<5x1xf32>
    %293 = vector.broadcast %292 : vector<5x1xf32> to vector<5x5xf32>
    %294 = arith.mulf %289, %293 : vector<5x5xf32>
    %295 = arith.truncf %294 : vector<5x5xf32> to vector<5x5xbf16>
    %296 = arith.truncf %283 : vector<5x8xf32> to vector<5x8xbf16>
    %cst_122 = arith.constant dense<0.000000e+00> : vector<5x8xf32>
    %297 = tpu.matmul %295, %296, %cst_122 {dimension_numbers = #tpu.dot_dimension_numbers<[1], [0], [0], [1], [0, 0, 1, 1], [], []>} : vector<5x5xbf16>, vector<5x8xbf16>, vector<5x8xf32> -> vector<5x8xf32>
    %298 = tpu.concatenate %246, %263, %280, %297 in 1 : vector<5x8xf32>, vector<5x8xf32>, vector<5x8xf32>, vector<5x8xf32> -> vector<5x32xf32>
    %299 = arith.truncf %298 : vector<5x32xf32> to vector<5x32xbf16>
    %c1_123 = arith.constant 1 : index
    %c0_124 = arith.constant 0 : index
    %c96_125 = arith.constant 96 : index
    %300 = vector.load %arg5[%c1_123, %c0_124, %c96_125] : memref<2x32x192xbf16, #tpu.memory_space<vmem>>, vector<1x32x32xbf16>
    %301 = vector.shape_cast %300 : vector<1x32x32xbf16> to vector<32x32xbf16>
    %cst_126 = arith.constant dense<0.000000e+00> : vector<5x32xf32>
    %302 = tpu.matmul %299, %301, %cst_126 {dimension_numbers = #tpu.dot_dimension_numbers<[1], [0], [0], [1], [0, 0, 1, 1], [], []>} : vector<5x32xbf16>, vector<32x32xbf16>, vector<5x32xf32> -> vector<5x32xf32>
    %303 = arith.addf %187, %302 : vector<5x32xf32>
    %304 = vector.broadcast %199 : vector<1x32xf32> to vector<5x32xf32>
    %305 = arith.addf %303, %304 : vector<5x32xf32>
    %cst_127 = arith.constant dense<0.000000e+00> : vector<5xf32>
    %306 = vector.multi_reduction <add>, %305, %cst_127 [1] : vector<5x32xf32> to vector<5xf32>
    %307 = vector.shape_cast %306 : vector<5xf32> to vector<5x1xf32>
    %cst_128 = arith.constant 3.200000e+01 : f32
    %308 = vector.broadcast %cst_128 : f32 to vector<5x1xf32>
    %309 = arith.divf %307, %308 : vector<5x1xf32>
    %310 = vector.broadcast %309 : vector<5x1xf32> to vector<5x32xf32>
    %311 = arith.subf %305, %310 : vector<5x32xf32>
    %312 = arith.mulf %311, %311 : vector<5x32xf32>
    %cst_129 = arith.constant dense<0.000000e+00> : vector<5xf32>
    %313 = vector.multi_reduction <add>, %312, %cst_129 [1] : vector<5x32xf32> to vector<5xf32>
    %314 = vector.shape_cast %313 : vector<5xf32> to vector<5x1xf32>
    %cst_130 = arith.constant 3.200000e+01 : f32
    %315 = vector.broadcast %cst_130 : f32 to vector<5x1xf32>
    %316 = arith.divf %314, %315 : vector<5x1xf32>
    %cst_131 = arith.constant 9.99999974E-6 : f32
    %317 = vector.broadcast %cst_131 : f32 to vector<5x1xf32>
    %318 = arith.addf %316, %317 : vector<5x1xf32>
    %319 = math.rsqrt %318 : vector<5x1xf32>
    %320 = vector.broadcast %319 : vector<5x1xf32> to vector<5x32xf32>
    %321 = arith.mulf %311, %320 : vector<5x32xf32>
    %322 = vector.broadcast %195 : vector<1x32xf32> to vector<5x32xf32>
    %323 = arith.mulf %321, %322 : vector<5x32xf32>
    %324 = vector.broadcast %197 : vector<1x32xf32> to vector<5x32xf32>
    %325 = arith.addf %323, %324 : vector<5x32xf32>
    %326 = arith.truncf %325 : vector<5x32xf32> to vector<5x32xbf16>
    %c1_132 = arith.constant 1 : index
    %c0_133 = arith.constant 0 : index
    %c128_134 = arith.constant 128 : index
    %327 = vector.load %arg5[%c1_132, %c0_133, %c128_134] : memref<2x32x192xbf16, #tpu.memory_space<vmem>>, vector<1x32x64xbf16>
    %328 = vector.shape_cast %327 : vector<1x32x64xbf16> to vector<32x64xbf16>
    %cst_135 = arith.constant dense<0.000000e+00> : vector<5x64xf32>
    %329 = tpu.matmul %326, %328, %cst_135 {dimension_numbers = #tpu.dot_dimension_numbers<[1], [0], [0], [1], [0, 0, 1, 1], [], []>} : vector<5x32xbf16>, vector<32x64xbf16>, vector<5x64xf32> -> vector<5x64xf32>
    %330 = vector.broadcast %201 : vector<1x64xf32> to vector<5x64xf32>
    %331 = arith.addf %329, %330 : vector<5x64xf32>
    %cst_136 = arith.constant 1.702000e+00 : f32
    %332 = vector.broadcast %cst_136 : f32 to vector<5x64xf32>
    %333 = arith.mulf %332, %331 : vector<5x64xf32>
    %334 = arith.negf %333 : vector<5x64xf32>
    %335 = math.exp %334 : vector<5x64xf32>
    %cst_137 = arith.constant 1.000000e+00 : f32
    %336 = vector.broadcast %cst_137 : f32 to vector<5x64xf32>
    %337 = arith.addf %336, %335 : vector<5x64xf32>
    %338 = arith.divf %336, %337 : vector<5x64xf32>
    %339 = arith.mulf %331, %338 : vector<5x64xf32>
    %340 = arith.truncf %339 : vector<5x64xf32> to vector<5x64xbf16>
    %c1_138 = arith.constant 1 : index
    %c0_139 = arith.constant 0 : index
    %c0_140 = arith.constant 0 : index
    %341 = vector.load %arg6[%c1_138, %c0_139, %c0_140] : memref<2x64x32xbf16, #tpu.memory_space<vmem>>, vector<1x64x32xbf16>
    %342 = vector.shape_cast %341 : vector<1x64x32xbf16> to vector<64x32xbf16>
    %cst_141 = arith.constant dense<0.000000e+00> : vector<5x32xf32>
    %343 = tpu.matmul %340, %342, %cst_141 {dimension_numbers = #tpu.dot_dimension_numbers<[1], [0], [0], [1], [0, 0, 1, 1], [], []>} : vector<5x64xbf16>, vector<64x32xbf16>, vector<5x32xf32> -> vector<5x32xf32>
    %344 = arith.addf %305, %343 : vector<5x32xf32>
    %345 = vector.broadcast %203 : vector<1x32xf32> to vector<5x32xf32>
    %346 = arith.addf %344, %345 : vector<5x32xf32>
    %347 = vector.extract_strided_slice %346 {offsets = [0, 0], sizes = [1, 32], strides = [1, 1]} : vector<5x32xf32> to vector<1x32xf32>
    %c7_142 = arith.constant 7 : index
    %c0_143 = arith.constant 0 : index
    %348 = vector.load %arg9[%c7_142, %c0_143] : memref<12x128xf32, #tpu.memory_space<vmem>>, vector<1x32xf32>
    %c8 = arith.constant 8 : index
    %c0_144 = arith.constant 0 : index
    %349 = vector.load %arg9[%c8, %c0_144] : memref<12x128xf32, #tpu.memory_space<vmem>>, vector<1x32xf32>
    %cst_145 = arith.constant dense<0.000000e+00> : vector<1xf32>
    %350 = vector.multi_reduction <add>, %347, %cst_145 [1] : vector<1x32xf32> to vector<1xf32>
    %351 = vector.shape_cast %350 : vector<1xf32> to vector<1x1xf32>
    %cst_146 = arith.constant 3.200000e+01 : f32
    %352 = vector.broadcast %cst_146 : f32 to vector<1x1xf32>
    %353 = arith.divf %351, %352 : vector<1x1xf32>
    %354 = vector.broadcast %353 : vector<1x1xf32> to vector<1x32xf32>
    %355 = arith.subf %347, %354 : vector<1x32xf32>
    %356 = arith.mulf %355, %355 : vector<1x32xf32>
    %cst_147 = arith.constant dense<0.000000e+00> : vector<1xf32>
    %357 = vector.multi_reduction <add>, %356, %cst_147 [1] : vector<1x32xf32> to vector<1xf32>
    %358 = vector.shape_cast %357 : vector<1xf32> to vector<1x1xf32>
    %cst_148 = arith.constant 3.200000e+01 : f32
    %359 = vector.broadcast %cst_148 : f32 to vector<1x1xf32>
    %360 = arith.divf %358, %359 : vector<1x1xf32>
    %cst_149 = arith.constant 9.99999974E-6 : f32
    %361 = vector.broadcast %cst_149 : f32 to vector<1x1xf32>
    %362 = arith.addf %360, %361 : vector<1x1xf32>
    %363 = math.rsqrt %362 : vector<1x1xf32>
    %364 = vector.broadcast %363 : vector<1x1xf32> to vector<1x32xf32>
    %365 = arith.mulf %355, %364 : vector<1x32xf32>
    %366 = arith.mulf %365, %348 : vector<1x32xf32>
    %367 = arith.addf %366, %349 : vector<1x32xf32>
    %368 = arith.truncf %367 : vector<1x32xf32> to vector<1x32xbf16>
    %c0_150 = arith.constant 0 : index
    %c128_151 = arith.constant 128 : index
    %369 = vector.load %arg7[%c0_150, %c128_151] : memref<32x160xbf16, #tpu.memory_space<vmem>>, vector<32x32xbf16>
    %cst_152 = arith.constant dense<0.000000e+00> : vector<1x32xf32>
    %370 = tpu.matmul %368, %369, %cst_152 {dimension_numbers = #tpu.dot_dimension_numbers<[1], [0], [0], [1], [0, 0, 1, 1], [], []>} : vector<1x32xbf16>, vector<32x32xbf16>, vector<1x32xf32> -> vector<1x32xf32>
    %c0_153 = arith.constant 0 : index
    %c0_154 = arith.constant 0 : index
    %c0_155 = arith.constant 0 : index
    %371 = vector.load %arg3[%c0_153, %c0_154, %c0_155] : memref<1x1x1xf32, #tpu.memory_space<vmem>>, vector<1x1x1xf32>
    %372 = vector.shape_cast %371 : vector<1x1x1xf32> to vector<1x1xf32>
    %373 = vector.broadcast %372 : vector<1x1xf32> to vector<1x32xf32>
    %374 = arith.mulf %370, %373 : vector<1x32xf32>
    %c9 = arith.constant 9 : index
    %c0_156 = arith.constant 0 : index
    %375 = vector.load %arg9[%c9, %c0_156] : memref<12x128xf32, #tpu.memory_space<vmem>>, vector<1x128xf32>
    %376 = arith.truncf %374 : vector<1x32xf32> to vector<1x32xbf16>
    %c0_157 = arith.constant 0 : index
    %c0_158 = arith.constant 0 : index
    %377 = vector.load %arg7[%c0_157, %c0_158] : memref<32x160xbf16, #tpu.memory_space<vmem>>, vector<32x128xbf16>
    %cst_159 = arith.constant dense<0.000000e+00> : vector<1x128xf32>
    %378 = tpu.matmul %376, %377, %cst_159 {dimension_numbers = #tpu.dot_dimension_numbers<[1], [0], [0], [1], [0, 0, 1, 1], [], []>} : vector<1x32xbf16>, vector<32x128xbf16>, vector<1x128xf32> -> vector<1x128xf32>
    %379 = arith.addf %378, %375 : vector<1x128xf32>
    %380 = vector.extract_strided_slice %379 {offsets = [0, 0], sizes = [1, 32], strides = [1, 1]} : vector<1x128xf32> to vector<1x32xf32>
    %381 = vector.extract_strided_slice %379 {offsets = [0, 32], sizes = [1, 32], strides = [1, 1]} : vector<1x128xf32> to vector<1x32xf32>
    %382 = vector.extract_strided_slice %379 {offsets = [0, 64], sizes = [1, 32], strides = [1, 1]} : vector<1x128xf32> to vector<1x32xf32>
    %383 = vector.extract_strided_slice %379 {offsets = [0, 96], sizes = [1, 32], strides = [1, 1]} : vector<1x128xf32> to vector<1x32xf32>
    %384 = tpu.concatenate %380, %381, %382, %383 in 0 : vector<1x32xf32>, vector<1x32xf32>, vector<1x32xf32>, vector<1x32xf32> -> vector<4x32xf32>
    %c10 = arith.constant 10 : index
    %c0_160 = arith.constant 0 : index
    %385 = vector.load %arg9[%c10, %c0_160] : memref<12x128xf32, #tpu.memory_space<vmem>>, vector<1x32xf32>
    %c11 = arith.constant 11 : index
    %c0_161 = arith.constant 0 : index
    %386 = vector.load %arg9[%c11, %c0_161] : memref<12x128xf32, #tpu.memory_space<vmem>>, vector<1x32xf32>
    %cst_162 = arith.constant dense<0.000000e+00> : vector<4xf32>
    %387 = vector.multi_reduction <add>, %384, %cst_162 [1] : vector<4x32xf32> to vector<4xf32>
    %388 = vector.shape_cast %387 : vector<4xf32> to vector<4x1xf32>
    %cst_163 = arith.constant 3.200000e+01 : f32
    %389 = vector.broadcast %cst_163 : f32 to vector<4x1xf32>
    %390 = arith.divf %388, %389 : vector<4x1xf32>
    %391 = vector.broadcast %390 : vector<4x1xf32> to vector<4x32xf32>
    %392 = arith.subf %384, %391 : vector<4x32xf32>
    %393 = arith.mulf %392, %392 : vector<4x32xf32>
    %cst_164 = arith.constant dense<0.000000e+00> : vector<4xf32>
    %394 = vector.multi_reduction <add>, %393, %cst_164 [1] : vector<4x32xf32> to vector<4xf32>
    %395 = vector.shape_cast %394 : vector<4xf32> to vector<4x1xf32>
    %cst_165 = arith.constant 3.200000e+01 : f32
    %396 = vector.broadcast %cst_165 : f32 to vector<4x1xf32>
    %397 = arith.divf %395, %396 : vector<4x1xf32>
    %cst_166 = arith.constant 9.99999974E-6 : f32
    %398 = vector.broadcast %cst_166 : f32 to vector<4x1xf32>
    %399 = arith.addf %397, %398 : vector<4x1xf32>
    %400 = math.rsqrt %399 : vector<4x1xf32>
    %401 = vector.broadcast %400 : vector<4x1xf32> to vector<4x32xf32>
    %402 = arith.mulf %392, %401 : vector<4x32xf32>
    %403 = vector.broadcast %385 : vector<1x32xf32> to vector<4x32xf32>
    %404 = arith.mulf %402, %403 : vector<4x32xf32>
    %405 = vector.broadcast %386 : vector<1x32xf32> to vector<4x32xf32>
    %406 = arith.addf %404, %405 : vector<4x32xf32>
    %c0_167 = arith.constant 0 : index
    %c0_168 = arith.constant 0 : index
    %c0_169 = arith.constant 0 : index
    %407 = vector.load %arg2[%c0_167, %c0_168, %c0_169] : memref<1x8x32xf32, #tpu.memory_space<vmem>>, vector<1x8x32xf32>
    %408 = vector.shape_cast %407 : vector<1x8x32xf32> to vector<8x32xf32>
    %c0_170 = arith.constant 0 : index
    %c0_171 = arith.constant 0 : index
    %c0_172 = arith.constant 0 : index
    %409 = vector.load %arg10[%c0_170, %c0_171, %c0_172] : memref<1x12x32xf32, #tpu.memory_space<vmem>>, vector<1x8x32xf32>
    %410 = vector.shape_cast %409 : vector<1x8x32xf32> to vector<8x32xf32>
    %411 = vector.shape_cast %408 : vector<8x32xf32> to vector<1x8x32xf32>
    tpu.vector_store %arg10[%c0_170, %c0_171, %c0_172], %411 {strides = array<i32>} : memref<1x12x32xf32, #tpu.memory_space<vmem>>, vector<1x8x32xf32>,
    %c0_173 = arith.constant 0 : index
    %c8_174 = arith.constant 8 : index
    %c0_175 = arith.constant 0 : index
    %412 = vector.load %arg10[%c0_173, %c8_174, %c0_175] : memref<1x12x32xf32, #tpu.memory_space<vmem>>, vector<1x4x32xf32>
    %413 = vector.shape_cast %412 : vector<1x4x32xf32> to vector<4x32xf32>
    %414 = vector.shape_cast %406 : vector<4x32xf32> to vector<1x4x32xf32>
    tpu.vector_store %arg10[%c0_173, %c8_174, %c0_175], %414 {strides = array<i32>} : memref<1x12x32xf32, #tpu.memory_space<vmem>>, vector<1x4x32xf32>,
    return
  }
  func.func @transform_0(%arg0: i32) -> (i32, i32, i32) {
    %c0_i32 = arith.constant 0 : i32
    %c0_i32_0 = arith.constant 0 : i32
    %c0_i32_1 = arith.constant 0 : i32
    return %arg0, %c0_i32, %c0_i32_0 : i32, i32, i32
  }
  func.func @transform_1(%arg0: i32) -> (i32, i32, i32) {
    %c0_i32 = arith.constant 0 : i32
    %c0_i32_0 = arith.constant 0 : i32
    %c0_i32_1 = arith.constant 0 : i32
    return %arg0, %c0_i32, %c0_i32_0 : i32, i32, i32
  }
  func.func @transform_2(%arg0: i32) -> (i32, i32, i32) {
    %c0_i32 = arith.constant 0 : i32
    %c0_i32_0 = arith.constant 0 : i32
    %c0_i32_1 = arith.constant 0 : i32
    return %arg0, %c0_i32, %c0_i32_0 : i32, i32, i32
  }
  func.func @transform_3(%arg0: i32) -> (i32, i32) {
    %c0_i32 = arith.constant 0 : i32
    %c0_i32_0 = arith.constant 0 : i32
    %c0_i32_1 = arith.constant 0 : i32
    return %c0_i32, %c0_i32_0 : i32, i32
  }
  func.func @transform_4(%arg0: i32) -> (i32, i32, i32) {
    %c0_i32 = arith.constant 0 : i32
    %c0_i32_0 = arith.constant 0 : i32
    %c0_i32_1 = arith.constant 0 : i32
    %c0_i32_2 = arith.constant 0 : i32
    return %c0_i32, %c0_i32_0, %c0_i32_1 : i32, i32, i32
  }
  func.func @transform_5(%arg0: i32) -> (i32, i32, i32) {
    %c0_i32 = arith.constant 0 : i32
    %c0_i32_0 = arith.constant 0 : i32
    %c0_i32_1 = arith.constant 0 : i32
    %c0_i32_2 = arith.constant 0 : i32
    return %c0_i32, %c0_i32_0, %c0_i32_1 : i32, i32, i32
  }
  func.func @transform_6(%arg0: i32) -> (i32, i32) {
    %c0_i32 = arith.constant 0 : i32
    %c0_i32_0 = arith.constant 0 : i32
    %c0_i32_1 = arith.constant 0 : i32
    return %c0_i32, %c0_i32_0 : i32, i32
  }
  func.func @transform_7(%arg0: i32) -> (i32, i32, i32) {
    %c0_i32 = arith.constant 0 : i32
    %c0_i32_0 = arith.constant 0 : i32
    %c0_i32_1 = arith.constant 0 : i32
    %c0_i32_2 = arith.constant 0 : i32
    return %c0_i32, %c0_i32_0, %c0_i32_1 : i32, i32, i32
  }
  func.func @transform_8(%arg0: i32) -> (i32, i32) {
    %c0_i32 = arith.constant 0 : i32
    %c0_i32_0 = arith.constant 0 : i32
    %c0_i32_1 = arith.constant 0 : i32
    return %c0_i32, %c0_i32_0 : i32, i32
  }
  func.func @transform_9(%arg0: i32) -> (i32, i32, i32) {
    %c0_i32 = arith.constant 0 : i32
    %c0_i32_0 = arith.constant 0 : i32
    %c0_i32_1 = arith.constant 0 : i32
    return %arg0, %c0_i32, %c0_i32_0 : i32, i32, i32
  }
}

</mosaic_0001>

<llo_original>
// kernel: ip_adapter_encoder_forward.1
$region0: #{ip_adapter_encoder_forward.1}
  #allocation0 [shape = 'u32[]', space=smem, size = 0x4, offset = 0x4, fixed_abs, tag = 'smem constant byte address 0x4 - core index']
  #allocation1 [shape = 'u32[144,128]{1,0:T(1,128)}', space=vmem, size = 0x12000, scoped, tag = 'internal scratch']
  %s0 = inlined_call_operand.vmem [shape: f32[2,5,192], index: 0, kind: input, shape index: {}]
  %s1 = inlined_call_operand.vmem [shape: f32[2,8,32], index: 1, kind: input, shape index: {}]
  %s2 = inlined_call_operand.vmem [shape: f32[2,1,1], index: 2, kind: input, shape index: {}]
  %s3 = inlined_call_operand.vmem [shape: bf16[192,32], index: 3, kind: input, shape index: {}]
  %s4 = inlined_call_operand.vmem [shape: bf16[2,32,192], index: 4, kind: input, shape index: {}]
  %s5 = inlined_call_operand.vmem [shape: bf16[2,64,32], index: 5, kind: input, shape index: {}]
  %s6 = inlined_call_operand.vmem [shape: bf16[32,160], index: 6, kind: input, shape index: {}]
  %s7 = inlined_call_operand.vmem [shape: f32[2,8,128], index: 7, kind: input, shape index: {}]
  %s8 = inlined_call_operand.vmem [shape: f32[12,128], index: 8, kind: input, shape index: {}]
  %s9 = inlined_call_operand.vmem [shape: f32[2,12,32], index: 9, kind: output, shape index: {}]
  %s10 = sld [smem:[#allocation0]]
  $region69: #{ip_adapter_encoder_forward.1} parent=0
    _
  %s12 = ssub.s32 1, %s10
  %s13 = scalar_select 0, %s12, %s10
  loop: start=0, step=1, limit=4
  $region2: #{ip_adapter_encoder_forward.1} parent=0 // loop_pre_header
    _
  $region3: #{ip_adapter_encoder_forward.1} parent=0 // loop_header
    %s15 = sphi 0, %s19
    %p16 = scmp.ge.s32.totalorder %s15, 4
    %s25 = sphi 0, %s27
    %s28 = sphi 0, %s25
    %s29 = sphi 0, %s28
    %s45 = sphi 0, %s29
    %s51 = sphi 0, %s53
    %s54 = sphi 0, %s51
    %s55 = sphi 0, %s54
    %s71 = sphi 0, %s55
    %s77 = sphi 0, %s79
    %s80 = sphi 0, %s77
    %s81 = sphi 0, %s80
    %s97 = sphi 0, %s81
    %s101 = sphi 0, %s101
    %s103 = sphi 0, %s101
    %s104 = sphi 0, %s103
    %s118 = sphi 0, %s104
    %s122 = sphi 0, %s122
    %s124 = sphi 0, %s122
    %s125 = sphi 0, %s124
    %s139 = sphi 0, %s125
    %s143 = sphi 0, %s143
    %s145 = sphi 0, %s143
    %s146 = sphi 0, %s145
    %s160 = sphi 0, %s146
    %s164 = sphi 0, %s164
    %s166 = sphi 0, %s164
    %s167 = sphi 0, %s166
    %s181 = sphi 0, %s167
    %s185 = sphi 0, %s185
    %s187 = sphi 0, %s185
    %s188 = sphi 0, %s187
    %s202 = sphi 0, %s188
    %s206 = sphi 0, %s206
    %s208 = sphi 0, %s206
    %s209 = sphi 0, %s208
    %s223 = sphi 0, %s209
    %s229 = sphi 0, %s231
    %s232 = sphi 0, %s229
    %s233 = sphi 0, %s232
    %s249 = sphi 0, %s233
  $region4: #{ip_adapter_encoder_forward.1} parent=0 // loop_header_branch
    %18 = sbr.rel (%p16) target = $region8
  $region5: #{ip_adapter_encoder_forward.1} parent=0 // loop_body
    %s20 = ssub.s32 %s15, 1
    %s21 = ssub.s32 %s15, 2
    %s22 = sadd.s32 %s15, 1
    %s23 = ssub.s32 %s15, %s22
    %p24 = scmp.eq.s32.totalorder %s23, 0
    %s26 = sadd.s32 %s25, 1
    %s27 = scalar_select %p24, %s25, %s26
    %p30 = pneg %p24
    %p31 = scmp.eq.s32.totalorder %s15, 1
    %p32 = por %p30, %p31
    %p33 = scmp.ne.s32.totalorder %s25, %s28
    %p34 = scmp.eq.s32.totalorder %s15, 0
    %p35 = por %p33, %p34
    %p36 = scmp.ne.s32.totalorder %s25, %s28
    %p37 = scmp.eq.s32.totalorder %s20, 1
    %p38 = por %p36, %p37
    %p39 = scmp.ne.s32.totalorder %s28, %s29
    %p40 = scmp.eq.s32.totalorder %s20, 0
    %p41 = por %p39, %p40
    %p42 = scmp.ne.s32.totalorder %s28, %s29
    %p43 = scmp.eq.s32.totalorder %s21, 1
    %p44 = por %p42, %p43
    %p46 = scmp.ne.s32.totalorder %s29, %s45
    %p47 = scmp.eq.s32.totalorder %s21, 0
    %p48 = por %p46, %p47
    %s49 = ssub.s32 %s15, %s22
    %p50 = scmp.eq.s32.totalorder %s49, 0
    %s52 = sadd.s32 %s51, 1
    %s53 = scalar_select %p50, %s51, %s52
    %p56 = pneg %p50
    %p57 = scmp.eq.s32.totalorder %s15, 1
    %p58 = por %p56, %p57
    %p59 = scmp.ne.s32.totalorder %s51, %s54
    %p60 = scmp.eq.s32.totalorder %s15, 0
    %p61 = por %p59, %p60
    %p62 = scmp.ne.s32.totalorder %s51, %s54
    %p63 = scmp.eq.s32.totalorder %s20, 1
    %p64 = por %p62, %p63
    %p65 = scmp.ne.s32.totalorder %s54, %s55
    %p66 = scmp.eq.s32.totalorder %s20, 0
    %p67 = por %p65, %p66
    %p68 = scmp.ne.s32.totalorder %s54, %s55
    %p69 = scmp.eq.s32.totalorder %s21, 1
    %p70 = por %p68, %p69
    %p72 = scmp.ne.s32.totalorder %s55, %s71
    %p73 = scmp.eq.s32.totalorder %s21, 0
    %p74 = por %p72, %p73
    %s75 = ssub.s32 %s15, %s22
    %p76 = scmp.eq.s32.totalorder %s75, 0
    %s78 = sadd.s32 %s77, 1
    %s79 = scalar_select %p76, %s77, %s78
    %p82 = pneg %p76
    %p83 = scmp.eq.s32.totalorder %s15, 1
    %p84 = por %p82, %p83
    %p85 = scmp.ne.s32.totalorder %s77, %s80
    %p86 = scmp.eq.s32.totalorder %s15, 0
    %p87 = por %p85, %p86
    %p88 = scmp.ne.s32.totalorder %s77, %s80
    %p89 = scmp.eq.s32.totalorder %s20, 1
    %p90 = por %p88, %p89
    %p91 = scmp.ne.s32.totalorder %s80, %s81
    %p92 = scmp.eq.s32.totalorder %s20, 0
    %p93 = por %p91, %p92
    %p94 = scmp.ne.s32.totalorder %s80, %s81
    %p95 = scmp.eq.s32.totalorder %s21, 1
    %p96 = por %p94, %p95
    %p98 = scmp.ne.s32.totalorder %s81, %s97
    %p99 = scmp.eq.s32.totalorder %s21, 0
    %p100 = por %p98, %p99
    %s102 = sadd.s32 %s101, 1
    %p105 = scmp.eq.s32.totalorder %s15, 1
    %p106 = scmp.ne.s32.totalorder %s101, %s103
    %p107 = scmp.eq.s32.totalorder %s15, 0
    %p108 = por %p106, %p107
    %p109 = scmp.ne.s32.totalorder %s101, %s103
    %p110 = scmp.eq.s32.totalorder %s20, 1
    %p111 = por %p109, %p110
    %p112 = scmp.ne.s32.totalorder %s103, %s104
    %p113 = scmp.eq.s32.totalorder %s20, 0
    %p114 = por %p112, %p113
    %p115 = scmp.ne.s32.totalorder %s103, %s104
    %p116 = scmp.eq.s32.totalorder %s21, 1
    %p117 = por %p115, %p116
    %p119 = scmp.ne.s32.totalorder %s104, %s118
    %p120 = scmp.eq.s32.totalorder %s21, 0
    %p121 = por %p119, %p120
    %s123 = sadd.s32 %s122, 1
    %p126 = scmp.eq.s32.totalorder %s15, 1
    %p127 = scmp.ne.s32.totalorder %s122, %s124
    %p128 = scmp.eq.s32.totalorder %s15, 0
    %p129 = por %p127, %p128
    %p130 = scmp.ne.s32.totalorder %s122, %s124
    %p131 = scmp.eq.s32.totalorder %s20, 1
    %p132 = por %p130, %p131
    %p133 = scmp.ne.s32.totalorder %s124, %s125
    %p134 = scmp.eq.s32.totalorder %s20, 0
    %p135 = por %p133, %p134
    %p136 = scmp.ne.s32.totalorder %s124, %s125
    %p137 = scmp.eq.s32.totalorder %s21, 1
    %p138 = por %p136, %p137
    %p140 = scmp.ne.s32.totalorder %s125, %s139
    %p141 = scmp.eq.s32.totalorder %s21, 0
    %p142 = por %p140, %p141
    %s144 = sadd.s32 %s143, 1
    %p147 = scmp.eq.s32.totalorder %s15, 1
    %p148 = scmp.ne.s32.totalorder %s143, %s145
    %p149 = scmp.eq.s32.totalorder %s15, 0
    %p150 = por %p148, %p149
    %p151 = scmp.ne.s32.totalorder %s143, %s145
    %p152 = scmp.eq.s32.totalorder %s20, 1
    %p153 = por %p151, %p152
    %p154 = scmp.ne.s32.totalorder %s145, %s146
    %p155 = scmp.eq.s32.totalorder %s20, 0
    %p156 = por %p154, %p155
    %p157 = scmp.ne.s32.totalorder %s145, %s146
    %p158 = scmp.eq.s32.totalorder %s21, 1
    %p159 = por %p157, %p158
    %p161 = scmp.ne.s32.totalorder %s146, %s160
    %p162 = scmp.eq.s32.totalorder %s21, 0
    %p163 = por %p161, %p162
    %s165 = sadd.s32 %s164, 1
    %p168 = scmp.eq.s32.totalorder %s15, 1
    %p169 = scmp.ne.s32.totalorder %s164, %s166
    %p170 = scmp.eq.s32.totalorder %s15, 0
    %p171 = por %p169, %p170
    %p172 = scmp.ne.s32.totalorder %s164, %s166
    %p173 = scmp.eq.s32.totalorder %s20, 1
    %p174 = por %p172, %p173
    %p175 = scmp.ne.s32.totalorder %s166, %s167
    %p176 = scmp.eq.s32.totalorder %s20, 0
    %p177 = por %p175, %p176
    %p178 = scmp.ne.s32.totalorder %s166, %s167
    %p179 = scmp.eq.s32.totalorder %s21, 1
    %p180 = por %p178, %p179
    %p182 = scmp.ne.s32.totalorder %s167, %s181
    %p183 = scmp.eq.s32.totalorder %s21, 0
    %p184 = por %p182, %p183
    %s186 = sadd.s32 %s185, 1
    %p189 = scmp.eq.s32.totalorder %s15, 1
    %p190 = scmp.ne.s32.totalorder %s185, %s187
    %p191 = scmp.eq.s32.totalorder %s15, 0
    %p192 = por %p190, %p191
    %p193 = scmp.ne.s32.totalorder %s185, %s187
    %p194 = scmp.eq.s32.totalorder %s20, 1
    %p195 = por %p193, %p194
    %p196 = scmp.ne.s32.totalorder %s187, %s188
    %p197 = scmp.eq.s32.totalorder %s20, 0
    %p198 = por %p196, %p197
    %p199 = scmp.ne.s32.totalorder %s187, %s188
    %p200 = scmp.eq.s32.totalorder %s21, 1
    %p201 = por %p199, %p200
    %p203 = scmp.ne.s32.totalorder %s188, %s202
    %p204 = scmp.eq.s32.totalorder %s21, 0
    %p205 = por %p203, %p204
    %s207 = sadd.s32 %s206, 1
    %p210 = scmp.eq.s32.totalorder %s15, 1
    %p211 = scmp.ne.s32.totalorder %s206, %s208
    %p212 = scmp.eq.s32.totalorder %s15, 0
    %p213 = por %p211, %p212
    %p214 = scmp.ne.s32.totalorder %s206, %s208
    %p215 = scmp.eq.s32.totalorder %s20, 1
    %p216 = por %p214, %p215
    %p217 = scmp.ne.s32.totalorder %s208, %s209
    %p218 = scmp.eq.s32.totalorder %s20, 0
    %p219 = por %p217, %p218
    %p220 = scmp.ne.s32.totalorder %s208, %s209
    %p221 = scmp.eq.s32.totalorder %s21, 1
    %p222 = por %p220, %p221
    %p224 = scmp.ne.s32.totalorder %s209, %s223
    %p225 = scmp.eq.s32.totalorder %s21, 0
    %p226 = por %p224, %p225
    %s227 = ssub.s32 %s15, %s22
    %p228 = scmp.eq.s32.totalorder %s227, 0
    %s230 = sadd.s32 %s229, 1
    %s231 = scalar_select %p228, %s229, %s230
    %p234 = pneg %p228
    %p235 = scmp.eq.s32.totalorder %s15, 1
    %p236 = por %p234, %p235
    %p237 = scmp.ne.s32.totalorder %s229, %s232
    %p238 = scmp.eq.s32.totalorder %s15, 0
    %p239 = por %p237, %p238
    %p240 = scmp.ne.s32.totalorder %s229, %s232
    %p241 = scmp.eq.s32.totalorder %s20, 1
    %p242 = por %p240, %p241
    %p243 = scmp.ne.s32.totalorder %s232, %s233
    %p244 = scmp.eq.s32.totalorder %s20, 0
    %p245 = por %p243, %p244
    %p246 = scmp.ne.s32.totalorder %s232, %s233
    %p247 = scmp.eq.s32.totalorder %s21, 1
    %p248 = por %p246, %p247
    %p250 = scmp.ne.s32.totalorder %s233, %s249
    %p251 = scmp.eq.s32.totalorder %s21, 0
    %p252 = por %p250, %p251
    %p253 = scmp.le.s32.totalorder 1, %s15
    %p254 = scmp.lt.s32.totalorder %s15, 3
    %p255 = pnand %p253, %p254
    %p256 = pneg %p255
    // Predicated region
    $region9: #{ip_adapter_encoder_forward.1} parent=5 // pred_check
      _
    $region10: #{ip_adapter_encoder_forward.1} parent=5 // pred_check_branch
      %258 = sbr.rel (%p255) target = $region12
    $region11: #{ip_adapter_encoder_forward.1} parent=5 // pred_region
      %s259 = ssub.s32 %s15, 1
      // Predicated region
      $region13: #{ip_adapter_encoder_forward.1} parent=11 // pred_check
        %p260 = pneg %p114
      $region14: #{ip_adapter_encoder_forward.1} parent=11 // pred_check_branch
        %262 = sbr.rel (%p260) target = $region16
      $region15: #{ip_adapter_encoder_forward.1} parent=11 // pred_region
        _
      $region16: #{ip_adapter_encoder_forward.1} parent=11 // pred_fallthru
        _
      // Predicated region
      $region17: #{ip_adapter_encoder_forward.1} parent=11 // pred_check
        %p263 = pneg %p135
      $region18: #{ip_adapter_encoder_forward.1} parent=11 // pred_check_branch
        %265 = sbr.rel (%p263) target = $region20
      $region19: #{ip_adapter_encoder_forward.1} parent=11 // pred_region
        _
      $region20: #{ip_adapter_encoder_forward.1} parent=11 // pred_fallthru
        _
      // Predicated region
      $region21: #{ip_adapter_encoder_forward.1} parent=11 // pred_check
        %p266 = pneg %p156
      $region22: #{ip_adapter_encoder_forward.1} parent=11 // pred_check_branch
        %268 = sbr.rel (%p266) target = $region24
      $region23: #{ip_adapter_encoder_forward.1} parent=11 // pred_region
        _
      $region24: #{ip_adapter_encoder_forward.1} parent=11 // pred_fallthru
        _
      // Predicated region
      $region25: #{ip_adapter_encoder_forward.1} parent=11 // pred_check
        %p269 = pneg %p177
      $region26: #{ip_adapter_encoder_forward.1} parent=11 // pred_check_branch
        %271 = sbr.rel (%p269) target = $region28
      $region27: #{ip_adapter_encoder_forward.1} parent=11 // pred_region
        _
      $region28: #{ip_adapter_encoder_forward.1} parent=11 // pred_fallthru
        _
      // Predicated region
      $region29: #{ip_adapter_encoder_forward.1} parent=11 // pred_check
        %p272 = pneg %p198
      $region30: #{ip_adapter_encoder_forward.1} parent=11 // pred_check_branch
        %274 = sbr.rel (%p272) target = $region32
      $region31: #{ip_adapter_encoder_forward.1} parent=11 // pred_region
        _
      $region32: #{ip_adapter_encoder_forward.1} parent=11 // pred_fallthru
        _
      // Predicated region
      $region33: #{ip_adapter_encoder_forward.1} parent=11 // pred_check
        %p275 = pneg %p219
      $region34: #{ip_adapter_encoder_forward.1} parent=11 // pred_check_branch
        %277 = sbr.rel (%p275) target = $region36
      $region35: #{ip_adapter_encoder_forward.1} parent=11 // pred_region
        _
      $region36: #{ip_adapter_encoder_forward.1} parent=11 // pred_fallthru
        _
    $region12: #{ip_adapter_encoder_forward.1} parent=5 // pred_fallthru
      _
    %p278 = scmp.lt.s32.totalorder %s15, 2
    // Predicated region
    $region37: #{ip_adapter_encoder_forward.1} parent=5 // pred_check
      %p279 = pneg %p278
    $region38: #{ip_adapter_encoder_forward.1} parent=5 // pred_check_branch
      %281 = sbr.rel (%p279) target = $region40
    $region39: #{ip_adapter_encoder_forward.1} parent=5 // pred_region
      // Predicated region
      $region41: #{ip_adapter_encoder_forward.1} parent=39 // pred_check
        %p282 = pneg %p35
      $region42: #{ip_adapter_encoder_forward.1} parent=39 // pred_check_branch
        %284 = sbr.rel (%p282) target = $region44
      $region43: #{ip_adapter_encoder_forward.1} parent=39 // pred_region
        %p285 = scmp.lt.s32.totalorder %s15, 1
        %s286 = scalar_select %p285, %s15, 1
        %s287 = smul.addr %s286, 2
        %s288 = smul.addr %s287, 8
        %s289 = scalar_lea.vmem %s0, %s288
      $region44: #{ip_adapter_encoder_forward.1} parent=39 // pred_fallthru
        _
      // Predicated region
      $region45: #{ip_adapter_encoder_forward.1} parent=39 // pred_check
        %p290 = pneg %p61
      $region46: #{ip_adapter_encoder_forward.1} parent=39 // pred_check_branch
        %292 = sbr.rel (%p290) target = $region48
      $region47: #{ip_adapter_encoder_forward.1} parent=39 // pred_region
        %p293 = scmp.lt.s32.totalorder %s15, 1
        %s294 = scalar_select %p293, %s15, 1
        %s295 = smul.addr %s294, 8
        %s296 = scalar_lea.vmem %s1, %s295
      $region48: #{ip_adapter_encoder_forward.1} parent=39 // pred_fallthru
        _
      // Predicated region
      $region49: #{ip_adapter_encoder_forward.1} parent=39 // pred_check
        %p297 = pneg %p87
      $region50: #{ip_adapter_encoder_forward.1} parent=39 // pred_check_branch
        %299 = sbr.rel (%p297) target = $region52
      $region51: #{ip_adapter_encoder_forward.1} parent=39 // pred_region
        %p300 = scmp.lt.s32.totalorder %s15, 1
        %s301 = scalar_select %p300, %s15, 1
        %s302 = scalar_lea.vmem %s2, %s301
      $region52: #{ip_adapter_encoder_forward.1} parent=39 // pred_fallthru
        _
    $region40: #{ip_adapter_encoder_forward.1} parent=5 // pred_fallthru
      _
    %p303 = scmp.le.s32.totalorder 1, %s15
    %p304 = scmp.lt.s32.totalorder %s15, 3
    %p305 = pnand %p303, %p304
    %p306 = pneg %p305
    // Predicated region
    $region53: #{ip_adapter_encoder_forward.1} parent=5 // pred_check
      _
    $region54: #{ip_adapter_encoder_forward.1} parent=5 // pred_check_branch
      %308 = sbr.rel (%p305) target = $region56
    $region55: #{ip_adapter_encoder_forward.1} parent=5 // pred_region
      %s309 = ssub.s32 %s15, 1
      %p310 = scmp.lt.s32.totalorder %s20, 1
      %s311 = scalar_select %p310, %s20, 1
      %s312 = smul.addr %s311, 2
      %s313 = smul.addr %s312, 8
      %s314 = scalar_lea.vmem %s0, %s313
      %p315 = pneg %p41
      %p316 = pneg %p38
      %p317 = scmp.lt.s32.totalorder %s20, 1
      %s318 = scalar_select %p317, %s20, 1
      %s319 = smul.addr %s318, 8
      %s320 = scalar_lea.vmem %s1, %s319
      %p321 = pneg %p67
      %p322 = pneg %p64
      %p323 = scmp.lt.s32.totalorder %s20, 1
      %s324 = scalar_select %p323, %s20, 1
      %s325 = scalar_lea.vmem %s2, %s324
      %p326 = pneg %p93
      %p327 = pneg %p90
      %p328 = pneg %p114
      %p329 = pneg %p111
      %p330 = pneg %p135
      %p331 = pneg %p132
      %p332 = pneg %p156
      %p333 = pneg %p153
      %p334 = pneg %p177
      %p335 = pneg %p174
      %p336 = pneg %p198
      %p337 = pneg %p195
      %p338 = pneg %p219
      %p339 = pneg %p216
      %p340 = pneg %p245
      %p341 = pneg %p242
      %p342 = scmp.lt.s32.totalorder %s20, 1
      %s343 = scalar_select %p342, %s20, 1
      %s344 = smul.addr %s343, 2
      %s345 = smul.addr %s344, 8
      %s346 = scalar_lea.vmem %s9, %s345
      %p347 = scmp.lt.s32.totalorder %s20, 1
      %s348 = scalar_select %p347, %s20, 1
      %s349 = smul.addr %s348, 2
      %s350 = smul.addr %s349, 8
      %s351 = scalar_lea.vmem %s0, %s350
      %p352 = scmp.lt.s32.totalorder %s20, 1
      %s353 = scalar_select %p352, %s20, 1
      %s354 = smul.addr %s353, 8
      %s355 = scalar_lea.vmem %s1, %s354
      %p356 = scmp.lt.s32.totalorder %s20, 1
      %s357 = scalar_select %p356, %s20, 1
      %s358 = scalar_lea.vmem %s2, %s357
      %p359 = scmp.lt.s32.totalorder %s20, 1
      %s360 = scalar_select %p359, %s20, 1
      %s361 = smul.addr %s360, 2
      %s362 = smul.addr %s361, 8
      %s363 = scalar_lea.vmem %s9, %s362
      %v365 = vld [vmem:[%s8] sm:$0x1f]
      %v366 = vld [vmem:[%s351] sm:$0x1f]
      %v367 = vld [vmem:[%s351 + $0x8] sm:$0x1f]
      %v368 = vpack.c.bf16 %v366, %v366
      %v369 = vpack.c.bf16 %v367, %v367
      %v370 = vld [vmem:[%s3] sm:$0xf]
      %v371 = vld [vmem:[%s3 + $0x4] sm:$0xf]
      %v372 = vld [vmem:[%s3 + $0x8] sm:$0xf]
      %v373 = vld [vmem:[%s3 + $0xc] sm:$0xf]
      %v374 = vld [vmem:[%s3 + $0x10] sm:$0xf]
      %v375 = vld [vmem:[%s3 + $0x14] sm:$0xf]
      %v376 = vld [vmem:[%s3 + $0x18] sm:$0xf]
      %v377 = vld [vmem:[%s3 + $0x1c] sm:$0xf]
      %v378 = vld [vmem:[%s3 + $0x20] sm:$0xf]
      %v379 = vld [vmem:[%s3 + $0x24] sm:$0xf]
      %v380 = vld [vmem:[%s3 + $0x28] sm:$0xf]
      %v381 = vld [vmem:[%s3 + $0x2c] sm:$0xf]
      %v382 = vld [vmem:[%s3 + $0x30] sm:$0xf]
      %v383 = vld [vmem:[%s3 + $0x34] sm:$0xf]
      %v384 = vld [vmem:[%s3 + $0x38] sm:$0xf]
      %v385 = vld [vmem:[%s3 + $0x3c] sm:$0xf]
      %v386 = vld [vmem:[%s3 + $0x40] sm:$0xf]
      %v387 = vld [vmem:[%s3 + $0x44] sm:$0xf]
      %v388 = vld [vmem:[%s3 + $0x48] sm:$0xf]
      %v389 = vld [vmem:[%s3 + $0x4c] sm:$0xf]
      %v390 = vld [vmem:[%s3 + $0x50] sm:$0xf]
      %v391 = vld [vmem:[%s3 + $0x54] sm:$0xf]
      %v392 = vld [vmem:[%s3 + $0x58] sm:$0xf]
      %v393 = vld [vmem:[%s3 + $0x5c] sm:$0xf]
      %v418 = vunpack.c.l.b16 %v370
      %v419 = vunpack.c.l.b16 %v371
      %v420 = vunpack.c.l.b16 %v372
      %v421 = vunpack.c.l.b16 %v373
      %v422 = vunpack.c.l.b16 %v374
      %v423 = vunpack.c.l.b16 %v375
      %v424 = vunpack.c.l.b16 %v376
      %v425 = vunpack.c.l.b16 %v377
      %v426 = vunpack.c.l.b16 %v378
      %v427 = vunpack.c.l.b16 %v379
      %v428 = vunpack.c.l.b16 %v380
      %v429 = vunpack.c.l.b16 %v381
      %v430 = vunpack.c.l.b16 %v382
      %v431 = vunpack.c.l.b16 %v383
      %v432 = vunpack.c.l.b16 %v384
      %v433 = vunpack.c.l.b16 %v385
      %v434 = vunpack.c.l.b16 %v386
      %v435 = vunpack.c.l.b16 %v387
      %v436 = vunpack.c.l.b16 %v388
      %v437 = vunpack.c.l.b16 %v389
      %v438 = vunpack.c.l.b16 %v390
      %v439 = vunpack.c.l.b16 %v391
      %v440 = vunpack.c.l.b16 %v392
      %v441 = vunpack.c.l.b16 %v393
      %v442 = vpack.c.b16 %v419, %v418
      %v443 = vpack.c.b16 %v421, %v420
      %v444 = vpack.c.b16 %v423, %v422
      %v445 = vpack.c.b16 %v425, %v424
      %v446 = vpack.c.b16 %v427, %v426
      %v447 = vpack.c.b16 %v429, %v428
      %v448 = vpack.c.b16 %v431, %v430
      %v449 = vpack.c.b16 %v433, %v432
      %v450 = vpack.c.b16 %v435, %v434
      %v451 = vpack.c.b16 %v437, %v436
      %v452 = vpack.c.b16 %v439, %v438
      %v453 = vpack.c.b16 %v441, %v440
      %vm466 = vcmask 523264
      %v468 = vsel %vm466, %v369, 0
      %470 = vmatprep.subr.bf16.mxu0 0
      %471 = vmatpush1.bf16.msra.mxu0 %v449
      %472 = vmatprep.subr.bf16.mxu0 0
      %473 = vmatpush1.bf16.msra.mxu0 %v448
      %474 = vmatprep.subr.bf16.mxu0 0
      %475 = vmatpush1.bf16.msra.mxu0 %v447
      %476 = vmatprep.subr.bf16.mxu0 0
      %477 = vmatpush1.bf16.msra.mxu0 %v446
      %478 = vmatprep.subr.bf16.mxu0 0
      %479 = vmatpush1.bf16.msra.mxu0 %v445
      %480 = vmatprep.subr.bf16.mxu0 0
      %481 = vmatpush1.bf16.msra.mxu0 %v444
      %482 = vmatprep.subr.bf16.mxu0 0
      %483 = vmatpush1.bf16.msra.mxu0 %v443
      %484 = vmatprep.subr.bf16.mxu0 0
      %485 = vmatpush1.bf16.msra.mxu0 %v442
      %486 = vmatprep.subr.bf16.mxu0 0
      %487 = vmatpush2.bf16.msra.mxu0 0
      %488 = vmatprep.subr.bf16.mxu0 0
      %489 = vmatpush2.bf16.msra.mxu0 0
      %490 = vmatprep.subr.bf16.mxu0 0
      %491 = vmatpush2.bf16.msra.mxu0 0
      %492 = vmatprep.subr.bf16.mxu0 0
      %493 = vmatpush2.bf16.msra.mxu0 0
      %494 = vmatprep.subr.bf16.mxu0 0
      %495 = vmatpush2.bf16.msra.mxu0 %v453
      %496 = vmatprep.subr.bf16.mxu0 0
      %497 = vmatpush2.bf16.msra.mxu0 %v452
      %498 = vmatprep.subr.bf16.mxu0 0
      %499 = vmatpush2.bf16.msra.mxu0 %v451
      %500 = vmatprep.subr.bf16.mxu0 0
      %501 = vmatpush2.bf16.msra.mxu0 %v450
      %502 = vmatprep.mubr.bf16.mxu0 %v468
      %503 = vmatmul.mubr.bf16.gmra.mxu0 %v368
      %v504 = vpop.f32.mrf.mxu0
      %v505 = vadd.f32 %v365, %v504
      %v506 = vpop.f32.mrf.mxu0
      %v507 = vpop.f32.mrf.mxu0
      %v508 = vpop.f32.mrf.mxu0
      %509 = vdwg.mxu0
      %v510 = vld [vmem:[%s8 + $0x5] sm:$0x1]
      %v511 = vld [vmem:[%s8 + $0x6] sm:$0x1]
      %vm512 = vcmask 258048
      %v513 = vsel %vm512, %v505, 0.0
      %514 = vadd.xlane.f32.xlu0 %v513
      %v515 = vpop.xlane.xlu0 %514
      %v516 = vrcp.pop 32.0
      %v517 = vmul.f32 %v515, %v516
      %v518 = vsub.f32 %v505, %v517
      %v519 = vmul.f32 %v518, %v518
      %v520 = vsel %vm512, %v519, 0.0
      %521 = vadd.xlane.f32.xlu0 %v520
      %v522 = vpop.xlane.xlu0 %521
      %v523 = vmul.f32 %v522, %v516
      %v524 = vadd.f32 %v523, 1e-05
      %v525 = vrsqrt.pop %v524
      %v526 = vmul.f32 %v518, %v525
      %v527 = vlaneseq
      %v528 = vshrl.u32 %v527, 7
      %v529 = vsub.s32 0, %v528
      %v530 = vrot.slane %v510, %v529
      %v531 = vmul.f32 %v526, %v530
      %v532 = vlaneseq
      %v533 = vshrl.u32 %v532, 7
      %v534 = vsub.s32 0, %v533
      %v535 = vrot.slane %v511, %v534
      %v536 = vadd.f32 %v531, %v535
      %v537 = vld [vmem:[%s7] sm:$0x1]
      %v538 = vld [vmem:[%s7 + $0x1] sm:$0x1]
      %v539 = vld [vmem:[%s7 + $0x2] sm:$0x1]
      %v540 = vld [vmem:[%s7 + $0x3] sm:$0x1]
      %v541 = vld [vmem:[%s7 + $0x4] sm:$0x1]
      %v542 = vld [vmem:[%s7 + $0x5] sm:$0x1]
      %v543 = vld [vmem:[%s7 + $0x6] sm:$0x1]
      %v544 = vld [vmem:[%s7 + $0x7] sm:$0x1]
      %v545 = vsel %vm512, %v536, 0.0
      %546 = vadd.xlane.f32.xlu0 %v545
      %v547 = vpop.xlane.xlu0 %546
      %v548 = vmul.f32 %v547, %v516
      %v549 = vsub.f32 %v536, %v548
      %v550 = vmul.f32 %v549, %v549
      %v551 = vsel %vm512, %v550, 0.0
      %552 = vadd.xlane.f32.xlu0 %v551
      %v553 = vpop.xlane.xlu0 %552
      %v554 = vmul.f32 %v553, %v516
      %v555 = vadd.f32 %v554, 1e-05
      %v556 = vrsqrt.pop %v555
      %v557 = vmul.f32 %v549, %v556
      %v558 = vlaneseq
      %v559 = vshrl.u32 %v558, 7
      %v560 = vsub.s32 0, %v559
      %v561 = vrot.slane %v537, %v560
      %v562 = vmul.f32 %v557, %v561
      %v563 = vlaneseq
      %v564 = vshrl.u32 %v563, 7
      %v565 = vsub.s32 0, %v564
      %v566 = vrot.slane %v538, %v565
      %v567 = vadd.f32 %v562, %v566
      %v568 = vpack.c.bf16 %v567, %v567
      %v569 = vld [vmem:[%s4] sm:$0xf]
      %v570 = vld [vmem:[%s4 + $0x8] sm:$0xf]
      %v571 = vld [vmem:[%s4 + $0x10] sm:$0xf]
      %v572 = vld [vmem:[%s4 + $0x18] sm:$0xf]
      %v573 = vlaneseq
      %v574 = vshrl.u32 %v573, 7
      %v575 = vsub.s32 0, %v574
      %v576 = vrot.slane %v539, %v575
      %v581 = vunpack.c.l.b16 %v569
      %v582 = vunpack.c.l.b16 %v570
      %v583 = vunpack.c.l.b16 %v571
      %v584 = vunpack.c.l.b16 %v572
      %v585 = vpack.c.b16 %v582, %v581
      %v586 = vpack.c.b16 %v584, %v583
      %vm589 = vcmask 261120
      %v591 = vsel %vm589, %v568, 0
      %593 = vmatprep.subr.bf16.mxu0 0
      %594 = vmatpush1.bf16.msra.mxu0 0
      %595 = vmatprep.subr.bf16.mxu0 0
      %596 = vmatpush1.bf16.msra.mxu0 0
      %597 = vmatprep.subr.bf16.mxu0 0
      %598 = vmatpush1.bf16.msra.mxu0 0
      %599 = vmatprep.subr.bf16.mxu0 0
      %600 = vmatpush1.bf16.msra.mxu0 0
      %601 = vmatprep.subr.bf16.mxu0 0
      %602 = vmatpush1.bf16.msra.mxu0 0
      %603 = vmatprep.subr.bf16.mxu0 0
      %604 = vmatpush1.bf16.msra.mxu0 0
      %605 = vmatprep.subr.bf16.mxu0 0
      %606 = vmatpush1.bf16.msra.mxu0 %v586
      %607 = vmatprep.subr.bf16.mxu0 0
      %608 = vmatpush1.bf16.msra.mxu0 %v585
      %609 = vmatprep.subr.bf16.mxu0 0
      %610 = vmatpush2.bf16.msra.mxu0 0
      %611 = vmatprep.subr.bf16.mxu0 0
      %612 = vmatpush2.bf16.msra.mxu0 0
      %613 = vmatprep.subr.bf16.mxu0 0
      %614 = vmatpush2.bf16.msra.mxu0 0
      %615 = vmatprep.subr.bf16.mxu0 0
      %616 = vmatpush2.bf16.msra.mxu0 0
      %617 = vmatprep.subr.bf16.mxu0 0
      %618 = vmatpush2.bf16.msra.mxu0 0
      %619 = vmatprep.subr.bf16.mxu0 0
      %620 = vmatpush2.bf16.msra.mxu0 0
      %621 = vmatprep.subr.bf16.mxu0 0
      %622 = vmatpush2.bf16.msra.mxu0 0
      %623 = vmatprep.subr.bf16.mxu0 0
      %624 = vmatpush2.bf16.msra.mxu0 0
      %625 = vmatprep.mubr.bf16.mxu0 0
      %626 = vmatmul.mubr.bf16.gmra.mxu0 %v591
      %v627 = vpop.f32.mrf.mxu0
      %v628 = vadd.f32 %v576, %v627
      %v629 = vpop.f32.mrf.mxu0
      %v630 = vpop.f32.mrf.mxu0
      %v631 = vpop.f32.mrf.mxu0
      %632 = vdwg.mxu0
      %634 = vrot.lane.b32.xlu0 %v628, 96
      %v635 = vpop.permute.xlu0 %634
      %vm636 = vcmask 64512
      %v637 = vsel %vm636, %v628, 0
      %v639 = vsel %vm636, %v635, 0
      %641 = vmatprep.subr.mxu0 0.0
      %642 = vmatpush1.xpose.msra.mxu0 0.0
      %643 = vmatprep.subr.mxu0 0.0
      %644 = vmatpush1.xpose.msra.mxu0 0.0
      %645 = vmatprep.subr.mxu0 0.0
      %646 = vmatpush1.xpose.msra.mxu0 0.0
      %647 = vmatprep.subr.mxu0 0.0
      %648 = vmatpush1.xpose.msra.mxu0 0.0
      %649 = vmatprep.subr.mxu0 0.0
      %650 = vmatpush1.xpose.msra.mxu0 0.0
      %651 = vmatprep.subr.mxu0 0.0
      %652 = vmatpush1.xpose.msra.mxu0 0.0
      %653 = vmatprep.subr.mxu0 0.0
      %654 = vmatpush1.xpose.msra.mxu0 0.0
      %655 = vmatprep.subr.mxu0 0.0
      %656 = vmatpush1.xpose.msra.mxu0 0.0
      %657 = vmatprep.subr.mxu0 0.0
      %658 = vmatpush1.xpose.msra.mxu0 0.0
      %659 = vmatprep.subr.mxu0 0.0
      %660 = vmatpush1.xpose.msra.mxu0 0.0
      %661 = vmatprep.subr.mxu0 0.0
      %662 = vmatpush1.xpose.msra.mxu0 0.0
      %663 = vmatprep.subr.mxu0 0.0
      %664 = vmatpush1.xpose.msra.mxu0 0.0
      %665 = vmatprep.subr.mxu0 0.0
      %666 = vmatpush1.xpose.msra.mxu0 0.0
      %667 = vmatprep.subr.mxu0 0.0
      %668 = vmatpush1.xpose.msra.mxu0 0.0
      %669 = vmatprep.subr.mxu0 0.0
      %670 = vmatpush1.xpose.msra.mxu0 0.0
      %671 = vmatprep.subr.mxu0 0.0
      %672 = vmatpush1.xpose.msra.mxu0 %v639
      %673 = vmatprep.subr.mxu0 0.0
      %674 = vmatpush2.xpose.msra.mxu0 0.0
      %675 = vmatprep.subr.mxu0 0.0
      %676 = vmatpush2.xpose.msra.mxu0 0.0
      %677 = vmatprep.subr.mxu0 0.0
      %678 = vmatpush2.xpose.msra.mxu0 0.0
      %679 = vmatprep.subr.mxu0 0.0
      %680 = vmatpush2.xpose.msra.mxu0 0.0
      %681 = vmatprep.subr.mxu0 0.0
      %682 = vmatpush2.xpose.msra.mxu0 0.0
      %683 = vmatprep.subr.mxu0 0.0
      %684 = vmatpush2.xpose.msra.mxu0 0.0
      %685 = vmatprep.subr.mxu0 0.0
      %686 = vmatpush2.xpose.msra.mxu0 0.0
      %687 = vmatprep.subr.mxu0 0.0
      %688 = vmatpush2.xpose.msra.mxu0 0.0
      %689 = vmatprep.subr.mxu0 0.0
      %690 = vmatpush2.xpose.msra.mxu0 0.0
      %691 = vmatprep.subr.mxu0 0.0
      %692 = vmatpush2.xpose.msra.mxu0 0.0
      %693 = vmatprep.subr.mxu0 0.0
      %694 = vmatpush2.xpose.msra.mxu0 0.0
      %695 = vmatprep.subr.mxu0 0.0
      %696 = vmatpush2.xpose.msra.mxu0 0.0
      %697 = vmatprep.subr.mxu0 0.0
      %698 = vmatpush2.xpose.msra.mxu0 0.0
      %699 = vmatprep.subr.mxu0 0.0
      %700 = vmatpush2.xpose.msra.mxu0 0.0
      %701 = vmatprep.subr.mxu0 0.0
      %702 = vmatpush2.xpose.msra.mxu0 0.0
      %703 = vmatprep.subr.mxu0 0.0
      %704 = vmatpush2.xpose.msra.mxu0 0.0
      %705 = vmatprep.mubr.f32.mxu0 0.0
      %706 = vmatmul.mubr.f32.gmra.mxu0 %v637
      %v707 = vpop.f32.mrf.mxu0
      %v708 = vadd.f32 0.0, %v707
      %v709 = vpop.f32.mrf.mxu0
      %710 = vdwg.mxu0
      %vm711 = vcmask 36864
      %v712 = vsel %vm711, %v708, -inf
      %713 = vmax.xlane.f32.xlu0 %v712
      %v714 = vpop.xlane.xlu0 %713
      %v715 = vsub.f32 %v708, %v714
      %v716 = vmul.f32 %v715, 1.442695
      %v717 = vpow.pop %v716
      %v718 = vsel %vm711, %v717, 0.0
      %719 = vadd.xlane.f32.xlu0 %v718
      %v720 = vpop.xlane.xlu0 %719
      %v721 = vrcp.pop %v720
      %v722 = vmul.f32 %v717, %v721
      %v723 = vpack.c.bf16 %v722, %v722
      %v724 = vpack.c.bf16 %v628, %v628
      %726 = vrot.lane.b32.xlu0 %v724, 64
      %v727 = vpop.permute.xlu0 %726
      %vm728 = vcmask 39936
      %v730 = vsel %vm728, %v723, 0
      %vm732 = vcmask 1041408
      %vm733 = vcmask 1042432
      %v734 = vsel %vm732, 4294967295, 65535
      %v735 = vsel %vm733, %v734, 0
      %v737 = vand.u32 %v727, %v735
      %739 = vmatprep.subr.bf16.mxu0 0
      %740 = vmatpush1.bf16.msra.mxu0 0
      %741 = vmatprep.subr.bf16.mxu0 0
      %742 = vmatpush1.bf16.msra.mxu0 0
      %743 = vmatprep.subr.bf16.mxu0 0
      %744 = vmatpush1.bf16.msra.mxu0 0
      %745 = vmatprep.subr.bf16.mxu0 0
      %746 = vmatpush1.bf16.msra.mxu0 0
      %747 = vmatprep.subr.bf16.mxu0 0
      %748 = vmatpush1.bf16.msra.mxu0 0
      %749 = vmatprep.subr.bf16.mxu0 0
      %750 = vmatpush1.bf16.msra.mxu0 0
      %751 = vmatprep.subr.bf16.mxu0 0
      %752 = vmatpush1.bf16.msra.mxu0 0
      %753 = vmatprep.subr.bf16.mxu0 0
      %754 = vmatpush1.bf16.msra.mxu0 %v737
      %755 = vmatprep.subr.bf16.mxu0 0
      %756 = vmatpush2.bf16.msra.mxu0 0
      %757 = vmatprep.subr.bf16.mxu0 0
      %758 = vmatpush2.bf16.msra.mxu0 0
      %759 = vmatprep.subr.bf16.mxu0 0
      %760 = vmatpush2.bf16.msra.mxu0 0
      %761 = vmatprep.subr.bf16.mxu0 0
      %762 = vmatpush2.bf16.msra.mxu0 0
      %763 = vmatprep.subr.bf16.mxu0 0
      %764 = vmatpush2.bf16.msra.mxu0 0
      %765 = vmatprep.subr.bf16.mxu0 0
      %766 = vmatpush2.bf16.msra.mxu0 0
      %767 = vmatprep.subr.bf16.mxu0 0
      %768 = vmatpush2.bf16.msra.mxu0 0
      %769 = vmatprep.subr.bf16.mxu0 0
      %770 = vmatpush2.bf16.msra.mxu0 0
      %771 = vmatprep.mubr.bf16.mxu0 0
      %772 = vmatmul.mubr.bf16.gmra.mxu0 %v730
      %v773 = vpop.f32.mrf.mxu0
      %v774 = vadd.f32 0.0, %v773
      %v775 = vpop.f32.mrf.mxu0
      %v776 = vpop.f32.mrf.mxu0
      %v777 = vpop.f32.mrf.mxu0
      %778 = vdwg.mxu0
      %779 = vrot.lane.b32.xlu0 %v628, 120
      %v780 = vpop.permute.xlu0 %779
      %781 = vrot.lane.b32.xlu0 %v628, 88
      %v782 = vpop.permute.xlu0 %781
      %v783 = vsel %vm636, %v780, 0
      %v785 = vsel %vm636, %v782, 0
      %787 = vmatprep.subr.mxu0 0.0
      %788 = vmatpush1.xpose.msra.mxu0 0.0
      %789 = vmatprep.subr.mxu0 0.0
      %790 = vmatpush1.xpose.msra.mxu0 0.0
      %791 = vmatprep.subr.mxu0 0.0
      %792 = vmatpush1.xpose.msra.mxu0 0.0
      %793 = vmatprep.subr.mxu0 0.0
      %794 = vmatpush1.xpose.msra.mxu0 0.0
      %795 = vmatprep.subr.mxu0 0.0
      %796 = vmatpush1.xpose.msra.mxu0 0.0
      %797 = vmatprep.subr.mxu0 0.0
      %798 = vmatpush1.xpose.msra.mxu0 0.0
      %799 = vmatprep.subr.mxu0 0.0
      %800 = vmatpush1.xpose.msra.mxu0 0.0
      %801 = vmatprep.subr.mxu0 0.0
      %802 = vmatpush1.xpose.msra.mxu0 0.0
      %803 = vmatprep.subr.mxu0 0.0
      %804 = vmatpush1.xpose.msra.mxu0 0.0
      %805 = vmatprep.subr.mxu0 0.0
      %806 = vmatpush1.xpose.msra.mxu0 0.0
      %807 = vmatprep.subr.mxu0 0.0
      %808 = vmatpush1.xpose.msra.mxu0 0.0
      %809 = vmatprep.subr.mxu0 0.0
      %810 = vmatpush1.xpose.msra.mxu0 0.0
      %811 = vmatprep.subr.mxu0 0.0
      %812 = vmatpush1.xpose.msra.mxu0 0.0
      %813 = vmatprep.subr.mxu0 0.0
      %814 = vmatpush1.xpose.msra.mxu0 0.0
      %815 = vmatprep.subr.mxu0 0.0
      %816 = vmatpush1.xpose.msra.mxu0 0.0
      %817 = vmatprep.subr.mxu0 0.0
      %818 = vmatpush1.xpose.msra.mxu0 %v785
      %819 = vmatprep.subr.mxu0 0.0
      %820 = vmatpush2.xpose.msra.mxu0 0.0
      %821 = vmatprep.subr.mxu0 0.0
      %822 = vmatpush2.xpose.msra.mxu0 0.0
      %823 = vmatprep.subr.mxu0 0.0
      %824 = vmatpush2.xpose.msra.mxu0 0.0
      %825 = vmatprep.subr.mxu0 0.0
      %826 = vmatpush2.xpose.msra.mxu0 0.0
      %827 = vmatprep.subr.mxu0 0.0
      %828 = vmatpush2.xpose.msra.mxu0 0.0
      %829 = vmatprep.subr.mxu0 0.0
      %830 = vmatpush2.xpose.msra.mxu0 0.0
      %831 = vmatprep.subr.mxu0 0.0
      %832 = vmatpush2.xpose.msra.mxu0 0.0
      %833 = vmatprep.subr.mxu0 0.0
      %834 = vmatpush2.xpose.msra.mxu0 0.0
      %835 = vmatprep.subr.mxu0 0.0
      %836 = vmatpush2.xpose.msra.mxu0 0.0
      %837 = vmatprep.subr.mxu0 0.0
      %838 = vmatpush2.xpose.msra.mxu0 0.0
      %839 = vmatprep.subr.mxu0 0.0
      %840 = vmatpush2.xpose.msra.mxu0 0.0
      %841 = vmatprep.subr.mxu0 0.0
      %842 = vmatpush2.xpose.msra.mxu0 0.0
      %843 = vmatprep.subr.mxu0 0.0
      %844 = vmatpush2.xpose.msra.mxu0 0.0
      %845 = vmatprep.subr.mxu0 0.0
      %846 = vmatpush2.xpose.msra.mxu0 0.0
      %847 = vmatprep.subr.mxu0 0.0
      %848 = vmatpush2.xpose.msra.mxu0 0.0
      %849 = vmatprep.subr.mxu0 0.0
      %850 = vmatpush2.xpose.msra.mxu0 0.0
      %851 = vmatprep.mubr.f32.mxu0 0.0
      %852 = vmatmul.mubr.f32.gmra.mxu0 %v783
      %v853 = vpop.f32.mrf.mxu0
      %v854 = vadd.f32 0.0, %v853
      %v855 = vpop.f32.mrf.mxu0
      %856 = vdwg.mxu0
      %v857 = vsel %vm711, %v854, -inf
      %858 = vmax.xlane.f32.xlu0 %v857
      %v859 = vpop.xlane.xlu0 %858
      %v860 = vsub.f32 %v854, %v859
      %v861 = vmul.f32 %v860, 1.442695
      %v862 = vpow.pop %v861
      %v863 = vsel %vm711, %v862, 0.0
      %864 = vadd.xlane.f32.xlu0 %v863
      %v865 = vpop.xlane.xlu0 %864
      %v866 = vrcp.pop %v865
      %v867 = vmul.f32 %v862, %v866
      %v868 = vpack.c.bf16 %v867, %v867
      %869 = vrot.lane.b32.xlu0 %v724, 56
      %v870 = vpop.permute.xlu0 %869
      %v872 = vsel %vm728, %v868, 0
      %v875 = vand.u32 %v870, %v735
      %877 = vmatprep.subr.bf16.mxu0 0
      %878 = vmatpush1.bf16.msra.mxu0 0
      %879 = vmatprep.subr.bf16.mxu0 0
      %880 = vmatpush1.bf16.msra.mxu0 0
      %881 = vmatprep.subr.bf16.mxu0 0
      %882 = vmatpush1.bf16.msra.mxu0 0
      %883 = vmatprep.subr.bf16.mxu0 0
      %884 = vmatpush1.bf16.msra.mxu0 0
      %885 = vmatprep.subr.bf16.mxu0 0
      %886 = vmatpush1.bf16.msra.mxu0 0
      %887 = vmatprep.subr.bf16.mxu0 0
      %888 = vmatpush1.bf16.msra.mxu0 0
      %889 = vmatprep.subr.bf16.mxu0 0
      %890 = vmatpush1.bf16.msra.mxu0 0
      %891 = vmatprep.subr.bf16.mxu0 0
      %892 = vmatpush1.bf16.msra.mxu0 %v875
      %893 = vmatprep.subr.bf16.mxu0 0
      %894 = vmatpush2.bf16.msra.mxu0 0
      %895 = vmatprep.subr.bf16.mxu0 0
      %896 = vmatpush2.bf16.msra.mxu0 0
      %897 = vmatprep.subr.bf16.mxu0 0
      %898 = vmatpush2.bf16.msra.mxu0 0
      %899 = vmatprep.subr.bf16.mxu0 0
      %900 = vmatpush2.bf16.msra.mxu0 0
      %901 = vmatprep.subr.bf16.mxu0 0
      %902 = vmatpush2.bf16.msra.mxu0 0
      %903 = vmatprep.subr.bf16.mxu0 0
      %904 = vmatpush2.bf16.msra.mxu0 0
      %905 = vmatprep.subr.bf16.mxu0 0
      %906 = vmatpush2.bf16.msra.mxu0 0
      %907 = vmatprep.subr.bf16.mxu0 0
      %908 = vmatpush2.bf16.msra.mxu0 0
      %909 = vmatprep.mubr.bf16.mxu0 0
      %910 = vmatmul.mubr.bf16.gmra.mxu0 %v872
      %v911 = vpop.f32.mrf.mxu0
      %v912 = vadd.f32 0.0, %v911
      %v913 = vpop.f32.mrf.mxu0
      %v914 = vpop.f32.mrf.mxu0
      %v915 = vpop.f32.mrf.mxu0
      %916 = vdwg.mxu0
      %917 = vrot.lane.b32.xlu0 %v628, 112
      %v918 = vpop.permute.xlu0 %917
      %919 = vrot.lane.b32.xlu0 %v628, 80
      %v920 = vpop.permute.xlu0 %919
      %v921 = vsel %vm636, %v918, 0
      %v923 = vsel %vm636, %v920, 0
      %925 = vmatprep.subr.mxu0 0.0
      %926 = vmatpush1.xpose.msra.mxu0 0.0
      %927 = vmatprep.subr.mxu0 0.0
      %928 = vmatpush1.xpose.msra.mxu0 0.0
      %929 = vmatprep.subr.mxu0 0.0
      %930 = vmatpush1.xpose.msra.mxu0 0.0
      %931 = vmatprep.subr.mxu0 0.0
      %932 = vmatpush1.xpose.msra.mxu0 0.0
      %933 = vmatprep.subr.mxu0 0.0
      %934 = vmatpush1.xpose.msra.mxu0 0.0
      %935 = vmatprep.subr.mxu0 0.0
      %936 = vmatpush1.xpose.msra.mxu0 0.0
      %937 = vmatprep.subr.mxu0 0.0
      %938 = vmatpush1.xpose.msra.mxu0 0.0
      %939 = vmatprep.subr.mxu0 0.0
      %940 = vmatpush1.xpose.msra.mxu0 0.0
      %941 = vmatprep.subr.mxu0 0.0
      %942 = vmatpush1.xpose.msra.mxu0 0.0
      %943 = vmatprep.subr.mxu0 0.0
      %944 = vmatpush1.xpose.msra.mxu0 0.0
      %945 = vmatprep.subr.mxu0 0.0
      %946 = vmatpush1.xpose.msra.mxu0 0.0
      %947 = vmatprep.subr.mxu0 0.0
      %948 = vmatpush1.xpose.msra.mxu0 0.0
      %949 = vmatprep.subr.mxu0 0.0
      %950 = vmatpush1.xpose.msra.mxu0 0.0
      %951 = vmatprep.subr.mxu0 0.0
      %952 = vmatpush1.xpose.msra.mxu0 0.0
      %953 = vmatprep.subr.mxu0 0.0
      %954 = vmatpush1.xpose.msra.mxu0 0.0
      %955 = vmatprep.subr.mxu0 0.0
      %956 = vmatpush1.xpose.msra.mxu0 %v923
      %957 = vmatprep.subr.mxu0 0.0
      %958 = vmatpush2.xpose.msra.mxu0 0.0
      %959 = vmatprep.subr.mxu0 0.0
      %960 = vmatpush2.xpose.msra.mxu0 0.0
      %961 = vmatprep.subr.mxu0 0.0
      %962 = vmatpush2.xpose.msra.mxu0 0.0
      %963 = vmatprep.subr.mxu0 0.0
      %964 = vmatpush2.xpose.msra.mxu0 0.0
      %965 = vmatprep.subr.mxu0 0.0
      %966 = vmatpush2.xpose.msra.mxu0 0.0
      %967 = vmatprep.subr.mxu0 0.0
      %968 = vmatpush2.xpose.msra.mxu0 0.0
      %969 = vmatprep.subr.mxu0 0.0
      %970 = vmatpush2.xpose.msra.mxu0 0.0
      %971 = vmatprep.subr.mxu0 0.0
      %972 = vmatpush2.xpose.msra.mxu0 0.0
      %973 = vmatprep.subr.mxu0 0.0
      %974 = vmatpush2.xpose.msra.mxu0 0.0
      %975 = vmatprep.subr.mxu0 0.0
      %976 = vmatpush2.xpose.msra.mxu0 0.0
      %977 = vmatprep.subr.mxu0 0.0
      %978 = vmatpush2.xpose.msra.mxu0 0.0
      %979 = vmatprep.subr.mxu0 0.0
      %980 = vmatpush2.xpose.msra.mxu0 0.0
      %981 = vmatprep.subr.mxu0 0.0
      %982 = vmatpush2.xpose.msra.mxu0 0.0
      %983 = vmatprep.subr.mxu0 0.0
      %984 = vmatpush2.xpose.msra.mxu0 0.0
      %985 = vmatprep.subr.mxu0 0.0
      %986 = vmatpush2.xpose.msra.mxu0 0.0
      %987 = vmatprep.subr.mxu0 0.0
      %988 = vmatpush2.xpose.msra.mxu0 0.0
      %989 = vmatprep.mubr.f32.mxu0 0.0
      %990 = vmatmul.mubr.f32.gmra.mxu0 %v921
      %v991 = vpop.f32.mrf.mxu0
      %v992 = vadd.f32 0.0, %v991
      %v993 = vpop.f32.mrf.mxu0
      %994 = vdwg.mxu0
      %v995 = vsel %vm711, %v992, -inf
      %996 = vmax.xlane.f32.xlu0 %v995
      %v997 = vpop.xlane.xlu0 %996
      %v998 = vsub.f32 %v992, %v997
      %v999 = vmul.f32 %v998, 1.442695
      %v1000 = vpow.pop %v999
      %v1001 = vsel %vm711, %v1000, 0.0
      %1002 = vadd.xlane.f32.xlu0 %v1001
      %v1003 = vpop.xlane.xlu0 %1002
      %v1004 = vrcp.pop %v1003
      %v1005 = vmul.f32 %v1000, %v1004
      %v1006 = vpack.c.bf16 %v1005, %v1005
      %1007 = vrot.lane.b32.xlu0 %v724, 48
      %v1008 = vpop.permute.xlu0 %1007
      %v1010 = vsel %vm728, %v1006, 0
      %v1013 = vand.u32 %v1008, %v735
      %1015 = vmatprep.subr.bf16.mxu0 0
      %1016 = vmatpush1.bf16.msra.mxu0 0
      %1017 = vmatprep.subr.bf16.mxu0 0
      %1018 = vmatpush1.bf16.msra.mxu0 0
      %1019 = vmatprep.subr.bf16.mxu0 0
      %1020 = vmatpush1.bf16.msra.mxu0 0
      %1021 = vmatprep.subr.bf16.mxu0 0
      %1022 = vmatpush1.bf16.msra.mxu0 0
      %1023 = vmatprep.subr.bf16.mxu0 0
      %1024 = vmatpush1.bf16.msra.mxu0 0
      %1025 = vmatprep.subr.bf16.mxu0 0
      %1026 = vmatpush1.bf16.msra.mxu0 0
      %1027 = vmatprep.subr.bf16.mxu0 0
      %1028 = vmatpush1.bf16.msra.mxu0 0
      %1029 = vmatprep.subr.bf16.mxu0 0
      %1030 = vmatpush1.bf16.msra.mxu0 %v1013
      %1031 = vmatprep.subr.bf16.mxu0 0
      %1032 = vmatpush2.bf16.msra.mxu0 0
      %1033 = vmatprep.subr.bf16.mxu0 0
      %1034 = vmatpush2.bf16.msra.mxu0 0
      %1035 = vmatprep.subr.bf16.mxu0 0
      %1036 = vmatpush2.bf16.msra.mxu0 0
      %1037 = vmatprep.subr.bf16.mxu0 0
      %1038 = vmatpush2.bf16.msra.mxu0 0
      %1039 = vmatprep.subr.bf16.mxu0 0
      %1040 = vmatpush2.bf16.msra.mxu0 0
      %1041 = vmatprep.subr.bf16.mxu0 0
      %1042 = vmatpush2.bf16.msra.mxu0 0
      %1043 = vmatprep.subr.bf16.mxu0 0
      %1044 = vmatpush2.bf16.msra.mxu0 0
      %1045 = vmatprep.subr.bf16.mxu0 0
      %1046 = vmatpush2.bf16.msra.mxu0 0
      %1047 = vmatprep.mubr.bf16.mxu0 0
      %1048 = vmatmul.mubr.bf16.gmra.mxu0 %v1010
      %v1049 = vpop.f32.mrf.mxu0
      %v1050 = vadd.f32 0.0, %v1049
      %v1051 = vpop.f32.mrf.mxu0
      %v1052 = vpop.f32.mrf.mxu0
      %v1053 = vpop.f32.mrf.mxu0
      %1054 = vdwg.mxu0
      %1055 = vrot.lane.b32.xlu0 %v628, 104
      %v1056 = vpop.permute.xlu0 %1055
      %1057 = vrot.lane.b32.xlu0 %v628, 72
      %v1058 = vpop.permute.xlu0 %1057
      %v1059 = vsel %vm636, %v1056, 0
      %v1061 = vsel %vm636, %v1058, 0
      %1063 = vmatprep.subr.mxu0 0.0
      %1064 = vmatpush1.xpose.msra.mxu0 0.0
      %1065 = vmatprep.subr.mxu0 0.0
      %1066 = vmatpush1.xpose.msra.mxu0 0.0
      %1067 = vmatprep.subr.mxu0 0.0
      %1068 = vmatpush1.xpose.msra.mxu0 0.0
      %1069 = vmatprep.subr.mxu0 0.0
      %1070 = vmatpush1.xpose.msra.mxu0 0.0
      %1071 = vmatprep.subr.mxu0 0.0
      %1072 = vmatpush1.xpose.msra.mxu0 0.0
      %1073 = vmatprep.subr.mxu0 0.0
      %1074 = vmatpush1.xpose.msra.mxu0 0.0
      %1075 = vmatprep.subr.mxu0 0.0
      %1076 = vmatpush1.xpose.msra.mxu0 0.0
      %1077 = vmatprep.subr.mxu0 0.0
      %1078 = vmatpush1.xpose.msra.mxu0 0.0
      %1079 = vmatprep.subr.mxu0 0.0
      %1080 = vmatpush1.xpose.msra.mxu0 0.0
      %1081 = vmatprep.subr.mxu0 0.0
      %1082 = vmatpush1.xpose.msra.mxu0 0.0
      %1083 = vmatprep.subr.mxu0 0.0
      %1084 = vmatpush1.xpose.msra.mxu0 0.0
      %1085 = vmatprep.subr.mxu0 0.0
      %1086 = vmatpush1.xpose.msra.mxu0 0.0
      %1087 = vmatprep.subr.mxu0 0.0
      %1088 = vmatpush1.xpose.msra.mxu0 0.0
      %1089 = vmatprep.subr.mxu0 0.0
      %1090 = vmatpush1.xpose.msra.mxu0 0.0
      %1091 = vmatprep.subr.mxu0 0.0
      %1092 = vmatpush1.xpose.msra.mxu0 0.0
      %1093 = vmatprep.subr.mxu0 0.0
      %1094 = vmatpush1.xpose.msra.mxu0 %v1061
      %1095 = vmatprep.subr.mxu0 0.0
      %1096 = vmatpush2.xpose.msra.mxu0 0.0
      %1097 = vmatprep.subr.mxu0 0.0
      %1098 = vmatpush2.xpose.msra.mxu0 0.0
      %1099 = vmatprep.subr.mxu0 0.0
      %1100 = vmatpush2.xpose.msra.mxu0 0.0
      %1101 = vmatprep.subr.mxu0 0.0
      %1102 = vmatpush2.xpose.msra.mxu0 0.0
      %1103 = vmatprep.subr.mxu0 0.0
      %1104 = vmatpush2.xpose.msra.mxu0 0.0
      %1105 = vmatprep.subr.mxu0 0.0
      %1106 = vmatpush2.xpose.msra.mxu0 0.0
      %1107 = vmatprep.subr.mxu0 0.0
      %1108 = vmatpush2.xpose.msra.mxu0 0.0
      %1109 = vmatprep.subr.mxu0 0.0
      %1110 = vmatpush2.xpose.msra.mxu0 0.0
      %1111 = vmatprep.subr.mxu0 0.0
      %1112 = vmatpush2.xpose.msra.mxu0 0.0
      %1113 = vmatprep.subr.mxu0 0.0
      %1114 = vmatpush2.xpose.msra.mxu0 0.0
      %1115 = vmatprep.subr.mxu0 0.0
      %1116 = vmatpush2.xpose.msra.mxu0 0.0
      %1117 = vmatprep.subr.mxu0 0.0
      %1118 = vmatpush2.xpose.msra.mxu0 0.0
      %1119 = vmatprep.subr.mxu0 0.0
      %1120 = vmatpush2.xpose.msra.mxu0 0.0
      %1121 = vmatprep.subr.mxu0 0.0
      %1122 = vmatpush2.xpose.msra.mxu0 0.0
      %1123 = vmatprep.subr.mxu0 0.0
      %1124 = vmatpush2.xpose.msra.mxu0 0.0
      %1125 = vmatprep.subr.mxu0 0.0
      %1126 = vmatpush2.xpose.msra.mxu0 0.0
      %1127 = vmatprep.mubr.f32.mxu0 0.0
      %1128 = vmatmul.mubr.f32.gmra.mxu0 %v1059
      %v1129 = vpop.f32.mrf.mxu0
      %v1130 = vadd.f32 0.0, %v1129
      %v1131 = vpop.f32.mrf.mxu0
      %1132 = vdwg.mxu0
      %v1133 = vsel %vm711, %v1130, -inf
      %1134 = vmax.xlane.f32.xlu0 %v1133
      %v1135 = vpop.xlane.xlu0 %1134
      %v1136 = vsub.f32 %v1130, %v1135
      %v1137 = vmul.f32 %v1136, 1.442695
      %v1138 = vpow.pop %v1137
      %v1139 = vsel %vm711, %v1138, 0.0
      %1140 = vadd.xlane.f32.xlu0 %v1139
      %v1141 = vpop.xlane.xlu0 %1140
      %v1142 = vrcp.pop %v1141
      %v1143 = vmul.f32 %v1138, %v1142
      %v1144 = vpack.c.bf16 %v1143, %v1143
      %1145 = vrot.lane.b32.xlu0 %v724, 40
      %v1146 = vpop.permute.xlu0 %1145
      %v1148 = vsel %vm728, %v1144, 0
      %v1151 = vand.u32 %v1146, %v735
      %1153 = vmatprep.subr.bf16.mxu0 0
      %1154 = vmatpush1.bf16.msra.mxu0 0
      %1155 = vmatprep.subr.bf16.mxu0 0
      %1156 = vmatpush1.bf16.msra.mxu0 0
      %1157 = vmatprep.subr.bf16.mxu0 0
      %1158 = vmatpush1.bf16.msra.mxu0 0
      %1159 = vmatprep.subr.bf16.mxu0 0
      %1160 = vmatpush1.bf16.msra.mxu0 0
      %1161 = vmatprep.subr.bf16.mxu0 0
      %1162 = vmatpush1.bf16.msra.mxu0 0
      %1163 = vmatprep.subr.bf16.mxu0 0
      %1164 = vmatpush1.bf16.msra.mxu0 0
      %1165 = vmatprep.subr.bf16.mxu0 0
      %1166 = vmatpush1.bf16.msra.mxu0 0
      %1167 = vmatprep.subr.bf16.mxu0 0
      %1168 = vmatpush1.bf16.msra.mxu0 %v1151
      %1169 = vmatprep.subr.bf16.mxu0 0
      %1170 = vmatpush2.bf16.msra.mxu0 0
      %1171 = vmatprep.subr.bf16.mxu0 0
      %1172 = vmatpush2.bf16.msra.mxu0 0
      %1173 = vmatprep.subr.bf16.mxu0 0
      %1174 = vmatpush2.bf16.msra.mxu0 0
      %1175 = vmatprep.subr.bf16.mxu0 0
      %1176 = vmatpush2.bf16.msra.mxu0 0
      %1177 = vmatprep.subr.bf16.mxu0 0
      %1178 = vmatpush2.bf16.msra.mxu0 0
      %1179 = vmatprep.subr.bf16.mxu0 0
      %1180 = vmatpush2.bf16.msra.mxu0 0
      %1181 = vmatprep.subr.bf16.mxu0 0
      %1182 = vmatpush2.bf16.msra.mxu0 0
      %1183 = vmatprep.subr.bf16.mxu0 0
      %1184 = vmatpush2.bf16.msra.mxu0 0
      %1185 = vmatprep.mubr.bf16.mxu0 0
      %1186 = vmatmul.mubr.bf16.gmra.mxu0 %v1148
      %v1187 = vpop.f32.mrf.mxu0
      %v1188 = vadd.f32 0.0, %v1187
      %v1189 = vpop.f32.mrf.mxu0
      %v1190 = vpop.f32.mrf.mxu0
      %v1191 = vpop.f32.mrf.mxu0
      %1192 = vdwg.mxu0
      %1194 = vrot.lane.b32.xlu0 %v912, 8
      %v1195 = vpop.permute.xlu0 %1194
      %1198 = vrot.lane.b32.xlu0 %v1050, 16
      %v1199 = vpop.permute.xlu0 %1198
      %1202 = vrot.lane.b32.xlu0 %v1188, 24
      %v1203 = vpop.permute.xlu0 %1202
      %v1205 = vsel %vm636, %v774, %v1195
      %vm1206 = vcmask 130048
      %v1207 = vsel %vm1206, %v1205, %v1199
      %vm1208 = vcmask 195584
      %v1209 = vsel %vm1208, %v1207, %v1203
      %v1210 = vpack.c.bf16 %v1209, %v1209
      %v1211 = vld [vmem:[%s4] sm:$0xf]
      %v1212 = vld [vmem:[%s4 + $0x8] sm:$0xf]
      %v1213 = vld [vmem:[%s4 + $0x10] sm:$0xf]
      %v1214 = vld [vmem:[%s4 + $0x18] sm:$0xf]
      %v1219 = vunpack.c.l.b16 %v1211
      %v1220 = vunpack.c.l.b16 %v1212
      %v1221 = vunpack.c.l.b16 %v1213
      %v1222 = vunpack.c.l.b16 %v1214
      %v1223 = vpack.c.b16 %v1220, %v1219
      %v1224 = vpack.c.b16 %v1222, %v1221
      %1225 = vrot.lane.b32.xlu0 %v1223, 32
      %v1226 = vpop.permute.xlu0 %1225
      %1227 = vrot.lane.b32.xlu0 %v1224, 32
      %v1228 = vpop.permute.xlu0 %1227
      %v1232 = vsel %vm589, %v1210, 0
      %1234 = vmatprep.subr.bf16.mxu0 0
      %1235 = vmatpush1.bf16.msra.mxu0 0
      %1236 = vmatprep.subr.bf16.mxu0 0
      %1237 = vmatpush1.bf16.msra.mxu0 0
      %1238 = vmatprep.subr.bf16.mxu0 0
      %1239 = vmatpush1.bf16.msra.mxu0 0
      %1240 = vmatprep.subr.bf16.mxu0 0
      %1241 = vmatpush1.bf16.msra.mxu0 0
      %1242 = vmatprep.subr.bf16.mxu0 0
      %1243 = vmatpush1.bf16.msra.mxu0 0
      %1244 = vmatprep.subr.bf16.mxu0 0
      %1245 = vmatpush1.bf16.msra.mxu0 0
      %1246 = vmatprep.subr.bf16.mxu0 0
      %1247 = vmatpush1.bf16.msra.mxu0 %v1228
      %1248 = vmatprep.subr.bf16.mxu0 0
      %1249 = vmatpush1.bf16.msra.mxu0 %v1226
      %1250 = vmatprep.subr.bf16.mxu0 0
      %1251 = vmatpush2.bf16.msra.mxu0 0
      %1252 = vmatprep.subr.bf16.mxu0 0
      %1253 = vmatpush2.bf16.msra.mxu0 0
      %1254 = vmatprep.subr.bf16.mxu0 0
      %1255 = vmatpush2.bf16.msra.mxu0 0
      %1256 = vmatprep.subr.bf16.mxu0 0
      %1257 = vmatpush2.bf16.msra.mxu0 0
      %1258 = vmatprep.subr.bf16.mxu0 0
      %1259 = vmatpush2.bf16.msra.mxu0 0
      %1260 = vmatprep.subr.bf16.mxu0 0
      %1261 = vmatpush2.bf16.msra.mxu0 0
      %1262 = vmatprep.subr.bf16.mxu0 0
      %1263 = vmatpush2.bf16.msra.mxu0 0
      %1264 = vmatprep.subr.bf16.mxu0 0
      %1265 = vmatpush2.bf16.msra.mxu0 0
      %1266 = vmatprep.mubr.bf16.mxu0 0
      %1267 = vmatmul.mubr.bf16.gmra.mxu0 %v1232
      %v1268 = vpop.f32.mrf.mxu0
      %v1269 = vadd.f32 0.0, %v1268
      %v1270 = vpop.f32.mrf.mxu0
      %v1271 = vpop.f32.mrf.mxu0
      %v1272 = vpop.f32.mrf.mxu0
      %1273 = vdwg.mxu0
      %v1274 = vadd.f32 %v536, %v1269
      %v1275 = vlaneseq
      %v1276 = vshrl.u32 %v1275, 7
      %v1277 = vsub.s32 0, %v1276
      %v1278 = vrot.slane %v542, %v1277
      %v1279 = vadd.f32 %v1274, %v1278
      %v1280 = vsel %vm512, %v1279, 0.0
      %1281 = vadd.xlane.f32.xlu0 %v1280
      %v1282 = vpop.xlane.xlu0 %1281
      %v1283 = vmul.f32 %v1282, %v516
      %v1284 = vsub.f32 %v1279, %v1283
      %v1285 = vmul.f32 %v1284, %v1284
      %v1286 = vsel %vm512, %v1285, 0.0
      %1287 = vadd.xlane.f32.xlu0 %v1286
      %v1288 = vpop.xlane.xlu0 %1287
      %v1289 = vmul.f32 %v1288, %v516
      %v1290 = vadd.f32 %v1289, 1e-05
      %v1291 = vrsqrt.pop %v1290
      %v1292 = vmul.f32 %v1284, %v1291
      %v1293 = vlaneseq
      %v1294 = vshrl.u32 %v1293, 7
      %v1295 = vsub.s32 0, %v1294
      %v1296 = vrot.slane %v540, %v1295
      %v1297 = vmul.f32 %v1292, %v1296
      %v1298 = vlaneseq
      %v1299 = vshrl.u32 %v1298, 7
      %v1300 = vsub.s32 0, %v1299
      %v1301 = vrot.slane %v541, %v1300
      %v1302 = vadd.f32 %v1297, %v1301
      %v1303 = vpack.c.bf16 %v1302, %v1302
      %v1304 = vld [vmem:[%s4 + $0x4] sm:$0xf]
      %v1305 = vld [vmem:[%s4 + $0xc] sm:$0xf]
      %v1306 = vld [vmem:[%s4 + $0x14] sm:$0xf]
      %v1307 = vld [vmem:[%s4 + $0x1c] sm:$0xf]
      %v1308 = vlaneseq
      %v1309 = vshrl.u32 %v1308, 7
      %v1310 = vsub.s32 0, %v1309
      %v1311 = vrot.slane %v543, %v1310
      %v1316 = vunpack.c.l.b16 %v1304
      %v1317 = vunpack.c.l.b16 %v1305
      %v1318 = vunpack.c.l.b16 %v1306
      %v1319 = vunpack.c.l.b16 %v1307
      %v1320 = vpack.c.b16 %v1317, %v1316
      %v1321 = vpack.c.b16 %v1319, %v1318
      %v1325 = vsel %vm589, %v1303, 0
      %1327 = vmatprep.subr.bf16.mxu0 0
      %1328 = vmatpush1.bf16.msra.mxu0 0
      %1329 = vmatprep.subr.bf16.mxu0 0
      %1330 = vmatpush1.bf16.msra.mxu0 0
      %1331 = vmatprep.subr.bf16.mxu0 0
      %1332 = vmatpush1.bf16.msra.mxu0 0
      %1333 = vmatprep.subr.bf16.mxu0 0
      %1334 = vmatpush1.bf16.msra.mxu0 0
      %1335 = vmatprep.subr.bf16.mxu0 0
      %1336 = vmatpush1.bf16.msra.mxu0 0
      %1337 = vmatprep.subr.bf16.mxu0 0
      %1338 = vmatpush1.bf16.msra.mxu0 0
      %1339 = vmatprep.subr.bf16.mxu0 0
      %1340 = vmatpush1.bf16.msra.mxu0 %v1321
      %1341 = vmatprep.subr.bf16.mxu0 0
      %1342 = vmatpush1.bf16.msra.mxu0 %v1320
      %1343 = vmatprep.subr.bf16.mxu0 0
      %1344 = vmatpush2.bf16.msra.mxu0 0
      %1345 = vmatprep.subr.bf16.mxu0 0
      %1346 = vmatpush2.bf16.msra.mxu0 0
      %1347 = vmatprep.subr.bf16.mxu0 0
      %1348 = vmatpush2.bf16.msra.mxu0 0
      %1349 = vmatprep.subr.bf16.mxu0 0
      %1350 = vmatpush2.bf16.msra.mxu0 0
      %1351 = vmatprep.subr.bf16.mxu0 0
      %1352 = vmatpush2.bf16.msra.mxu0 0
      %1353 = vmatprep.subr.bf16.mxu0 0
      %1354 = vmatpush2.bf16.msra.mxu0 0
      %1355 = vmatprep.subr.bf16.mxu0 0
      %1356 = vmatpush2.bf16.msra.mxu0 0
      %1357 = vmatprep.subr.bf16.mxu0 0
      %1358 = vmatpush2.bf16.msra.mxu0 0
      %1359 = vmatprep.mubr.bf16.mxu0 0
      %1360 = vmatmul.mubr.bf16.gmra.mxu0 %v1325
      %v1361 = vpop.f32.mrf.mxu0
      %v1362 = vadd.f32 %v1311, %v1361
      %v1363 = vpop.f32.mrf.mxu0
      %v1364 = vpop.f32.mrf.mxu0
      %v1365 = vpop.f32.mrf.mxu0
      %1366 = vdwg.mxu0
      %v1367 = vmul.f32 %v1362, 1.702
      %v1368 = vxor.u32 %v1367, 2147483648
      %v1369 = vmul.f32 %v1368, 1.442695
      %v1370 = vpow.pop %v1369
      %v1371 = vadd.f32 %v1370, 1.0
      %v1372 = vrcp.pop %v1371
      %v1373 = vmul.f32 1.0, %v1372
      %v1374 = vmul.f32 %v1362, %v1373
      %v1375 = vpack.c.bf16 %v1374, %v1374
      %v1376 = vld [vmem:[%s5] sm:$0xf]
      %v1377 = vld [vmem:[%s5 + $0x4] sm:$0xf]
      %v1378 = vld [vmem:[%s5 + $0x8] sm:$0xf]
      %v1379 = vld [vmem:[%s5 + $0xc] sm:$0xf]
      %v1380 = vld [vmem:[%s5 + $0x10] sm:$0xf]
      %v1381 = vld [vmem:[%s5 + $0x14] sm:$0xf]
      %v1382 = vld [vmem:[%s5 + $0x18] sm:$0xf]
      %v1383 = vld [vmem:[%s5 + $0x1c] sm:$0xf]
      %v1392 = vunpack.c.l.b16 %v1376
      %v1393 = vunpack.c.l.b16 %v1377
      %v1394 = vunpack.c.l.b16 %v1378
      %v1395 = vunpack.c.l.b16 %v1379
      %v1396 = vunpack.c.l.b16 %v1380
      %v1397 = vunpack.c.l.b16 %v1381
      %v1398 = vunpack.c.l.b16 %v1382
      %v1399 = vunpack.c.l.b16 %v1383
      %v1400 = vpack.c.b16 %v1393, %v1392
      %v1401 = vpack.c.b16 %v1395, %v1394
      %v1402 = vpack.c.b16 %v1397, %v1396
      %v1403 = vpack.c.b16 %v1399, %v1398
      %v1409 = vsel %vm466, %v1375, 0
      %1411 = vmatprep.subr.bf16.mxu0 0
      %1412 = vmatpush1.bf16.msra.mxu0 0
      %1413 = vmatprep.subr.bf16.mxu0 0
      %1414 = vmatpush1.bf16.msra.mxu0 0
      %1415 = vmatprep.subr.bf16.mxu0 0
      %1416 = vmatpush1.bf16.msra.mxu0 0
      %1417 = vmatprep.subr.bf16.mxu0 0
      %1418 = vmatpush1.bf16.msra.mxu0 0
      %1419 = vmatprep.subr.bf16.mxu0 0
      %1420 = vmatpush1.bf16.msra.mxu0 %v1403
      %1421 = vmatprep.subr.bf16.mxu0 0
      %1422 = vmatpush1.bf16.msra.mxu0 %v1402
      %1423 = vmatprep.subr.bf16.mxu0 0
      %1424 = vmatpush1.bf16.msra.mxu0 %v1401
      %1425 = vmatprep.subr.bf16.mxu0 0
      %1426 = vmatpush1.bf16.msra.mxu0 %v1400
      %1427 = vmatprep.subr.bf16.mxu0 0
      %1428 = vmatpush2.bf16.msra.mxu0 0
      %1429 = vmatprep.subr.bf16.mxu0 0
      %1430 = vmatpush2.bf16.msra.mxu0 0
      %1431 = vmatprep.subr.bf16.mxu0 0
      %1432 = vmatpush2.bf16.msra.mxu0 0
      %1433 = vmatprep.subr.bf16.mxu0 0
      %1434 = vmatpush2.bf16.msra.mxu0 0
      %1435 = vmatprep.subr.bf16.mxu0 0
      %1436 = vmatpush2.bf16.msra.mxu0 0
      %1437 = vmatprep.subr.bf16.mxu0 0
      %1438 = vmatpush2.bf16.msra.mxu0 0
      %1439 = vmatprep.subr.bf16.mxu0 0
      %1440 = vmatpush2.bf16.msra.mxu0 0
      %1441 = vmatprep.subr.bf16.mxu0 0
      %1442 = vmatpush2.bf16.msra.mxu0 0
      %1443 = vmatprep.mubr.bf16.mxu0 0
      %1444 = vmatmul.mubr.bf16.gmra.mxu0 %v1409
      %v1445 = vpop.f32.mrf.mxu0
      %v1446 = vadd.f32 0.0, %v1445
      %v1447 = vpop.f32.mrf.mxu0
      %v1448 = vpop.f32.mrf.mxu0
      %v1449 = vpop.f32.mrf.mxu0
      %1450 = vdwg.mxu0
      %v1451 = vadd.f32 %v1279, %v1446
      %v1452 = vlaneseq
      %v1453 = vshrl.u32 %v1452, 7
      %v1454 = vsub.s32 0, %v1453
      %v1455 = vrot.slane %v544, %v1454
      %v1456 = vadd.f32 %v1451, %v1455
      %s1457 = scalar_lea.vmem %s7, 8
      %v1458 = vld [vmem:[%s1457] sm:$0x1]
      %v1459 = vld [vmem:[%s1457 + $0x1] sm:$0x1]
      %v1460 = vld [vmem:[%s1457 + $0x2] sm:$0x1]
      %v1461 = vld [vmem:[%s1457 + $0x3] sm:$0x1]
      %v1462 = vld [vmem:[%s1457 + $0x4] sm:$0x1]
      %v1463 = vld [vmem:[%s1457 + $0x5] sm:$0x1]
      %v1464 = vld [vmem:[%s1457 + $0x6] sm:$0x1]
      %v1465 = vld [vmem:[%s1457 + $0x7] sm:$0x1]
      %v1466 = vsel %vm512, %v1456, 0.0
      %1467 = vadd.xlane.f32.xlu0 %v1466
      %v1468 = vpop.xlane.xlu0 %1467
      %v1469 = vmul.f32 %v1468, %v516
      %v1470 = vsub.f32 %v1456, %v1469
      %v1471 = vmul.f32 %v1470, %v1470
      %v1472 = vsel %vm512, %v1471, 0.0
      %1473 = vadd.xlane.f32.xlu0 %v1472
      %v1474 = vpop.xlane.xlu0 %1473
      %v1475 = vmul.f32 %v1474, %v516
      %v1476 = vadd.f32 %v1475, 1e-05
      %v1477 = vrsqrt.pop %v1476
      %v1478 = vmul.f32 %v1470, %v1477
      %v1479 = vlaneseq
      %v1480 = vshrl.u32 %v1479, 7
      %v1481 = vsub.s32 0, %v1480
      %v1482 = vrot.slane %v1458, %v1481
      %v1483 = vmul.f32 %v1478, %v1482
      %v1484 = vlaneseq
      %v1485 = vshrl.u32 %v1484, 7
      %v1486 = vsub.s32 0, %v1485
      %v1487 = vrot.slane %v1459, %v1486
      %v1488 = vadd.f32 %v1483, %v1487
      %v1489 = vpack.c.bf16 %v1488, %v1488
      %s1490 = scalar_lea.vmem %s4, 32
      %v1491 = vld [vmem:[%s1490] sm:$0xf]
      %v1492 = vld [vmem:[%s1490 + $0x8] sm:$0xf]
      %v1493 = vld [vmem:[%s1490 + $0x10] sm:$0xf]
      %v1494 = vld [vmem:[%s1490 + $0x18] sm:$0xf]
      %v1495 = vlaneseq
      %v1496 = vshrl.u32 %v1495, 7
      %v1497 = vsub.s32 0, %v1496
      %v1498 = vrot.slane %v1460, %v1497
      %v1503 = vunpack.c.l.b16 %v1491
      %v1504 = vunpack.c.l.b16 %v1492
      %v1505 = vunpack.c.l.b16 %v1493
      %v1506 = vunpack.c.l.b16 %v1494
      %v1507 = vpack.c.b16 %v1504, %v1503
      %v1508 = vpack.c.b16 %v1506, %v1505
      %v1512 = vsel %vm589, %v1489, 0
      %1514 = vmatprep.subr.bf16.mxu0 0
      %1515 = vmatpush1.bf16.msra.mxu0 0
      %1516 = vmatprep.subr.bf16.mxu0 0
      %1517 = vmatpush1.bf16.msra.mxu0 0
      %1518 = vmatprep.subr.bf16.mxu0 0
      %1519 = vmatpush1.bf16.msra.mxu0 0
      %1520 = vmatprep.subr.bf16.mxu0 0
      %1521 = vmatpush1.bf16.msra.mxu0 0
      %1522 = vmatprep.subr.bf16.mxu0 0
      %1523 = vmatpush1.bf16.msra.mxu0 0
      %1524 = vmatprep.subr.bf16.mxu0 0
      %1525 = vmatpush1.bf16.msra.mxu0 0
      %1526 = vmatprep.subr.bf16.mxu0 0
      %1527 = vmatpush1.bf16.msra.mxu0 %v1508
      %1528 = vmatprep.subr.bf16.mxu0 0
      %1529 = vmatpush1.bf16.msra.mxu0 %v1507
      %1530 = vmatprep.subr.bf16.mxu0 0
      %1531 = vmatpush2.bf16.msra.mxu0 0
      %1532 = vmatprep.subr.bf16.mxu0 0
      %1533 = vmatpush2.bf16.msra.mxu0 0
      %1534 = vmatprep.subr.bf16.mxu0 0
      %1535 = vmatpush2.bf16.msra.mxu0 0
      %1536 = vmatprep.subr.bf16.mxu0 0
      %1537 = vmatpush2.bf16.msra.mxu0 0
      %1538 = vmatprep.subr.bf16.mxu0 0
      %1539 = vmatpush2.bf16.msra.mxu0 0
      %1540 = vmatprep.subr.bf16.mxu0 0
      %1541 = vmatpush2.bf16.msra.mxu0 0
      %1542 = vmatprep.subr.bf16.mxu0 0
      %1543 = vmatpush2.bf16.msra.mxu0 0
      %1544 = vmatprep.subr.bf16.mxu0 0
      %1545 = vmatpush2.bf16.msra.mxu0 0
      %1546 = vmatprep.mubr.bf16.mxu0 0
      %1547 = vmatmul.mubr.bf16.gmra.mxu0 %v1512
      %v1548 = vpop.f32.mrf.mxu0
      %v1549 = vadd.f32 %v1498, %v1548
      %v1550 = vpop.f32.mrf.mxu0
      %v1551 = vpop.f32.mrf.mxu0
      %v1552 = vpop.f32.mrf.mxu0
      %1553 = vdwg.mxu0
      %1555 = vrot.lane.b32.xlu0 %v1549, 96
      %v1556 = vpop.permute.xlu0 %1555
      %v1557 = vsel %vm636, %v1549, 0
      %v1559 = vsel %vm636, %v1556, 0
      %1561 = vmatprep.subr.mxu0 0.0
      %1562 = vmatpush1.xpose.msra.mxu0 0.0
      %1563 = vmatprep.subr.mxu0 0.0
      %1564 = vmatpush1.xpose.msra.mxu0 0.0
      %1565 = vmatprep.subr.mxu0 0.0
      %1566 = vmatpush1.xpose.msra.mxu0 0.0
      %1567 = vmatprep.subr.mxu0 0.0
      %1568 = vmatpush1.xpose.msra.mxu0 0.0
      %1569 = vmatprep.subr.mxu0 0.0
      %1570 = vmatpush1.xpose.msra.mxu0 0.0
      %1571 = vmatprep.subr.mxu0 0.0
      %1572 = vmatpush1.xpose.msra.mxu0 0.0
      %1573 = vmatprep.subr.mxu0 0.0
      %1574 = vmatpush1.xpose.msra.mxu0 0.0
      %1575 = vmatprep.subr.mxu0 0.0
      %1576 = vmatpush1.xpose.msra.mxu0 0.0
      %1577 = vmatprep.subr.mxu0 0.0
      %1578 = vmatpush1.xpose.msra.mxu0 0.0
      %1579 = vmatprep.subr.mxu0 0.0
      %1580 = vmatpush1.xpose.msra.mxu0 0.0
      %1581 = vmatprep.subr.mxu0 0.0
      %1582 = vmatpush1.xpose.msra.mxu0 0.0
      %1583 = vmatprep.subr.mxu0 0.0
      %1584 = vmatpush1.xpose.msra.mxu0 0.0
      %1585 = vmatprep.subr.mxu0 0.0
      %1586 = vmatpush1.xpose.msra.mxu0 0.0
      %1587 = vmatprep.subr.mxu0 0.0
      %1588 = vmatpush1.xpose.msra.mxu0 0.0
      %1589 = vmatprep.subr.mxu0 0.0
      %1590 = vmatpush1.xpose.msra.mxu0 0.0
      %1591 = vmatprep.subr.mxu0 0.0
      %1592 = vmatpush1.xpose.msra.mxu0 %v1559
      %1593 = vmatprep.subr.mxu0 0.0
      %1594 = vmatpush2.xpose.msra.mxu0 0.0
      %1595 = vmatprep.subr.mxu0 0.0
      %1596 = vmatpush2.xpose.msra.mxu0 0.0
      %1597 = vmatprep.subr.mxu0 0.0
      %1598 = vmatpush2.xpose.msra.mxu0 0.0
      %1599 = vmatprep.subr.mxu0 0.0
      %1600 = vmatpush2.xpose.msra.mxu0 0.0
      %1601 = vmatprep.subr.mxu0 0.0
      %1602 = vmatpush2.xpose.msra.mxu0 0.0
      %1603 = vmatprep.subr.mxu0 0.0
      %1604 = vmatpush2.xpose.msra.mxu0 0.0
      %1605 = vmatprep.subr.mxu0 0.0
      %1606 = vmatpush2.xpose.msra.mxu0 0.0
      %1607 = vmatprep.subr.mxu0 0.0
      %1608 = vmatpush2.xpose.msra.mxu0 0.0
      %1609 = vmatprep.subr.mxu0 0.0
      %1610 = vmatpush2.xpose.msra.mxu0 0.0
      %1611 = vmatprep.subr.mxu0 0.0
      %1612 = vmatpush2.xpose.msra.mxu0 0.0
      %1613 = vmatprep.subr.mxu0 0.0
      %1614 = vmatpush2.xpose.msra.mxu0 0.0
      %1615 = vmatprep.subr.mxu0 0.0
      %1616 = vmatpush2.xpose.msra.mxu0 0.0
      %1617 = vmatprep.subr.mxu0 0.0
      %1618 = vmatpush2.xpose.msra.mxu0 0.0
      %1619 = vmatprep.subr.mxu0 0.0
      %1620 = vmatpush2.xpose.msra.mxu0 0.0
      %1621 = vmatprep.subr.mxu0 0.0
      %1622 = vmatpush2.xpose.msra.mxu0 0.0
      %1623 = vmatprep.subr.mxu0 0.0
      %1624 = vmatpush2.xpose.msra.mxu0 0.0
      %1625 = vmatprep.mubr.f32.mxu0 0.0
      %1626 = vmatmul.mubr.f32.gmra.mxu0 %v1557
      %v1627 = vpop.f32.mrf.mxu0
      %v1628 = vadd.f32 0.0, %v1627
      %v1629 = vpop.f32.mrf.mxu0
      %1630 = vdwg.mxu0
      %v1631 = vsel %vm711, %v1628, -inf
      %1632 = vmax.xlane.f32.xlu0 %v1631
      %v1633 = vpop.xlane.xlu0 %1632
      %v1634 = vsub.f32 %v1628, %v1633
      %v1635 = vmul.f32 %v1634, 1.442695
      %v1636 = vpow.pop %v1635
      %v1637 = vsel %vm711, %v1636, 0.0
      %1638 = vadd.xlane.f32.xlu0 %v1637
      %v1639 = vpop.xlane.xlu0 %1638
      %v1640 = vrcp.pop %v1639
      %v1641 = vmul.f32 %v1636, %v1640
      %v1642 = vpack.c.bf16 %v1641, %v1641
      %v1643 = vpack.c.bf16 %v1549, %v1549
      %1645 = vrot.lane.b32.xlu0 %v1643, 64
      %v1646 = vpop.permute.xlu0 %1645
      %v1648 = vsel %vm728, %v1642, 0
      %v1651 = vand.u32 %v1646, %v735
      %1653 = vmatprep.subr.bf16.mxu0 0
      %1654 = vmatpush1.bf16.msra.mxu0 0
      %1655 = vmatprep.subr.bf16.mxu0 0
      %1656 = vmatpush1.bf16.msra.mxu0 0
      %1657 = vmatprep.subr.bf16.mxu0 0
      %1658 = vmatpush1.bf16.msra.mxu0 0
      %1659 = vmatprep.subr.bf16.mxu0 0
      %1660 = vmatpush1.bf16.msra.mxu0 0
      %1661 = vmatprep.subr.bf16.mxu0 0
      %1662 = vmatpush1.bf16.msra.mxu0 0
      %1663 = vmatprep.subr.bf16.mxu0 0
      %1664 = vmatpush1.bf16.msra.mxu0 0
      %1665 = vmatprep.subr.bf16.mxu0 0
      %1666 = vmatpush1.bf16.msra.mxu0 0
      %1667 = vmatprep.subr.bf16.mxu0 0
      %1668 = vmatpush1.bf16.msra.mxu0 %v1651
      %1669 = vmatprep.subr.bf16.mxu0 0
      %1670 = vmatpush2.bf16.msra.mxu0 0
      %1671 = vmatprep.subr.bf16.mxu0 0
      %1672 = vmatpush2.bf16.msra.mxu0 0
      %1673 = vmatprep.subr.bf16.mxu0 0
      %1674 = vmatpush2.bf16.msra.mxu0 0
      %1675 = vmatprep.subr.bf16.mxu0 0
      %1676 = vmatpush2.bf16.msra.mxu0 0
      %1677 = vmatprep.subr.bf16.mxu0 0
      %1678 = vmatpush2.bf16.msra.mxu0 0
      %1679 = vmatprep.subr.bf16.mxu0 0
      %1680 = vmatpush2.bf16.msra.mxu0 0
      %1681 = vmatprep.subr.bf16.mxu0 0
      %1682 = vmatpush2.bf16.msra.mxu0 0
      %1683 = vmatprep.subr.bf16.mxu0 0
      %1684 = vmatpush2.bf16.msra.mxu0 0
      %1685 = vmatprep.mubr.bf16.mxu0 0
      %1686 = vmatmul.mubr.bf16.gmra.mxu0 %v1648
      %v1687 = vpop.f32.mrf.mxu0
      %v1688 = vadd.f32 0.0, %v1687
      %v1689 = vpop.f32.mrf.mxu0
      %v1690 = vpop.f32.mrf.mxu0
      %v1691 = vpop.f32.mrf.mxu0
      %1692 = vdwg.mxu0
      %1693 = vrot.lane.b32.xlu0 %v1549, 120
      %v1694 = vpop.permute.xlu0 %1693
      %1695 = vrot.lane.b32.xlu0 %v1549, 88
      %v1696 = vpop.permute.xlu0 %1695
      %v1697 = vsel %vm636, %v1694, 0
      %v1699 = vsel %vm636, %v1696, 0
      %1701 = vmatprep.subr.mxu0 0.0
      %1702 = vmatpush1.xpose.msra.mxu0 0.0
      %1703 = vmatprep.subr.mxu0 0.0
      %1704 = vmatpush1.xpose.msra.mxu0 0.0
      %1705 = vmatprep.subr.mxu0 0.0
      %1706 = vmatpush1.xpose.msra.mxu0 0.0
      %1707 = vmatprep.subr.mxu0 0.0
      %1708 = vmatpush1.xpose.msra.mxu0 0.0
      %1709 = vmatprep.subr.mxu0 0.0
      %1710 = vmatpush1.xpose.msra.mxu0 0.0
      %1711 = vmatprep.subr.mxu0 0.0
      %1712 = vmatpush1.xpose.msra.mxu0 0.0
      %1713 = vmatprep.subr.mxu0 0.0
      %1714 = vmatpush1.xpose.msra.mxu0 0.0
      %1715 = vmatprep.subr.mxu0 0.0
      %1716 = vmatpush1.xpose.msra.mxu0 0.0
      %1717 = vmatprep.subr.mxu0 0.0
      %1718 = vmatpush1.xpose.msra.mxu0 0.0
      %1719 = vmatprep.subr.mxu0 0.0
      %1720 = vmatpush1.xpose.msra.mxu0 0.0
      %1721 = vmatprep.subr.mxu0 0.0
      %1722 = vmatpush1.xpose.msra.mxu0 0.0
      %1723 = vmatprep.subr.mxu0 0.0
      %1724 = vmatpush1.xpose.msra.mxu0 0.0
      %1725 = vmatprep.subr.mxu0 0.0
      %1726 = vmatpush1.xpose.msra.mxu0 0.0
      %1727 = vmatprep.subr.mxu0 0.0
      %1728 = vmatpush1.xpose.msra.mxu0 0.0
      %1729 = vmatprep.subr.mxu0 0.0
      %1730 = vmatpush1.xpose.msra.mxu0 0.0
      %1731 = vmatprep.subr.mxu0 0.0
      %1732 = vmatpush1.xpose.msra.mxu0 %v1699
      %1733 = vmatprep.subr.mxu0 0.0
      %1734 = vmatpush2.xpose.msra.mxu0 0.0
      %1735 = vmatprep.subr.mxu0 0.0
      %1736 = vmatpush2.xpose.msra.mxu0 0.0
      %1737 = vmatprep.subr.mxu0 0.0
      %1738 = vmatpush2.xpose.msra.mxu0 0.0
      %1739 = vmatprep.subr.mxu0 0.0
      %1740 = vmatpush2.xpose.msra.mxu0 0.0
      %1741 = vmatprep.subr.mxu0 0.0
      %1742 = vmatpush2.xpose.msra.mxu0 0.0
      %1743 = vmatprep.subr.mxu0 0.0
      %1744 = vmatpush2.xpose.msra.mxu0 0.0
      %1745 = vmatprep.subr.mxu0 0.0
      %1746 = vmatpush2.xpose.msra.mxu0 0.0
      %1747 = vmatprep.subr.mxu0 0.0
      %1748 = vmatpush2.xpose.msra.mxu0 0.0
      %1749 = vmatprep.subr.mxu0 0.0
      %1750 = vmatpush2.xpose.msra.mxu0 0.0
      %1751 = vmatprep.subr.mxu0 0.0
      %1752 = vmatpush2.xpose.msra.mxu0 0.0
      %1753 = vmatprep.subr.mxu0 0.0
      %1754 = vmatpush2.xpose.msra.mxu0 0.0
      %1755 = vmatprep.subr.mxu0 0.0
      %1756 = vmatpush2.xpose.msra.mxu0 0.0
      %1757 = vmatprep.subr.mxu0 0.0
      %1758 = vmatpush2.xpose.msra.mxu0 0.0
      %1759 = vmatprep.subr.mxu0 0.0
      %1760 = vmatpush2.xpose.msra.mxu0 0.0
      %1761 = vmatprep.subr.mxu0 0.0
      %1762 = vmatpush2.xpose.msra.mxu0 0.0
      %1763 = vmatprep.subr.mxu0 0.0
      %1764 = vmatpush2.xpose.msra.mxu0 0.0
      %1765 = vmatprep.mubr.f32.mxu0 0.0
      %1766 = vmatmul.mubr.f32.gmra.mxu0 %v1697
      %v1767 = vpop.f32.mrf.mxu0
      %v1768 = vadd.f32 0.0, %v1767
      %v1769 = vpop.f32.mrf.mxu0
      %1770 = vdwg.mxu0
      %v1771 = vsel %vm711, %v1768, -inf
      %1772 = vmax.xlane.f32.xlu0 %v1771
      %v1773 = vpop.xlane.xlu0 %1772
      %v1774 = vsub.f32 %v1768, %v1773
      %v1775 = vmul.f32 %v1774, 1.442695
      %v1776 = vpow.pop %v1775
      %v1777 = vsel %vm711, %v1776, 0.0
      %1778 = vadd.xlane.f32.xlu0 %v1777
      %v1779 = vpop.xlane.xlu0 %1778
      %v1780 = vrcp.pop %v1779
      %v1781 = vmul.f32 %v1776, %v1780
      %v1782 = vpack.c.bf16 %v1781, %v1781
      %1783 = vrot.lane.b32.xlu0 %v1643, 56
      %v1784 = vpop.permute.xlu0 %1783
      %v1786 = vsel %vm728, %v1782, 0
      %v1789 = vand.u32 %v1784, %v735
      %1791 = vmatprep.subr.bf16.mxu0 0
      %1792 = vmatpush1.bf16.msra.mxu0 0
      %1793 = vmatprep.subr.bf16.mxu0 0
      %1794 = vmatpush1.bf16.msra.mxu0 0
      %1795 = vmatprep.subr.bf16.mxu0 0
      %1796 = vmatpush1.bf16.msra.mxu0 0
      %1797 = vmatprep.subr.bf16.mxu0 0
      %1798 = vmatpush1.bf16.msra.mxu0 0
      %1799 = vmatprep.subr.bf16.mxu0 0
      %1800 = vmatpush1.bf16.msra.mxu0 0
      %1801 = vmatprep.subr.bf16.mxu0 0
      %1802 = vmatpush1.bf16.msra.mxu0 0
      %1803 = vmatprep.subr.bf16.mxu0 0
      %1804 = vmatpush1.bf16.msra.mxu0 0
      %1805 = vmatprep.subr.bf16.mxu0 0
      %1806 = vmatpush1.bf16.msra.mxu0 %v1789
      %1807 = vmatprep.subr.bf16.mxu0 0
      %1808 = vmatpush2.bf16.msra.mxu0 0
      %1809 = vmatprep.subr.bf16.mxu0 0
      %1810 = vmatpush2.bf16.msra.mxu0 0
      %1811 = vmatprep.subr.bf16.mxu0 0
      %1812 = vmatpush2.bf16.msra.mxu0 0
      %1813 = vmatprep.subr.bf16.mxu0 0
      %1814 = vmatpush2.bf16.msra.mxu0 0
      %1815 = vmatprep.subr.bf16.mxu0 0
      %1816 = vmatpush2.bf16.msra.mxu0 0
      %1817 = vmatprep.subr.bf16.mxu0 0
      %1818 = vmatpush2.bf16.msra.mxu0 0
      %1819 = vmatprep.subr.bf16.mxu0 0
      %1820 = vmatpush2.bf16.msra.mxu0 0
      %1821 = vmatprep.subr.bf16.mxu0 0
      %1822 = vmatpush2.bf16.msra.mxu0 0
      %1823 = vmatprep.mubr.bf16.mxu0 0
      %1824 = vmatmul.mubr.bf16.gmra.mxu0 %v1786
      %v1825 = vpop.f32.mrf.mxu0
      %v1826 = vadd.f32 0.0, %v1825
      %v1827 = vpop.f32.mrf.mxu0
      %v1828 = vpop.f32.mrf.mxu0
      %v1829 = vpop.f32.mrf.mxu0
      %1830 = vdwg.mxu0
      %1831 = vrot.lane.b32.xlu0 %v1549, 112
      %v1832 = vpop.permute.xlu0 %1831
      %1833 = vrot.lane.b32.xlu0 %v1549, 80
      %v1834 = vpop.permute.xlu0 %1833
      %v1835 = vsel %vm636, %v1832, 0
      %v1837 = vsel %vm636, %v1834, 0
      %1839 = vmatprep.subr.mxu0 0.0
      %1840 = vmatpush1.xpose.msra.mxu0 0.0
      %1841 = vmatprep.subr.mxu0 0.0
      %1842 = vmatpush1.xpose.msra.mxu0 0.0
      %1843 = vmatprep.subr.mxu0 0.0
      %1844 = vmatpush1.xpose.msra.mxu0 0.0
      %1845 = vmatprep.subr.mxu0 0.0
      %1846 = vmatpush1.xpose.msra.mxu0 0.0
      %1847 = vmatprep.subr.mxu0 0.0
      %1848 = vmatpush1.xpose.msra.mxu0 0.0
      %1849 = vmatprep.subr.mxu0 0.0
      %1850 = vmatpush1.xpose.msra.mxu0 0.0
      %1851 = vmatprep.subr.mxu0 0.0
      %1852 = vmatpush1.xpose.msra.mxu0 0.0
      %1853 = vmatprep.subr.mxu0 0.0
      %1854 = vmatpush1.xpose.msra.mxu0 0.0
      %1855 = vmatprep.subr.mxu0 0.0
      %1856 = vmatpush1.xpose.msra.mxu0 0.0
      %1857 = vmatprep.subr.mxu0 0.0
      %1858 = vmatpush1.xpose.msra.mxu0 0.0
      %1859 = vmatprep.subr.mxu0 0.0
      %1860 = vmatpush1.xpose.msra.mxu0 0.0
      %1861 = vmatprep.subr.mxu0 0.0
      %1862 = vmatpush1.xpose.msra.mxu0 0.0
      %1863 = vmatprep.subr.mxu0 0.0
      %1864 = vmatpush1.xpose.msra.mxu0 0.0
      %1865 = vmatprep.subr.mxu0 0.0
      %1866 = vmatpush1.xpose.msra.mxu0 0.0
      %1867 = vmatprep.subr.mxu0 0.0
      %1868 = vmatpush1.xpose.msra.mxu0 0.0
      %1869 = vmatprep.subr.mxu0 0.0
      %1870 = vmatpush1.xpose.msra.mxu0 %v1837
      %1871 = vmatprep.subr.mxu0 0.0
      %1872 = vmatpush2.xpose.msra.mxu0 0.0
      %1873 = vmatprep.subr.mxu0 0.0
      %1874 = vmatpush2.xpose.msra.mxu0 0.0
      %1875 = vmatprep.subr.mxu0 0.0
      %1876 = vmatpush2.xpose.msra.mxu0 0.0
      %1877 = vmatprep.subr.mxu0 0.0
      %1878 = vmatpush2.xpose.msra.mxu0 0.0
      %1879 = vmatprep.subr.mxu0 0.0
      %1880 = vmatpush2.xpose.msra.mxu0 0.0
      %1881 = vmatprep.subr.mxu0 0.0
      %1882 = vmatpush2.xpose.msra.mxu0 0.0
      %1883 = vmatprep.subr.mxu0 0.0
      %1884 = vmatpush2.xpose.msra.mxu0 0.0
      %1885 = vmatprep.subr.mxu0 0.0
      %1886 = vmatpush2.xpose.msra.mxu0 0.0
      %1887 = vmatprep.subr.mxu0 0.0
      %1888 = vmatpush2.xpose.msra.mxu0 0.0
      %1889 = vmatprep.subr.mxu0 0.0
      %1890 = vmatpush2.xpose.msra.mxu0 0.0
      %1891 = vmatprep.subr.mxu0 0.0
      %1892 = vmatpush2.xpose.msra.mxu0 0.0
      %1893 = vmatprep.subr.mxu0 0.0
      %1894 = vmatpush2.xpose.msra.mxu0 0.0
      %1895 = vmatprep.subr.mxu0 0.0
      %1896 = vmatpush2.xpose.msra.mxu0 0.0
      %1897 = vmatprep.subr.mxu0 0.0
      %1898 = vmatpush2.xpose.msra.mxu0 0.0
      %1899 = vmatprep.subr.mxu0 0.0
      %1900 = vmatpush2.xpose.msra.mxu0 0.0
      %1901 = vmatprep.subr.mxu0 0.0
      %1902 = vmatpush2.xpose.msra.mxu0 0.0
      %1903 = vmatprep.mubr.f32.mxu0 0.0
      %1904 = vmatmul.mubr.f32.gmra.mxu0 %v1835
      %v1905 = vpop.f32.mrf.mxu0
      %v1906 = vadd.f32 0.0, %v1905
      %v1907 = vpop.f32.mrf.mxu0
      %1908 = vdwg.mxu0
      %v1909 = vsel %vm711, %v1906, -inf
      %1910 = vmax.xlane.f32.xlu0 %v1909
      %v1911 = vpop.xlane.xlu0 %1910
      %v1912 = vsub.f32 %v1906, %v1911
      %v1913 = vmul.f32 %v1912, 1.442695
      %v1914 = vpow.pop %v1913
      %v1915 = vsel %vm711, %v1914, 0.0
      %1916 = vadd.xlane.f32.xlu0 %v1915
      %v1917 = vpop.xlane.xlu0 %1916
      %v1918 = vrcp.pop %v1917
      %v1919 = vmul.f32 %v1914, %v1918
      %v1920 = vpack.c.bf16 %v1919, %v1919
      %1921 = vrot.lane.b32.xlu0 %v1643, 48
      %v1922 = vpop.permute.xlu0 %1921
      %v1924 = vsel %vm728, %v1920, 0
      %v1927 = vand.u32 %v1922, %v735
      %1929 = vmatprep.subr.bf16.mxu0 0
      %1930 = vmatpush1.bf16.msra.mxu0 0
      %1931 = vmatprep.subr.bf16.mxu0 0
      %1932 = vmatpush1.bf16.msra.mxu0 0
      %1933 = vmatprep.subr.bf16.mxu0 0
      %1934 = vmatpush1.bf16.msra.mxu0 0
      %1935 = vmatprep.subr.bf16.mxu0 0
      %1936 = vmatpush1.bf16.msra.mxu0 0
      %1937 = vmatprep.subr.bf16.mxu0 0
      %1938 = vmatpush1.bf16.msra.mxu0 0
      %1939 = vmatprep.subr.bf16.mxu0 0
      %1940 = vmatpush1.bf16.msra.mxu0 0
      %1941 = vmatprep.subr.bf16.mxu0 0
      %1942 = vmatpush1.bf16.msra.mxu0 0
      %1943 = vmatprep.subr.bf16.mxu0 0
      %1944 = vmatpush1.bf16.msra.mxu0 %v1927
      %1945 = vmatprep.subr.bf16.mxu0 0
      %1946 = vmatpush2.bf16.msra.mxu0 0
      %1947 = vmatprep.subr.bf16.mxu0 0
      %1948 = vmatpush2.bf16.msra.mxu0 0
      %1949 = vmatprep.subr.bf16.mxu0 0
      %1950 = vmatpush2.bf16.msra.mxu0 0
      %1951 = vmatprep.subr.bf16.mxu0 0
      %1952 = vmatpush2.bf16.msra.mxu0 0
      %1953 = vmatprep.subr.bf16.mxu0 0
      %1954 = vmatpush2.bf16.msra.mxu0 0
      %1955 = vmatprep.subr.bf16.mxu0 0
      %1956 = vmatpush2.bf16.msra.mxu0 0
      %1957 = vmatprep.subr.bf16.mxu0 0
      %1958 = vmatpush2.bf16.msra.mxu0 0
      %1959 = vmatprep.subr.bf16.mxu0 0
      %1960 = vmatpush2.bf16.msra.mxu0 0
      %1961 = vmatprep.mubr.bf16.mxu0 0
      %1962 = vmatmul.mubr.bf16.gmra.mxu0 %v1924
      %v1963 = vpop.f32.mrf.mxu0
      %v1964 = vadd.f32 0.0, %v1963
      %v1965 = vpop.f32.mrf.mxu0
      %v1966 = vpop.f32.mrf.mxu0
      %v1967 = vpop.f32.mrf.mxu0
      %1968 = vdwg.mxu0
      %1969 = vrot.lane.b32.xlu0 %v1549, 104
      %v1970 = vpop.permute.xlu0 %1969
      %1971 = vrot.lane.b32.xlu0 %v1549, 72
      %v1972 = vpop.permute.xlu0 %1971
      %v1973 = vsel %vm636, %v1970, 0
      %v1975 = vsel %vm636, %v1972, 0
      %1977 = vmatprep.subr.mxu0 0.0
      %1978 = vmatpush1.xpose.msra.mxu0 0.0
      %1979 = vmatprep.subr.mxu0 0.0
      %1980 = vmatpush1.xpose.msra.mxu0 0.0
      %1981 = vmatprep.subr.mxu0 0.0
      %1982 = vmatpush1.xpose.msra.mxu0 0.0
      %1983 = vmatprep.subr.mxu0 0.0
      %1984 = vmatpush1.xpose.msra.mxu0 0.0
      %1985 = vmatprep.subr.mxu0 0.0
      %1986 = vmatpush1.xpose.msra.mxu0 0.0
      %1987 = vmatprep.subr.mxu0 0.0
      %1988 = vmatpush1.xpose.msra.mxu0 0.0
      %1989 = vmatprep.subr.mxu0 0.0
      %1990 = vmatpush1.xpose.msra.mxu0 0.0
      %1991 = vmatprep.subr.mxu0 0.0
      %1992 = vmatpush1.xpose.msra.mxu0 0.0
      %1993 = vmatprep.subr.mxu0 0.0
      %1994 = vmatpush1.xpose.msra.mxu0 0.0
      %1995 = vmatprep.subr.mxu0 0.0
      %1996 = vmatpush1.xpose.msra.mxu0 0.0
      %1997 = vmatprep.subr.mxu0 0.0
      %1998 = vmatpush1.xpose.msra.mxu0 0.0
      %1999 = vmatprep.subr.mxu0 0.0
      %2000 = vmatpush1.xpose.msra.mxu0 0.0
      %2001 = vmatprep.subr.mxu0 0.0
      %2002 = vmatpush1.xpose.msra.mxu0 0.0
      %2003 = vmatprep.subr.mxu0 0.0
      %2004 = vmatpush1.xpose.msra.mxu0 0.0
      %2005 = vmatprep.subr.mxu0 0.0
      %2006 = vmatpush1.xpose.msra.mxu0 0.0
      %2007 = vmatprep.subr.mxu0 0.0
      %2008 = vmatpush1.xpose.msra.mxu0 %v1975
      %2009 = vmatprep.subr.mxu0 0.0
      %2010 = vmatpush2.xpose.msra.mxu0 0.0
      %2011 = vmatprep.subr.mxu0 0.0
      %2012 = vmatpush2.xpose.msra.mxu0 0.0
      %2013 = vmatprep.subr.mxu0 0.0
      %2014 = vmatpush2.xpose.msra.mxu0 0.0
      %2015 = vmatprep.subr.mxu0 0.0
      %2016 = vmatpush2.xpose.msra.mxu0 0.0
      %2017 = vmatprep.subr.mxu0 0.0
      %2018 = vmatpush2.xpose.msra.mxu0 0.0
      %2019 = vmatprep.subr.mxu0 0.0
      %2020 = vmatpush2.xpose.msra.mxu0 0.0
      %2021 = vmatprep.subr.mxu0 0.0
      %2022 = vmatpush2.xpose.msra.mxu0 0.0
      %2023 = vmatprep.subr.mxu0 0.0
      %2024 = vmatpush2.xpose.msra.mxu0 0.0
      %2025 = vmatprep.subr.mxu0 0.0
      %2026 = vmatpush2.xpose.msra.mxu0 0.0
      %2027 = vmatprep.subr.mxu0 0.0
      %2028 = vmatpush2.xpose.msra.mxu0 0.0
      %2029 = vmatprep.subr.mxu0 0.0
      %2030 = vmatpush2.xpose.msra.mxu0 0.0
      %2031 = vmatprep.subr.mxu0 0.0
      %2032 = vmatpush2.xpose.msra.mxu0 0.0
      %2033 = vmatprep.subr.mxu0 0.0
      %2034 = vmatpush2.xpose.msra.mxu0 0.0
      %2035 = vmatprep.subr.mxu0 0.0
      %2036 = vmatpush2.xpose.msra.mxu0 0.0
      %2037 = vmatprep.subr.mxu0 0.0
      %2038 = vmatpush2.xpose.msra.mxu0 0.0
      %2039 = vmatprep.subr.mxu0 0.0
      %2040 = vmatpush2.xpose.msra.mxu0 0.0
      %2041 = vmatprep.mubr.f32.mxu0 0.0
      %2042 = vmatmul.mubr.f32.gmra.mxu0 %v1973
      %v2043 = vpop.f32.mrf.mxu0
      %v2044 = vadd.f32 0.0, %v2043
      %v2045 = vpop.f32.mrf.mxu0
      %2046 = vdwg.mxu0
      %v2047 = vsel %vm711, %v2044, -inf
      %2048 = vmax.xlane.f32.xlu0 %v2047
      %v2049 = vpop.xlane.xlu0 %2048
      %v2050 = vsub.f32 %v2044, %v2049
      %v2051 = vmul.f32 %v2050, 1.442695
      %v2052 = vpow.pop %v2051
      %v2053 = vsel %vm711, %v2052, 0.0
      %2054 = vadd.xlane.f32.xlu0 %v2053
      %v2055 = vpop.xlane.xlu0 %2054
      %v2056 = vrcp.pop %v2055
      %v2057 = vmul.f32 %v2052, %v2056
      %v2058 = vpack.c.bf16 %v2057, %v2057
      %2059 = vrot.lane.b32.xlu0 %v1643, 40
      %v2060 = vpop.permute.xlu0 %2059
      %v2062 = vsel %vm728, %v2058, 0
      %v2065 = vand.u32 %v2060, %v735
      %2067 = vmatprep.subr.bf16.mxu0 0
      %2068 = vmatpush1.bf16.msra.mxu0 0
      %2069 = vmatprep.subr.bf16.mxu0 0
      %2070 = vmatpush1.bf16.msra.mxu0 0
      %2071 = vmatprep.subr.bf16.mxu0 0
      %2072 = vmatpush1.bf16.msra.mxu0 0
      %2073 = vmatprep.subr.bf16.mxu0 0
      %2074 = vmatpush1.bf16.msra.mxu0 0
      %2075 = vmatprep.subr.bf16.mxu0 0
      %2076 = vmatpush1.bf16.msra.mxu0 0
      %2077 = vmatprep.subr.bf16.mxu0 0
      %2078 = vmatpush1.bf16.msra.mxu0 0
      %2079 = vmatprep.subr.bf16.mxu0 0
      %2080 = vmatpush1.bf16.msra.mxu0 0
      %2081 = vmatprep.subr.bf16.mxu0 0
      %2082 = vmatpush1.bf16.msra.mxu0 %v2065
      %2083 = vmatprep.subr.bf16.mxu0 0
      %2084 = vmatpush2.bf16.msra.mxu0 0
      %2085 = vmatprep.subr.bf16.mxu0 0
      %2086 = vmatpush2.bf16.msra.mxu0 0
      %2087 = vmatprep.subr.bf16.mxu0 0
      %2088 = vmatpush2.bf16.msra.mxu0 0
      %2089 = vmatprep.subr.bf16.mxu0 0
      %2090 = vmatpush2.bf16.msra.mxu0 0
      %2091 = vmatprep.subr.bf16.mxu0 0
      %2092 = vmatpush2.bf16.msra.mxu0 0
      %2093 = vmatprep.subr.bf16.mxu0 0
      %2094 = vmatpush2.bf16.msra.mxu0 0
      %2095 = vmatprep.subr.bf16.mxu0 0
      %2096 = vmatpush2.bf16.msra.mxu0 0
      %2097 = vmatprep.subr.bf16.mxu0 0
      %2098 = vmatpush2.bf16.msra.mxu0 0
      %2099 = vmatprep.mubr.bf16.mxu0 0
      %2100 = vmatmul.mubr.bf16.gmra.mxu0 %v2062
      %v2101 = vpop.f32.mrf.mxu0
      %v2102 = vadd.f32 0.0, %v2101
      %v2103 = vpop.f32.mrf.mxu0
      %v2104 = vpop.f32.mrf.mxu0
      %v2105 = vpop.f32.mrf.mxu0
      %2106 = vdwg.mxu0
      %2108 = vrot.lane.b32.xlu0 %v1826, 8
      %v2109 = vpop.permute.xlu0 %2108
      %2112 = vrot.lane.b32.xlu0 %v1964, 16
      %v2113 = vpop.permute.xlu0 %2112
      %2116 = vrot.lane.b32.xlu0 %v2102, 24
      %v2117 = vpop.permute.xlu0 %2116
      %v2119 = vsel %vm636, %v1688, %v2109
      %v2120 = vsel %vm1206, %v2119, %v2113
      %v2121 = vsel %vm1208, %v2120, %v2117
      %v2122 = vpack.c.bf16 %v2121, %v2121
      %v2123 = vld [vmem:[%s1490] sm:$0xf]
      %v2124 = vld [vmem:[%s1490 + $0x8] sm:$0xf]
      %v2125 = vld [vmem:[%s1490 + $0x10] sm:$0xf]
      %v2126 = vld [vmem:[%s1490 + $0x18] sm:$0xf]
      %v2131 = vunpack.c.l.b16 %v2123
      %v2132 = vunpack.c.l.b16 %v2124
      %v2133 = vunpack.c.l.b16 %v2125
      %v2134 = vunpack.c.l.b16 %v2126
      %v2135 = vpack.c.b16 %v2132, %v2131
      %v2136 = vpack.c.b16 %v2134, %v2133
      %2137 = vrot.lane.b32.xlu0 %v2135, 32
      %v2138 = vpop.permute.xlu0 %2137
      %2139 = vrot.lane.b32.xlu0 %v2136, 32
      %v2140 = vpop.permute.xlu0 %2139
      %v2144 = vsel %vm589, %v2122, 0
      %2146 = vmatprep.subr.bf16.mxu0 0
      %2147 = vmatpush1.bf16.msra.mxu0 0
      %2148 = vmatprep.subr.bf16.mxu0 0
      %2149 = vmatpush1.bf16.msra.mxu0 0
      %2150 = vmatprep.subr.bf16.mxu0 0
      %2151 = vmatpush1.bf16.msra.mxu0 0
      %2152 = vmatprep.subr.bf16.mxu0 0
      %2153 = vmatpush1.bf16.msra.mxu0 0
      %2154 = vmatprep.subr.bf16.mxu0 0
      %2155 = vmatpush1.bf16.msra.mxu0 0
      %2156 = vmatprep.subr.bf16.mxu0 0
      %2157 = vmatpush1.bf16.msra.mxu0 0
      %2158 = vmatprep.subr.bf16.mxu0 0
      %2159 = vmatpush1.bf16.msra.mxu0 %v2140
      %2160 = vmatprep.subr.bf16.mxu0 0
      %2161 = vmatpush1.bf16.msra.mxu0 %v2138
      %2162 = vmatprep.subr.bf16.mxu0 0
      %2163 = vmatpush2.bf16.msra.mxu0 0
      %2164 = vmatprep.subr.bf16.mxu0 0
      %2165 = vmatpush2.bf16.msra.mxu0 0
      %2166 = vmatprep.subr.bf16.mxu0 0
      %2167 = vmatpush2.bf16.msra.mxu0 0
      %2168 = vmatprep.subr.bf16.mxu0 0
      %2169 = vmatpush2.bf16.msra.mxu0 0
      %2170 = vmatprep.subr.bf16.mxu0 0
      %2171 = vmatpush2.bf16.msra.mxu0 0
      %2172 = vmatprep.subr.bf16.mxu0 0
      %2173 = vmatpush2.bf16.msra.mxu0 0
      %2174 = vmatprep.subr.bf16.mxu0 0
      %2175 = vmatpush2.bf16.msra.mxu0 0
      %2176 = vmatprep.subr.bf16.mxu0 0
      %2177 = vmatpush2.bf16.msra.mxu0 0
      %2178 = vmatprep.mubr.bf16.mxu0 0
      %2179 = vmatmul.mubr.bf16.gmra.mxu0 %v2144
      %v2180 = vpop.f32.mrf.mxu0
      %v2181 = vadd.f32 0.0, %v2180
      %v2182 = vpop.f32.mrf.mxu0
      %v2183 = vpop.f32.mrf.mxu0
      %v2184 = vpop.f32.mrf.mxu0
      %2185 = vdwg.mxu0
      %v2186 = vadd.f32 %v1456, %v2181
      %v2187 = vlaneseq
      %v2188 = vshrl.u32 %v2187, 7
      %v2189 = vsub.s32 0, %v2188
      %v2190 = vrot.slane %v1463, %v2189
      %v2191 = vadd.f32 %v2186, %v2190
      %v2192 = vsel %vm512, %v2191, 0.0
      %2193 = vadd.xlane.f32.xlu0 %v2192
      %v2194 = vpop.xlane.xlu0 %2193
      %v2195 = vmul.f32 %v2194, %v516
      %v2196 = vsub.f32 %v2191, %v2195
      %v2197 = vmul.f32 %v2196, %v2196
      %v2198 = vsel %vm512, %v2197, 0.0
      %2199 = vadd.xlane.f32.xlu0 %v2198
      %v2200 = vpop.xlane.xlu0 %2199
      %v2201 = vmul.f32 %v2200, %v516
      %v2202 = vadd.f32 %v2201, 1e-05
      %v2203 = vrsqrt.pop %v2202
      %v2204 = vmul.f32 %v2196, %v2203
      %v2205 = vlaneseq
      %v2206 = vshrl.u32 %v2205, 7
      %v2207 = vsub.s32 0, %v2206
      %v2208 = vrot.slane %v1461, %v2207
      %v2209 = vmul.f32 %v2204, %v2208
      %v2210 = vlaneseq
      %v2211 = vshrl.u32 %v2210, 7
      %v2212 = vsub.s32 0, %v2211
      %v2213 = vrot.slane %v1462, %v2212
      %v2214 = vadd.f32 %v2209, %v2213
      %v2215 = vpack.c.bf16 %v2214, %v2214
      %v2216 = vld [vmem:[%s1490 + $0x4] sm:$0xf]
      %v2217 = vld [vmem:[%s1490 + $0xc] sm:$0xf]
      %v2218 = vld [vmem:[%s1490 + $0x14] sm:$0xf]
      %v2219 = vld [vmem:[%s1490 + $0x1c] sm:$0xf]
      %v2220 = vlaneseq
      %v2221 = vshrl.u32 %v2220, 7
      %v2222 = vsub.s32 0, %v2221
      %v2223 = vrot.slane %v1464, %v2222
      %v2228 = vunpack.c.l.b16 %v2216
      %v2229 = vunpack.c.l.b16 %v2217
      %v2230 = vunpack.c.l.b16 %v2218
      %v2231 = vunpack.c.l.b16 %v2219
      %v2232 = vpack.c.b16 %v2229, %v2228
      %v2233 = vpack.c.b16 %v2231, %v2230
      %v2237 = vsel %vm589, %v2215, 0
      %2239 = vmatprep.subr.bf16.mxu0 0
      %2240 = vmatpush1.bf16.msra.mxu0 0
      %2241 = vmatprep.subr.bf16.mxu0 0
      %2242 = vmatpush1.bf16.msra.mxu0 0
      %2243 = vmatprep.subr.bf16.mxu0 0
      %2244 = vmatpush1.bf16.msra.mxu0 0
      %2245 = vmatprep.subr.bf16.mxu0 0
      %2246 = vmatpush1.bf16.msra.mxu0 0
      %2247 = vmatprep.subr.bf16.mxu0 0
      %2248 = vmatpush1.bf16.msra.mxu0 0
      %2249 = vmatprep.subr.bf16.mxu0 0
      %2250 = vmatpush1.bf16.msra.mxu0 0
      %2251 = vmatprep.subr.bf16.mxu0 0
      %2252 = vmatpush1.bf16.msra.mxu0 %v2233
      %2253 = vmatprep.subr.bf16.mxu0 0
      %2254 = vmatpush1.bf16.msra.mxu0 %v2232
      %2255 = vmatprep.subr.bf16.mxu0 0
      %2256 = vmatpush2.bf16.msra.mxu0 0
      %2257 = vmatprep.subr.bf16.mxu0 0
      %2258 = vmatpush2.bf16.msra.mxu0 0
      %2259 = vmatprep.subr.bf16.mxu0 0
      %2260 = vmatpush2.bf16.msra.mxu0 0
      %2261 = vmatprep.subr.bf16.mxu0 0
      %2262 = vmatpush2.bf16.msra.mxu0 0
      %2263 = vmatprep.subr.bf16.mxu0 0
      %2264 = vmatpush2.bf16.msra.mxu0 0
      %2265 = vmatprep.subr.bf16.mxu0 0
      %2266 = vmatpush2.bf16.msra.mxu0 0
      %2267 = vmatprep.subr.bf16.mxu0 0
      %2268 = vmatpush2.bf16.msra.mxu0 0
      %2269 = vmatprep.subr.bf16.mxu0 0
      %2270 = vmatpush2.bf16.msra.mxu0 0
      %2271 = vmatprep.mubr.bf16.mxu0 0
      %2272 = vmatmul.mubr.bf16.gmra.mxu0 %v2237
      %v2273 = vpop.f32.mrf.mxu0
      %v2274 = vadd.f32 %v2223, %v2273
      %v2275 = vpop.f32.mrf.mxu0
      %v2276 = vpop.f32.mrf.mxu0
      %v2277 = vpop.f32.mrf.mxu0
      %2278 = vdwg.mxu0
      %v2279 = vmul.f32 %v2274, 1.702
      %v2280 = vxor.u32 %v2279, 2147483648
      %v2281 = vmul.f32 %v2280, 1.442695
      %v2282 = vpow.pop %v2281
      %v2283 = vadd.f32 %v2282, 1.0
      %v2284 = vrcp.pop %v2283
      %v2285 = vmul.f32 1.0, %v2284
      %v2286 = vmul.f32 %v2274, %v2285
      %v2287 = vpack.c.bf16 %v2286, %v2286
      %s2288 = scalar_lea.vmem %s5, 32
      %v2289 = vld [vmem:[%s2288] sm:$0xf]
      %v2290 = vld [vmem:[%s2288 + $0x4] sm:$0xf]
      %v2291 = vld [vmem:[%s2288 + $0x8] sm:$0xf]
      %v2292 = vld [vmem:[%s2288 + $0xc] sm:$0xf]
      %v2293 = vld [vmem:[%s2288 + $0x10] sm:$0xf]
      %v2294 = vld [vmem:[%s2288 + $0x14] sm:$0xf]
      %v2295 = vld [vmem:[%s2288 + $0x18] sm:$0xf]
      %v2296 = vld [vmem:[%s2288 + $0x1c] sm:$0xf]
      %v2305 = vunpack.c.l.b16 %v2289
      %v2306 = vunpack.c.l.b16 %v2290
      %v2307 = vunpack.c.l.b16 %v2291
      %v2308 = vunpack.c.l.b16 %v2292
      %v2309 = vunpack.c.l.b16 %v2293
      %v2310 = vunpack.c.l.b16 %v2294
      %v2311 = vunpack.c.l.b16 %v2295
      %v2312 = vunpack.c.l.b16 %v2296
      %v2313 = vpack.c.b16 %v2306, %v2305
      %v2314 = vpack.c.b16 %v2308, %v2307
      %v2315 = vpack.c.b16 %v2310, %v2309
      %v2316 = vpack.c.b16 %v2312, %v2311
      %v2322 = vsel %vm466, %v2287, 0
      %2324 = vmatprep.subr.bf16.mxu0 0
      %2325 = vmatpush1.bf16.msra.mxu0 0
      %2326 = vmatprep.subr.bf16.mxu0 0
      %2327 = vmatpush1.bf16.msra.mxu0 0
      %2328 = vmatprep.subr.bf16.mxu0 0
      %2329 = vmatpush1.bf16.msra.mxu0 0
      %2330 = vmatprep.subr.bf16.mxu0 0
      %2331 = vmatpush1.bf16.msra.mxu0 0
      %2332 = vmatprep.subr.bf16.mxu0 0
      %2333 = vmatpush1.bf16.msra.mxu0 %v2316
      %2334 = vmatprep.subr.bf16.mxu0 0
      %2335 = vmatpush1.bf16.msra.mxu0 %v2315
      %2336 = vmatprep.subr.bf16.mxu0 0
      %2337 = vmatpush1.bf16.msra.mxu0 %v2314
      %2338 = vmatprep.subr.bf16.mxu0 0
      %2339 = vmatpush1.bf16.msra.mxu0 %v2313
      %2340 = vmatprep.subr.bf16.mxu0 0
      %2341 = vmatpush2.bf16.msra.mxu0 0
      %2342 = vmatprep.subr.bf16.mxu0 0
      %2343 = vmatpush2.bf16.msra.mxu0 0
      %2344 = vmatprep.subr.bf16.mxu0 0
      %2345 = vmatpush2.bf16.msra.mxu0 0
      %2346 = vmatprep.subr.bf16.mxu0 0
      %2347 = vmatpush2.bf16.msra.mxu0 0
      %2348 = vmatprep.subr.bf16.mxu0 0
      %2349 = vmatpush2.bf16.msra.mxu0 0
      %2350 = vmatprep.subr.bf16.mxu0 0
      %2351 = vmatpush2.bf16.msra.mxu0 0
      %2352 = vmatprep.subr.bf16.mxu0 0
      %2353 = vmatpush2.bf16.msra.mxu0 0
      %2354 = vmatprep.subr.bf16.mxu0 0
      %2355 = vmatpush2.bf16.msra.mxu0 0
      %2356 = vmatprep.mubr.bf16.mxu0 0
      %2357 = vmatmul.mubr.bf16.gmra.mxu0 %v2322
      %v2358 = vpop.f32.mrf.mxu0
      %v2359 = vadd.f32 0.0, %v2358
      %v2360 = vpop.f32.mrf.mxu0
      %v2361 = vpop.f32.mrf.mxu0
      %v2362 = vpop.f32.mrf.mxu0
      %2363 = vdwg.mxu0
      %v2364 = vadd.f32 %v2191, %v2359
      %v2365 = vlaneseq
      %v2366 = vshrl.u32 %v2365, 7
      %v2367 = vsub.s32 0, %v2366
      %v2368 = vrot.slane %v1465, %v2367
      %v2369 = vadd.f32 %v2364, %v2368
      %v2370 = vld [vmem:[%s8 + $0x7] sm:$0x1]
      %v2371 = vld [vmem:[%s8 + $0x8] sm:$0x1]
      %vm2372 = vcmask 253952
      %v2373 = vsel %vm2372, %v2369, 0.0
      %2374 = vadd.xlane.f32.xlu0 %v2373
      %v2375 = vpop.xlane.xlu0 %2374
      %v2376 = vmul.f32 %v2375, %v516
      %v2377 = vsub.f32 %v2369, %v2376
      %v2378 = vmul.f32 %v2377, %v2377
      %v2379 = vsel %vm2372, %v2378, 0.0
      %2380 = vadd.xlane.f32.xlu0 %v2379
      %v2381 = vpop.xlane.xlu0 %2380
      %v2382 = vmul.f32 %v2381, %v516
      %v2383 = vadd.f32 %v2382, 1e-05
      %v2384 = vrsqrt.pop %v2383
      %v2385 = vmul.f32 %v2377, %v2384
      %v2386 = vmul.f32 %v2385, %v2370
      %v2387 = vadd.f32 %v2386, %v2371
      %v2388 = vpack.c.bf16 %v2387, %v2387
      %v2389 = vld [vmem:[%s6 + $0x4] sm:$0xf]
      %v2390 = vld [vmem:[%s6 + $0xc] sm:$0xf]
      %v2391 = vld [vmem:[%s6 + $0x14] sm:$0xf]
      %v2392 = vld [vmem:[%s6 + $0x1c] sm:$0xf]
      %v2397 = vunpack.c.l.b16 %v2389
      %v2398 = vunpack.c.l.b16 %v2390
      %v2399 = vunpack.c.l.b16 %v2391
      %v2400 = vunpack.c.l.b16 %v2392
      %v2401 = vpack.c.b16 %v2398, %v2397
      %v2402 = vpack.c.b16 %v2400, %v2399
      %v2406 = vsel %vm589, %v2388, 0
      %2408 = vmatprep.subr.bf16.mxu0 0
      %2409 = vmatpush1.bf16.msra.mxu0 0
      %2410 = vmatprep.subr.bf16.mxu0 0
      %2411 = vmatpush1.bf16.msra.mxu0 0
      %2412 = vmatprep.subr.bf16.mxu0 0
      %2413 = vmatpush1.bf16.msra.mxu0 0
      %2414 = vmatprep.subr.bf16.mxu0 0
      %2415 = vmatpush1.bf16.msra.mxu0 0
      %2416 = vmatprep.subr.bf16.mxu0 0
      %2417 = vmatpush1.bf16.msra.mxu0 0
      %2418 = vmatprep.subr.bf16.mxu0 0
      %2419 = vmatpush1.bf16.msra.mxu0 0
      %2420 = vmatprep.subr.bf16.mxu0 0
      %2421 = vmatpush1.bf16.msra.mxu0 %v2402
      %2422 = vmatprep.subr.bf16.mxu0 0
      %2423 = vmatpush1.bf16.msra.mxu0 %v2401
      %2424 = vmatprep.subr.bf16.mxu0 0
      %2425 = vmatpush2.bf16.msra.mxu0 0
      %2426 = vmatprep.subr.bf16.mxu0 0
      %2427 = vmatpush2.bf16.msra.mxu0 0
      %2428 = vmatprep.subr.bf16.mxu0 0
      %2429 = vmatpush2.bf16.msra.mxu0 0
      %2430 = vmatprep.subr.bf16.mxu0 0
      %2431 = vmatpush2.bf16.msra.mxu0 0
      %2432 = vmatprep.subr.bf16.mxu0 0
      %2433 = vmatpush2.bf16.msra.mxu0 0
      %2434 = vmatprep.subr.bf16.mxu0 0
      %2435 = vmatpush2.bf16.msra.mxu0 0
      %2436 = vmatprep.subr.bf16.mxu0 0
      %2437 = vmatpush2.bf16.msra.mxu0 0
      %2438 = vmatprep.subr.bf16.mxu0 0
      %2439 = vmatpush2.bf16.msra.mxu0 0
      %2440 = vmatprep.mubr.bf16.mxu0 0
      %2441 = vmatmul.mubr.bf16.gmra.mxu0 %v2406
      %v2442 = vpop.f32.mrf.mxu0
      %v2443 = vadd.f32 0.0, %v2442
      %v2444 = vpop.f32.mrf.mxu0
      %v2445 = vpop.f32.mrf.mxu0
      %v2446 = vpop.f32.mrf.mxu0
      %2447 = vdwg.mxu0
      %v2448 = vld [vmem:[%s358] sm:$0x1]
      %2450 = vset.pattern.permute.xlu0 0
      %2451 = vperm.xlu0 %2450, %v2448
      %v2452 = vpop.permute.xlu0 %2451
      %v2454 = vlaneseq
      %v2455 = vshrl.u32 %v2454, 7
      %v2456 = vsub.s32 0, %v2455
      %v2457 = vrot.slane %v2452, %v2456
      %v2458 = vmul.f32 %v2443, %v2457
      %v2459 = vld [vmem:[%s8 + $0x9] sm:$0x1]
      %v2460 = vpack.c.bf16 %v2458, %v2458
      %v2461 = vld [vmem:[%s6] sm:$0xf]
      %v2462 = vld [vmem:[%s6 + $0x8] sm:$0xf]
      %v2463 = vld [vmem:[%s6 + $0x10] sm:$0xf]
      %v2464 = vld [vmem:[%s6 + $0x18] sm:$0xf]
      %v2469 = vunpack.c.l.b16 %v2461
      %v2470 = vunpack.c.l.b16 %v2462
      %v2471 = vunpack.c.l.b16 %v2463
      %v2472 = vunpack.c.l.b16 %v2464
      %v2473 = vpack.c.b16 %v2470, %v2469
      %v2474 = vpack.c.b16 %v2472, %v2471
      %v2478 = vsel %vm589, %v2460, 0
      %2480 = vmatprep.subr.bf16.mxu0 0
      %2481 = vmatpush1.bf16.msra.mxu0 0
      %2482 = vmatprep.subr.bf16.mxu0 0
      %2483 = vmatpush1.bf16.msra.mxu0 0
      %2484 = vmatprep.subr.bf16.mxu0 0
      %2485 = vmatpush1.bf16.msra.mxu0 0
      %2486 = vmatprep.subr.bf16.mxu0 0
      %2487 = vmatpush1.bf16.msra.mxu0 0
      %2488 = vmatprep.subr.bf16.mxu0 0
      %2489 = vmatpush1.bf16.msra.mxu0 0
      %2490 = vmatprep.subr.bf16.mxu0 0
      %2491 = vmatpush1.bf16.msra.mxu0 0
      %2492 = vmatprep.subr.bf16.mxu0 0
      %2493 = vmatpush1.bf16.msra.mxu0 %v2474
      %2494 = vmatprep.subr.bf16.mxu0 0
      %2495 = vmatpush1.bf16.msra.mxu0 %v2473
      %2496 = vmatprep.subr.bf16.mxu0 0
      %2497 = vmatpush2.bf16.msra.mxu0 0
      %2498 = vmatprep.subr.bf16.mxu0 0
      %2499 = vmatpush2.bf16.msra.mxu0 0
      %2500 = vmatprep.subr.bf16.mxu0 0
      %2501 = vmatpush2.bf16.msra.mxu0 0
      %2502 = vmatprep.subr.bf16.mxu0 0
      %2503 = vmatpush2.bf16.msra.mxu0 0
      %2504 = vmatprep.subr.bf16.mxu0 0
      %2505 = vmatpush2.bf16.msra.mxu0 0
      %2506 = vmatprep.subr.bf16.mxu0 0
      %2507 = vmatpush2.bf16.msra.mxu0 0
      %2508 = vmatprep.subr.bf16.mxu0 0
      %2509 = vmatpush2.bf16.msra.mxu0 0
      %2510 = vmatprep.subr.bf16.mxu0 0
      %2511 = vmatpush2.bf16.msra.mxu0 0
      %2512 = vmatprep.mubr.bf16.mxu0 0
      %2513 = vmatmul.mubr.bf16.gmra.mxu0 %v2478
      %v2514 = vpop.f32.mrf.mxu0
      %v2515 = vadd.f32 %v2459, %v2514
      %v2516 = vpop.f32.mrf.mxu0
      %v2517 = vpop.f32.mrf.mxu0
      %v2518 = vpop.f32.mrf.mxu0
      %2519 = vdwg.mxu0
      %v2521 = vrot.slane %v2515, 7
      %2522 = vrot.lane.b32.xlu0 %v2521, 96
      %v2523 = vpop.permute.xlu0 %2522
      %v2525 = vrot.slane %v2515, 6
      %2526 = vrot.lane.b32.xlu0 %v2525, 64
      %v2527 = vpop.permute.xlu0 %2526
      %v2529 = vrot.slane %v2515, 5
      %2530 = vrot.lane.b32.xlu0 %v2529, 32
      %v2531 = vpop.permute.xlu0 %2530
      %vm2533 = vcmask 1040384
      %v2534 = vsel %vm2533, %v2515, %v2523
      %v2535 = vsel %vm732, %v2534, %v2527
      %v2536 = vsel %vm733, %v2535, %v2531
      %v2537 = vld [vmem:[%s8 + $0xa] sm:$0x1]
      %v2538 = vld [vmem:[%s8 + $0xb] sm:$0x1]
      %vm2539 = vcmask 257024
      %v2540 = vsel %vm2539, %v2536, 0.0
      %2541 = vadd.xlane.f32.xlu0 %v2540
      %v2542 = vpop.xlane.xlu0 %2541
      %v2543 = vmul.f32 %v2542, %v516
      %v2544 = vsub.f32 %v2536, %v2543
      %v2545 = vmul.f32 %v2544, %v2544
      %v2546 = vsel %vm2539, %v2545, 0.0
      %2547 = vadd.xlane.f32.xlu0 %v2546
      %v2548 = vpop.xlane.xlu0 %2547
      %v2549 = vmul.f32 %v2548, %v516
      %v2550 = vadd.f32 %v2549, 1e-05
      %v2551 = vrsqrt.pop %v2550
      %v2552 = vmul.f32 %v2544, %v2551
      %v2553 = vlaneseq
      %v2554 = vshrl.u32 %v2553, 7
      %v2555 = vsub.s32 0, %v2554
      %v2556 = vrot.slane %v2537, %v2555
      %v2557 = vmul.f32 %v2552, %v2556
      %v2558 = vlaneseq
      %v2559 = vshrl.u32 %v2558, 7
      %v2560 = vsub.s32 0, %v2559
      %v2561 = vrot.slane %v2538, %v2560
      %v2562 = vadd.f32 %v2557, %v2561
      %v2563 = vld [vmem:[%s355] sm:$0xff]
      %2564 = vst.msk [vmem:[%s363] sm:$0xff] %vm589, %v2563
      %2565 = vst.msk [vmem:[%s363 + $0x8] sm:$0xf] %vm2539, %v2562
      %p2566 = scmp.lt.s32.totalorder %s20, 1
      %s2567 = scalar_select %p2566, %s20, 1
      %s2568 = smul.addr %s2567, 2
      %s2569 = smul.addr %s2568, 8
      %s2570 = scalar_lea.vmem %s9, %s2569
      // Predicated region
      $region57: #{ip_adapter_encoder_forward.1} parent=55 // pred_check
        %p2571 = pneg %p242
      $region58: #{ip_adapter_encoder_forward.1} parent=55 // pred_check_branch
        %2573 = sbr.rel (%p2571) target = $region60
      $region59: #{ip_adapter_encoder_forward.1} parent=55 // pred_region
        _
      $region60: #{ip_adapter_encoder_forward.1} parent=55 // pred_fallthru
        _
    $region56: #{ip_adapter_encoder_forward.1} parent=5 // pred_fallthru
      _
    %p2574 = scmp.le.s32.totalorder 2, %s15
    // Predicated region
    $region61: #{ip_adapter_encoder_forward.1} parent=5 // pred_check
      %p2575 = pneg %p2574
    $region62: #{ip_adapter_encoder_forward.1} parent=5 // pred_check_branch
      %2577 = sbr.rel (%p2575) target = $region64
    $region63: #{ip_adapter_encoder_forward.1} parent=5 // pred_region
      %s2578 = ssub.s32 %s15, 2
      // Predicated region
      $region65: #{ip_adapter_encoder_forward.1} parent=63 // pred_check
        %p2579 = pneg %p248
      $region66: #{ip_adapter_encoder_forward.1} parent=63 // pred_check_branch
        %2581 = sbr.rel (%p2579) target = $region68
      $region67: #{ip_adapter_encoder_forward.1} parent=63 // pred_region
        %p2582 = scmp.lt.s32.totalorder %s21, 1
        %s2583 = scalar_select %p2582, %s21, 1
        %s2584 = smul.addr %s2583, 2
        %s2585 = smul.addr %s2584, 8
        %s2586 = scalar_lea.vmem %s9, %s2585
      $region68: #{ip_adapter_encoder_forward.1} parent=63 // pred_fallthru
        _
    $region64: #{ip_adapter_encoder_forward.1} parent=5 // pred_fallthru
      _
  $region6: #{ip_adapter_encoder_forward.1} parent=0 // loop_footer
    %s19 = sadd.s32 1, %s15
  $region7: #{ip_adapter_encoder_forward.1} parent=0 // loop_footer_branch
    %14 = sbr.rel target = $region3
  $region8: #{ip_adapter_encoder_forward.1} parent=0 // loop_exit
    _

</llo_original>
